<compile_context>
chip_gen: v7x
topology: tpu7x:2x2x1
jax: 0.10.0
libtpu: 0.0.40
codegen_flags: <defaults>
</compile_context>

<pallas_src>
import functools

import jax
import jax.numpy as jnp
from jax import lax
from jax.experimental import pallas as pl
from jax.experimental.pallas import tpu as pltpu


def _flow_kernel(x1_ref, x2_ref, w1_ref, b1_ref, w2s_ref, b2s_ref,
                 w2t_ref, b2t_ref, ya_ref, yb_ref, ld_ref, *, num_layers):
    """One batch tile through all coupling + permutation layers (VMEM resident)."""
    a = x1_ref[...].astype(jnp.float32)                  # conditioner half (TB, Dh)
    b = x2_ref[...].astype(jnp.float32)                  # transformed half (TB, Dh)
    log_det = jnp.zeros(ld_ref.shape, jnp.float32)       # (TB, 1)

    mm_dtype = w1_ref.dtype   # matmul-input dtype (f32 or bf16); accumulation stays f32

    def one_layer(k, a, b, log_det):
        am = a.astype(mm_dtype)
        # Conditioner MLP (MXU, f32 accumulation); biases added in f32.
        h = jnp.dot(am, w1_ref[k], preferred_element_type=jnp.float32)
        h = jnp.maximum(h + b1_ref[pl.ds(k, 1), :], 0.0)           # ReLU, (TB, H)
        hm = h.astype(mm_dtype)
        s = jnp.dot(hm, w2s_ref[k], preferred_element_type=jnp.float32) \
            + b2s_ref[pl.ds(k, 1), :]
        t = jnp.dot(hm, w2t_ref[k], preferred_element_type=jnp.float32) \
            + b2t_ref[pl.ds(k, 1), :]
        s = jnp.tanh(s)                                            # bounded log-scale
        # Affine coupling: y2 = x2 * exp(s) + t ; log_det += sum(s)
        y2 = b * jnp.exp(s) + t
        log_det = log_det + jnp.sum(s, axis=-1, keepdims=True)
        # Permutation layer (half swap, log_det = 0) is just a variable swap.
        return y2, a, log_det

    if num_layers <= 8:
        # Small K: static unroll (best LLO scheduling visibility).
        for k in range(num_layers):
            a, b, log_det = one_layer(k, a, b, log_det)
    else:
        # Large K: fori_loop bounds vreg live ranges (avoids spill blow-up).
        def body(k, carry):
            return one_layer(k, *carry)
        a, b, log_det = lax.fori_loop(0, num_layers, body, (a, b, log_det))

    ya_ref[...] = a.astype(ya_ref.dtype)
    yb_ref[...] = b.astype(yb_ref.dtype)
    ld_ref[...] = log_det.astype(ld_ref.dtype)


def _round_up(n, m):
    return ((n + m - 1) // m) * m


def flow_forward(x, w1, b1, w2, b2, *, tile_b=128, matmul_dtype=jnp.float32):
    """Pallas Flow.forward: x (B, D) -> (u (B, D), log_det (B, 1))."""
    B, D = x.shape
    K, d_half, H = w1.shape
    assert D == 2 * d_half

    # --- host-side layout plumbing (keeps lane-unaligned work out of the kernel) ---
    x = x.astype(jnp.float32)
    x1 = x[:, :d_half]
    x2 = x[:, d_half:]
    w2_s = w2[:, :, :d_half].astype(matmul_dtype)   # (K, H, Dh) -> log-scale columns
    w2_t = w2[:, :, d_half:].astype(matmul_dtype)   # (K, H, Dh) -> shift columns
    w1_m = w1.astype(matmul_dtype)
    b1_f = b1.reshape(K, H).astype(jnp.float32)
    b2_f = b2.reshape(K, D).astype(jnp.float32)
    b2_s = b2_f[:, :d_half]
    b2_t = b2_f[:, d_half:]

    # Pad the batch to a tile multiple; padded rows are dropped afterwards.
    tile_b = max(8, min(tile_b, _round_up(B, 8)))
    Bp = _round_up(B, tile_b)
    if Bp != B:
        pad = ((0, Bp - B), (0, 0))
        x1 = jnp.pad(x1, pad)
        x2 = jnp.pad(x2, pad)

    grid = (Bp // tile_b,)
    row_spec = pl.BlockSpec((tile_b, d_half), lambda i: (i, 0))
    w_spec = lambda shape: pl.BlockSpec(shape, lambda i: (0, 0, 0))
    bias_spec = lambda shape: pl.BlockSpec(shape, lambda i: (0, 0))

    itemsize = jnp.dtype(matmul_dtype).itemsize
    flops = 2 * K * Bp * (d_half * H + H * D)
    transcendentals = 2 * K * Bp * d_half                     # tanh + exp per element
    bytes_accessed = (
        (x1.size + x2.size) * 4                               # inputs
        + Bp * D * 4 + Bp * 4                                 # outputs (y halves, log_det)
        + (w1_m.size + w2_s.size + w2_t.size) * itemsize      # weights
        + (b1_f.size + b2_s.size + b2_t.size) * 4             # biases
    )

    kernel = functools.partial(_flow_kernel, num_layers=K)

    y_a, y_b, log_det = pl.pallas_call(
        kernel,
        grid=grid,
        in_specs=[
            row_spec, row_spec,                               # x1, x2 (batch-tiled)
            w_spec((K, d_half, H)), bias_spec((K, H)),        # w1, b1
            w_spec((K, H, d_half)), bias_spec((K, d_half)),   # w2_s, b2_s
            w_spec((K, H, d_half)), bias_spec((K, d_half)),   # w2_t, b2_t
        ],
        out_specs=(
            row_spec, row_spec,
            pl.BlockSpec((tile_b, 1), lambda i: (i, 0)),
        ),
        out_shape=(
            jax.ShapeDtypeStruct((Bp, d_half), jnp.float32),
            jax.ShapeDtypeStruct((Bp, d_half), jnp.float32),
            jax.ShapeDtypeStruct((Bp, 1), jnp.float32),
        ),
        compiler_params=pltpu.CompilerParams(
            dimension_semantics=("parallel",)),
        cost_estimate=pl.CostEstimate(
            flops=flops, transcendentals=transcendentals,
            bytes_accessed=bytes_accessed),
    )(x1, x2, w1_m, b1_f, w2_s, b2_s, w2_t, b2_t)

    y = jnp.concatenate([y_a[:B], y_b[:B]], axis=-1)
    return y, log_det[:B]


def flow_forward_reference(x, w1, b1, w2, b2, *, matmul_dtype=jnp.float32):
    """Pure-JAX reference mirroring the PyTorch Flow.forward semantics."""
    B, D = x.shape
    K, d_half, H = w1.shape
    a = x[:, :d_half].astype(jnp.float32)
    b = x[:, d_half:].astype(jnp.float32)
    w1_m = w1.astype(matmul_dtype)
    w2_s = w2[:, :, :d_half].astype(matmul_dtype)
    w2_t = w2[:, :, d_half:].astype(matmul_dtype)
    b1_f = b1.reshape(K, H).astype(jnp.float32)
    b2_f = b2.reshape(K, D).astype(jnp.float32)
    log_det = jnp.zeros((B, 1), jnp.float32)
    for k in range(K):
        h = jnp.maximum(
            jnp.dot(a.astype(matmul_dtype), w1_m[k],
                    preferred_element_type=jnp.float32) + b1_f[k], 0.0)
        hm = h.astype(matmul_dtype)
        s = jnp.tanh(jnp.dot(hm, w2_s[k], preferred_element_type=jnp.float32)
                     + b2_f[k, :d_half])
        t = jnp.dot(hm, w2_t[k], preferred_element_type=jnp.float32) + b2_f[k, d_half:]
        y2 = b * jnp.exp(s) + t
        log_det = log_det + jnp.sum(s, axis=-1, keepdims=True)
        a, b = y2, a
    return jnp.concatenate([a, b], axis=-1), log_det


if __name__ == "__main__":
    # --- Config 1: f32 path, small K (static unrolled layer loop), exact batch. ---
    B, D, H, K = 256, 32, 32, 4
    d_half = D // 2

    key = jax.random.PRNGKey(0)
    kx, k1, k2, k3, k4 = jax.random.split(key, 5)
    x = jax.random.normal(kx, (B, D), dtype=jnp.float32)
    w1 = 0.3 * jax.random.normal(k1, (K, d_half, H), dtype=jnp.float32)
    b1 = 0.1 * jax.random.normal(k2, (K, 1, H), dtype=jnp.float32)
    w2 = 0.3 * jax.random.normal(k3, (K, H, D), dtype=jnp.float32)
    b2 = 0.1 * jax.random.normal(k4, (K, 1, D), dtype=jnp.float32)

    y, ld = flow_forward(x, w1, b1, w2, b2, tile_b=128)
    jax.block_until_ready((y, ld))
    y_ref, ld_ref = flow_forward_reference(x, w1, b1, w2, b2)
    assert y.shape == (B, D) and ld.shape == (B, 1)
    assert jnp.allclose(y, y_ref, atol=2e-5, rtol=2e-5)
    assert jnp.allclose(ld, ld_ref, atol=2e-5, rtol=2e-5)

    # --- Config 2: bf16 matmul path, K > 8 (in-kernel fori_loop), ragged batch. ---
    B2, K2 = 200, 10
    key2 = jax.random.PRNGKey(1)
    kx2, k5, k6, k7, k8 = jax.random.split(key2, 5)
    x_2 = jax.random.normal(kx2, (B2, D), dtype=jnp.float32)
    w1_2 = 0.3 * jax.random.normal(k5, (K2, d_half, H), dtype=jnp.float32)
    b1_2 = 0.1 * jax.random.normal(k6, (K2, 1, H), dtype=jnp.float32)
    w2_2 = 0.3 * jax.random.normal(k7, (K2, H, D), dtype=jnp.float32)
    b2_2 = 0.1 * jax.random.normal(k8, (K2, 1, D), dtype=jnp.float32)

    y2, ld2 = flow_forward(x_2, w1_2, b1_2, w2_2, b2_2,
                           tile_b=128, matmul_dtype=jnp.bfloat16)
    jax.block_until_ready((y2, ld2))
    y2_ref, ld2_ref = flow_forward_reference(x_2, w1_2, b1_2, w2_2, b2_2,
                                             matmul_dtype=jnp.bfloat16)
    assert y2.shape == (B2, D) and ld2.shape == (B2, 1)
    assert jnp.allclose(y2, y2_ref, atol=1e-2, rtol=1e-2)
    assert jnp.allclose(ld2, ld2_ref, atol=1e-2, rtol=1e-2)

    print("KERNEL_OK")
</pallas_src>

<mosaic_0001>
module attributes {stable_mosaic.version = 11 : i64} {
  func.func @_flow_kernel(%arg0: i32, %arg1: memref<128x16xf32, #tpu.memory_space<vmem>>, %arg2: memref<128x16xf32, #tpu.memory_space<vmem>>, %arg3: memref<4x16x32xf32, #tpu.memory_space<vmem>>, %arg4: memref<4x32xf32, #tpu.memory_space<vmem>>, %arg5: memref<4x32x16xf32, #tpu.memory_space<vmem>>, %arg6: memref<4x16xf32, #tpu.memory_space<vmem>>, %arg7: memref<4x32x16xf32, #tpu.memory_space<vmem>>, %arg8: memref<4x16xf32, #tpu.memory_space<vmem>>, %arg9: memref<128x16xf32, #tpu.memory_space<vmem>>, %arg10: memref<128x16xf32, #tpu.memory_space<vmem>>, %arg11: memref<128x1xf32, #tpu.memory_space<vmem>>) attributes {dimension_semantics = [#tpu.dimension_semantics<parallel>], iteration_bounds = array<i64: 2>, scalar_prefetch = 0 : i64, scratch_operands = 0 : i64, tpu.core_type = #tpu.core_type<tc>, window_params = [{transform_indices = @transform_0, window_bounds = array<i64: 128, 16>}, {transform_indices = @transform_1, window_bounds = array<i64: 128, 16>}, {pipeline_mode = #tpu.pipeline_mode<synchronous>, transform_indices = @transform_2, window_bounds = array<i64: 4, 16, 32>}, {pipeline_mode = #tpu.pipeline_mode<synchronous>, transform_indices = @transform_3, window_bounds = array<i64: 4, 32>}, {pipeline_mode = #tpu.pipeline_mode<synchronous>, transform_indices = @transform_4, window_bounds = array<i64: 4, 32, 16>}, {pipeline_mode = #tpu.pipeline_mode<synchronous>, transform_indices = @transform_5, window_bounds = array<i64: 4, 16>}, {pipeline_mode = #tpu.pipeline_mode<synchronous>, transform_indices = @transform_6, window_bounds = array<i64: 4, 32, 16>}, {pipeline_mode = #tpu.pipeline_mode<synchronous>, transform_indices = @transform_7, window_bounds = array<i64: 4, 16>}, {transform_indices = @transform_8, window_bounds = array<i64: 128, 16>}, {transform_indices = @transform_9, window_bounds = array<i64: 128, 16>}, {transform_indices = @transform_10, window_bounds = array<i64: 128, 1>}]} {
    %c0 = arith.constant 0 : index
    %c0_0 = arith.constant 0 : index
    %0 = vector.load %arg1[%c0, %c0_0] : memref<128x16xf32, #tpu.memory_space<vmem>>, vector<128x16xf32>
    %c0_1 = arith.constant 0 : index
    %c0_2 = arith.constant 0 : index
    %1 = vector.load %arg2[%c0_1, %c0_2] : memref<128x16xf32, #tpu.memory_space<vmem>>, vector<128x16xf32>
    %cst = arith.constant 0.000000e+00 : f32
    %2 = vector.broadcast %cst : f32 to vector<128x1xf32>
    %c0_3 = arith.constant 0 : index
    %c0_4 = arith.constant 0 : index
    %c0_5 = arith.constant 0 : index
    %3 = vector.load %arg3[%c0_3, %c0_4, %c0_5] : memref<4x16x32xf32, #tpu.memory_space<vmem>>, vector<1x16x32xf32>
    %4 = vector.shape_cast %3 : vector<1x16x32xf32> to vector<16x32xf32>
    %cst_6 = arith.constant dense<0.000000e+00> : vector<128x32xf32>
    %5 = tpu.matmul %0, %4, %cst_6 {dimension_numbers = #tpu.dot_dimension_numbers<[1], [0], [0], [1], [0, 0, 1, 1], [], []>} : vector<128x16xf32>, vector<16x32xf32>, vector<128x32xf32> -> vector<128x32xf32>
    %c0_7 = arith.constant 0 : index
    %c0_8 = arith.constant 0 : index
    %6 = vector.load %arg4[%c0_7, %c0_8] : memref<4x32xf32, #tpu.memory_space<vmem>>, vector<1x32xf32>
    %7 = vector.broadcast %6 : vector<1x32xf32> to vector<128x32xf32>
    %8 = arith.addf %5, %7 : vector<128x32xf32>
    %cst_9 = arith.constant 0.000000e+00 : f32
    %9 = vector.broadcast %cst_9 : f32 to vector<128x32xf32>
    %10 = arith.maximumf %8, %9 : vector<128x32xf32>
    %c0_10 = arith.constant 0 : index
    %c0_11 = arith.constant 0 : index
    %c0_12 = arith.constant 0 : index
    %11 = vector.load %arg5[%c0_10, %c0_11, %c0_12] : memref<4x32x16xf32, #tpu.memory_space<vmem>>, vector<1x32x16xf32>
    %12 = vector.shape_cast %11 : vector<1x32x16xf32> to vector<32x16xf32>
    %cst_13 = arith.constant dense<0.000000e+00> : vector<128x16xf32>
    %13 = tpu.matmul %10, %12, %cst_13 {dimension_numbers = #tpu.dot_dimension_numbers<[1], [0], [0], [1], [0, 0, 1, 1], [], []>} : vector<128x32xf32>, vector<32x16xf32>, vector<128x16xf32> -> vector<128x16xf32>
    %c0_14 = arith.constant 0 : index
    %c0_15 = arith.constant 0 : index
    %14 = vector.load %arg6[%c0_14, %c0_15] : memref<4x16xf32, #tpu.memory_space<vmem>>, vector<1x16xf32>
    %15 = vector.broadcast %14 : vector<1x16xf32> to vector<128x16xf32>
    %16 = arith.addf %13, %15 : vector<128x16xf32>
    %c0_16 = arith.constant 0 : index
    %c0_17 = arith.constant 0 : index
    %c0_18 = arith.constant 0 : index
    %17 = vector.load %arg7[%c0_16, %c0_17, %c0_18] : memref<4x32x16xf32, #tpu.memory_space<vmem>>, vector<1x32x16xf32>
    %18 = vector.shape_cast %17 : vector<1x32x16xf32> to vector<32x16xf32>
    %cst_19 = arith.constant dense<0.000000e+00> : vector<128x16xf32>
    %19 = tpu.matmul %10, %18, %cst_19 {dimension_numbers = #tpu.dot_dimension_numbers<[1], [0], [0], [1], [0, 0, 1, 1], [], []>} : vector<128x32xf32>, vector<32x16xf32>, vector<128x16xf32> -> vector<128x16xf32>
    %c0_20 = arith.constant 0 : index
    %c0_21 = arith.constant 0 : index
    %20 = vector.load %arg8[%c0_20, %c0_21] : memref<4x16xf32, #tpu.memory_space<vmem>>, vector<1x16xf32>
    %21 = vector.broadcast %20 : vector<1x16xf32> to vector<128x16xf32>
    %22 = arith.addf %19, %21 : vector<128x16xf32>
    %23 = math.tanh %16 : vector<128x16xf32>
    %24 = math.exp %23 : vector<128x16xf32>
    %25 = arith.mulf %1, %24 : vector<128x16xf32>
    %26 = arith.addf %25, %22 : vector<128x16xf32>
    %cst_22 = arith.constant dense<0.000000e+00> : vector<128xf32>
    %27 = vector.multi_reduction <add>, %23, %cst_22 [1] : vector<128x16xf32> to vector<128xf32>
    %28 = vector.shape_cast %27 : vector<128xf32> to vector<128x1xf32>
    %29 = arith.addf %2, %28 : vector<128x1xf32>
    %c1 = arith.constant 1 : index
    %c0_23 = arith.constant 0 : index
    %c0_24 = arith.constant 0 : index
    %30 = vector.load %arg3[%c1, %c0_23, %c0_24] : memref<4x16x32xf32, #tpu.memory_space<vmem>>, vector<1x16x32xf32>
    %31 = vector.shape_cast %30 : vector<1x16x32xf32> to vector<16x32xf32>
    %cst_25 = arith.constant dense<0.000000e+00> : vector<128x32xf32>
    %32 = tpu.matmul %26, %31, %cst_25 {dimension_numbers = #tpu.dot_dimension_numbers<[1], [0], [0], [1], [0, 0, 1, 1], [], []>} : vector<128x16xf32>, vector<16x32xf32>, vector<128x32xf32> -> vector<128x32xf32>
    %c1_26 = arith.constant 1 : index
    %c0_27 = arith.constant 0 : index
    %33 = vector.load %arg4[%c1_26, %c0_27] : memref<4x32xf32, #tpu.memory_space<vmem>>, vector<1x32xf32>
    %34 = vector.broadcast %33 : vector<1x32xf32> to vector<128x32xf32>
    %35 = arith.addf %32, %34 : vector<128x32xf32>
    %cst_28 = arith.constant 0.000000e+00 : f32
    %36 = vector.broadcast %cst_28 : f32 to vector<128x32xf32>
    %37 = arith.maximumf %35, %36 : vector<128x32xf32>
    %c1_29 = arith.constant 1 : index
    %c0_30 = arith.constant 0 : index
    %c0_31 = arith.constant 0 : index
    %38 = vector.load %arg5[%c1_29, %c0_30, %c0_31] : memref<4x32x16xf32, #tpu.memory_space<vmem>>, vector<1x32x16xf32>
    %39 = vector.shape_cast %38 : vector<1x32x16xf32> to vector<32x16xf32>
    %cst_32 = arith.constant dense<0.000000e+00> : vector<128x16xf32>
    %40 = tpu.matmul %37, %39, %cst_32 {dimension_numbers = #tpu.dot_dimension_numbers<[1], [0], [0], [1], [0, 0, 1, 1], [], []>} : vector<128x32xf32>, vector<32x16xf32>, vector<128x16xf32> -> vector<128x16xf32>
    %c1_33 = arith.constant 1 : index
    %c0_34 = arith.constant 0 : index
    %41 = vector.load %arg6[%c1_33, %c0_34] : memref<4x16xf32, #tpu.memory_space<vmem>>, vector<1x16xf32>
    %42 = vector.broadcast %41 : vector<1x16xf32> to vector<128x16xf32>
    %43 = arith.addf %40, %42 : vector<128x16xf32>
    %c1_35 = arith.constant 1 : index
    %c0_36 = arith.constant 0 : index
    %c0_37 = arith.constant 0 : index
    %44 = vector.load %arg7[%c1_35, %c0_36, %c0_37] : memref<4x32x16xf32, #tpu.memory_space<vmem>>, vector<1x32x16xf32>
    %45 = vector.shape_cast %44 : vector<1x32x16xf32> to vector<32x16xf32>
    %cst_38 = arith.constant dense<0.000000e+00> : vector<128x16xf32>
    %46 = tpu.matmul %37, %45, %cst_38 {dimension_numbers = #tpu.dot_dimension_numbers<[1], [0], [0], [1], [0, 0, 1, 1], [], []>} : vector<128x32xf32>, vector<32x16xf32>, vector<128x16xf32> -> vector<128x16xf32>
    %c1_39 = arith.constant 1 : index
    %c0_40 = arith.constant 0 : index
    %47 = vector.load %arg8[%c1_39, %c0_40] : memref<4x16xf32, #tpu.memory_space<vmem>>, vector<1x16xf32>
    %48 = vector.broadcast %47 : vector<1x16xf32> to vector<128x16xf32>
    %49 = arith.addf %46, %48 : vector<128x16xf32>
    %50 = math.tanh %43 : vector<128x16xf32>
    %51 = math.exp %50 : vector<128x16xf32>
    %52 = arith.mulf %0, %51 : vector<128x16xf32>
    %53 = arith.addf %52, %49 : vector<128x16xf32>
    %cst_41 = arith.constant dense<0.000000e+00> : vector<128xf32>
    %54 = vector.multi_reduction <add>, %50, %cst_41 [1] : vector<128x16xf32> to vector<128xf32>
    %55 = vector.shape_cast %54 : vector<128xf32> to vector<128x1xf32>
    %56 = arith.addf %29, %55 : vector<128x1xf32>
    %c2 = arith.constant 2 : index
    %c0_42 = arith.constant 0 : index
    %c0_43 = arith.constant 0 : index
    %57 = vector.load %arg3[%c2, %c0_42, %c0_43] : memref<4x16x32xf32, #tpu.memory_space<vmem>>, vector<1x16x32xf32>
    %58 = vector.shape_cast %57 : vector<1x16x32xf32> to vector<16x32xf32>
    %cst_44 = arith.constant dense<0.000000e+00> : vector<128x32xf32>
    %59 = tpu.matmul %53, %58, %cst_44 {dimension_numbers = #tpu.dot_dimension_numbers<[1], [0], [0], [1], [0, 0, 1, 1], [], []>} : vector<128x16xf32>, vector<16x32xf32>, vector<128x32xf32> -> vector<128x32xf32>
    %c2_45 = arith.constant 2 : index
    %c0_46 = arith.constant 0 : index
    %60 = vector.load %arg4[%c2_45, %c0_46] : memref<4x32xf32, #tpu.memory_space<vmem>>, vector<1x32xf32>
    %61 = vector.broadcast %60 : vector<1x32xf32> to vector<128x32xf32>
    %62 = arith.addf %59, %61 : vector<128x32xf32>
    %cst_47 = arith.constant 0.000000e+00 : f32
    %63 = vector.broadcast %cst_47 : f32 to vector<128x32xf32>
    %64 = arith.maximumf %62, %63 : vector<128x32xf32>
    %c2_48 = arith.constant 2 : index
    %c0_49 = arith.constant 0 : index
    %c0_50 = arith.constant 0 : index
    %65 = vector.load %arg5[%c2_48, %c0_49, %c0_50] : memref<4x32x16xf32, #tpu.memory_space<vmem>>, vector<1x32x16xf32>
    %66 = vector.shape_cast %65 : vector<1x32x16xf32> to vector<32x16xf32>
    %cst_51 = arith.constant dense<0.000000e+00> : vector<128x16xf32>
    %67 = tpu.matmul %64, %66, %cst_51 {dimension_numbers = #tpu.dot_dimension_numbers<[1], [0], [0], [1], [0, 0, 1, 1], [], []>} : vector<128x32xf32>, vector<32x16xf32>, vector<128x16xf32> -> vector<128x16xf32>
    %c2_52 = arith.constant 2 : index
    %c0_53 = arith.constant 0 : index
    %68 = vector.load %arg6[%c2_52, %c0_53] : memref<4x16xf32, #tpu.memory_space<vmem>>, vector<1x16xf32>
    %69 = vector.broadcast %68 : vector<1x16xf32> to vector<128x16xf32>
    %70 = arith.addf %67, %69 : vector<128x16xf32>
    %c2_54 = arith.constant 2 : index
    %c0_55 = arith.constant 0 : index
    %c0_56 = arith.constant 0 : index
    %71 = vector.load %arg7[%c2_54, %c0_55, %c0_56] : memref<4x32x16xf32, #tpu.memory_space<vmem>>, vector<1x32x16xf32>
    %72 = vector.shape_cast %71 : vector<1x32x16xf32> to vector<32x16xf32>
    %cst_57 = arith.constant dense<0.000000e+00> : vector<128x16xf32>
    %73 = tpu.matmul %64, %72, %cst_57 {dimension_numbers = #tpu.dot_dimension_numbers<[1], [0], [0], [1], [0, 0, 1, 1], [], []>} : vector<128x32xf32>, vector<32x16xf32>, vector<128x16xf32> -> vector<128x16xf32>
    %c2_58 = arith.constant 2 : index
    %c0_59 = arith.constant 0 : index
    %74 = vector.load %arg8[%c2_58, %c0_59] : memref<4x16xf32, #tpu.memory_space<vmem>>, vector<1x16xf32>
    %75 = vector.broadcast %74 : vector<1x16xf32> to vector<128x16xf32>
    %76 = arith.addf %73, %75 : vector<128x16xf32>
    %77 = math.tanh %70 : vector<128x16xf32>
    %78 = math.exp %77 : vector<128x16xf32>
    %79 = arith.mulf %26, %78 : vector<128x16xf32>
    %80 = arith.addf %79, %76 : vector<128x16xf32>
    %cst_60 = arith.constant dense<0.000000e+00> : vector<128xf32>
    %81 = vector.multi_reduction <add>, %77, %cst_60 [1] : vector<128x16xf32> to vector<128xf32>
    %82 = vector.shape_cast %81 : vector<128xf32> to vector<128x1xf32>
    %83 = arith.addf %56, %82 : vector<128x1xf32>
    %c3 = arith.constant 3 : index
    %c0_61 = arith.constant 0 : index
    %c0_62 = arith.constant 0 : index
    %84 = vector.load %arg3[%c3, %c0_61, %c0_62] : memref<4x16x32xf32, #tpu.memory_space<vmem>>, vector<1x16x32xf32>
    %85 = vector.shape_cast %84 : vector<1x16x32xf32> to vector<16x32xf32>
    %cst_63 = arith.constant dense<0.000000e+00> : vector<128x32xf32>
    %86 = tpu.matmul %80, %85, %cst_63 {dimension_numbers = #tpu.dot_dimension_numbers<[1], [0], [0], [1], [0, 0, 1, 1], [], []>} : vector<128x16xf32>, vector<16x32xf32>, vector<128x32xf32> -> vector<128x32xf32>
    %c3_64 = arith.constant 3 : index
    %c0_65 = arith.constant 0 : index
    %87 = vector.load %arg4[%c3_64, %c0_65] : memref<4x32xf32, #tpu.memory_space<vmem>>, vector<1x32xf32>
    %88 = vector.broadcast %87 : vector<1x32xf32> to vector<128x32xf32>
    %89 = arith.addf %86, %88 : vector<128x32xf32>
    %cst_66 = arith.constant 0.000000e+00 : f32
    %90 = vector.broadcast %cst_66 : f32 to vector<128x32xf32>
    %91 = arith.maximumf %89, %90 : vector<128x32xf32>
    %c3_67 = arith.constant 3 : index
    %c0_68 = arith.constant 0 : index
    %c0_69 = arith.constant 0 : index
    %92 = vector.load %arg5[%c3_67, %c0_68, %c0_69] : memref<4x32x16xf32, #tpu.memory_space<vmem>>, vector<1x32x16xf32>
    %93 = vector.shape_cast %92 : vector<1x32x16xf32> to vector<32x16xf32>
    %cst_70 = arith.constant dense<0.000000e+00> : vector<128x16xf32>
    %94 = tpu.matmul %91, %93, %cst_70 {dimension_numbers = #tpu.dot_dimension_numbers<[1], [0], [0], [1], [0, 0, 1, 1], [], []>} : vector<128x32xf32>, vector<32x16xf32>, vector<128x16xf32> -> vector<128x16xf32>
    %c3_71 = arith.constant 3 : index
    %c0_72 = arith.constant 0 : index
    %95 = vector.load %arg6[%c3_71, %c0_72] : memref<4x16xf32, #tpu.memory_space<vmem>>, vector<1x16xf32>
    %96 = vector.broadcast %95 : vector<1x16xf32> to vector<128x16xf32>
    %97 = arith.addf %94, %96 : vector<128x16xf32>
    %c3_73 = arith.constant 3 : index
    %c0_74 = arith.constant 0 : index
    %c0_75 = arith.constant 0 : index
    %98 = vector.load %arg7[%c3_73, %c0_74, %c0_75] : memref<4x32x16xf32, #tpu.memory_space<vmem>>, vector<1x32x16xf32>
    %99 = vector.shape_cast %98 : vector<1x32x16xf32> to vector<32x16xf32>
    %cst_76 = arith.constant dense<0.000000e+00> : vector<128x16xf32>
    %100 = tpu.matmul %91, %99, %cst_76 {dimension_numbers = #tpu.dot_dimension_numbers<[1], [0], [0], [1], [0, 0, 1, 1], [], []>} : vector<128x32xf32>, vector<32x16xf32>, vector<128x16xf32> -> vector<128x16xf32>
    %c3_77 = arith.constant 3 : index
    %c0_78 = arith.constant 0 : index
    %101 = vector.load %arg8[%c3_77, %c0_78] : memref<4x16xf32, #tpu.memory_space<vmem>>, vector<1x16xf32>
    %102 = vector.broadcast %101 : vector<1x16xf32> to vector<128x16xf32>
    %103 = arith.addf %100, %102 : vector<128x16xf32>
    %104 = math.tanh %97 : vector<128x16xf32>
    %105 = math.exp %104 : vector<128x16xf32>
    %106 = arith.mulf %53, %105 : vector<128x16xf32>
    %107 = arith.addf %106, %103 : vector<128x16xf32>
    %cst_79 = arith.constant dense<0.000000e+00> : vector<128xf32>
    %108 = vector.multi_reduction <add>, %104, %cst_79 [1] : vector<128x16xf32> to vector<128xf32>
    %109 = vector.shape_cast %108 : vector<128xf32> to vector<128x1xf32>
    %110 = arith.addf %83, %109 : vector<128x1xf32>
    %c0_80 = arith.constant 0 : index
    %c0_81 = arith.constant 0 : index
    %111 = vector.load %arg9[%c0_80, %c0_81] : memref<128x16xf32, #tpu.memory_space<vmem>>, vector<128x16xf32>
    tpu.vector_store %arg9[%c0_80, %c0_81], %107 {strides = array<i32>} : memref<128x16xf32, #tpu.memory_space<vmem>>, vector<128x16xf32>,
    %c0_82 = arith.constant 0 : index
    %c0_83 = arith.constant 0 : index
    %112 = vector.load %arg10[%c0_82, %c0_83] : memref<128x16xf32, #tpu.memory_space<vmem>>, vector<128x16xf32>
    tpu.vector_store %arg10[%c0_82, %c0_83], %80 {strides = array<i32>} : memref<128x16xf32, #tpu.memory_space<vmem>>, vector<128x16xf32>,
    %c0_84 = arith.constant 0 : index
    %c0_85 = arith.constant 0 : index
    %113 = vector.load %arg11[%c0_84, %c0_85] : memref<128x1xf32, #tpu.memory_space<vmem>>, vector<128x1xf32>
    tpu.vector_store %arg11[%c0_84, %c0_85], %110 {strides = array<i32>} : memref<128x1xf32, #tpu.memory_space<vmem>>, vector<128x1xf32>,
    return
  }
  func.func @transform_0(%arg0: i32) -> (i32, i32) {
    %c0_i32 = arith.constant 0 : i32
    %c0_i32_0 = arith.constant 0 : i32
    return %arg0, %c0_i32 : i32, i32
  }
  func.func @transform_1(%arg0: i32) -> (i32, i32) {
    %c0_i32 = arith.constant 0 : i32
    %c0_i32_0 = arith.constant 0 : i32
    return %arg0, %c0_i32 : i32, i32
  }
  func.func @transform_2(%arg0: i32) -> (i32, i32, i32) {
    %c0_i32 = arith.constant 0 : i32
    %c0_i32_0 = arith.constant 0 : i32
    %c0_i32_1 = arith.constant 0 : i32
    %c0_i32_2 = arith.constant 0 : i32
    return %c0_i32, %c0_i32_0, %c0_i32_1 : i32, i32, i32
  }
  func.func @transform_3(%arg0: i32) -> (i32, i32) {
    %c0_i32 = arith.constant 0 : i32
    %c0_i32_0 = arith.constant 0 : i32
    %c0_i32_1 = arith.constant 0 : i32
    return %c0_i32, %c0_i32_0 : i32, i32
  }
  func.func @transform_4(%arg0: i32) -> (i32, i32, i32) {
    %c0_i32 = arith.constant 0 : i32
    %c0_i32_0 = arith.constant 0 : i32
    %c0_i32_1 = arith.constant 0 : i32
    %c0_i32_2 = arith.constant 0 : i32
    return %c0_i32, %c0_i32_0, %c0_i32_1 : i32, i32, i32
  }
  func.func @transform_5(%arg0: i32) -> (i32, i32) {
    %c0_i32 = arith.constant 0 : i32
    %c0_i32_0 = arith.constant 0 : i32
    %c0_i32_1 = arith.constant 0 : i32
    return %c0_i32, %c0_i32_0 : i32, i32
  }
  func.func @transform_6(%arg0: i32) -> (i32, i32, i32) {
    %c0_i32 = arith.constant 0 : i32
    %c0_i32_0 = arith.constant 0 : i32
    %c0_i32_1 = arith.constant 0 : i32
    %c0_i32_2 = arith.constant 0 : i32
    return %c0_i32, %c0_i32_0, %c0_i32_1 : i32, i32, i32
  }
  func.func @transform_7(%arg0: i32) -> (i32, i32) {
    %c0_i32 = arith.constant 0 : i32
    %c0_i32_0 = arith.constant 0 : i32
    %c0_i32_1 = arith.constant 0 : i32
    return %c0_i32, %c0_i32_0 : i32, i32
  }
  func.func @transform_8(%arg0: i32) -> (i32, i32) {
    %c0_i32 = arith.constant 0 : i32
    %c0_i32_0 = arith.constant 0 : i32
    return %arg0, %c0_i32 : i32, i32
  }
  func.func @transform_9(%arg0: i32) -> (i32, i32) {
    %c0_i32 = arith.constant 0 : i32
    %c0_i32_0 = arith.constant 0 : i32
    return %arg0, %c0_i32 : i32, i32
  }
  func.func @transform_10(%arg0: i32) -> (i32, i32) {
    %c0_i32 = arith.constant 0 : i32
    %c0_i32_0 = arith.constant 0 : i32
    return %arg0, %c0_i32 : i32, i32
  }
}

</mosaic_0001>

<llo_original>
// kernel: tpu_custom_call.1
$region0: #{tpu_custom_call.1}
  #allocation0 [shape = 'u32[]', space=smem, size = 0x4, offset = 0x4, fixed_abs, tag = 'smem constant byte address 0x4 - core index']
  #allocation1 [shape = 'u32[144,128]{1,0:T(1,128)}', space=vmem, size = 0x12000, scoped, tag = 'internal scratch']
  %s0 = inlined_call_operand.vmem [shape: f32[256,16], index: 0, kind: input, shape index: {}]
  %s1 = inlined_call_operand.vmem [shape: f32[256,16], index: 1, kind: input, shape index: {}]
  %s2 = inlined_call_operand.vmem [shape: f32[4,16,32], index: 2, kind: input, shape index: {}]
  %s3 = inlined_call_operand.vmem [shape: f32[4,32], index: 3, kind: input, shape index: {}]
  %s4 = inlined_call_operand.vmem [shape: f32[4,32,16], index: 4, kind: input, shape index: {}]
  %s5 = inlined_call_operand.vmem [shape: f32[4,16], index: 5, kind: input, shape index: {}]
  %s6 = inlined_call_operand.vmem [shape: f32[4,32,16], index: 6, kind: input, shape index: {}]
  %s7 = inlined_call_operand.vmem [shape: f32[4,16], index: 7, kind: input, shape index: {}]
  %s8 = inlined_call_operand.vmem [shape: f32[256,16], index: 8, kind: output, shape index: {0}]
  %s9 = inlined_call_operand.vmem [shape: f32[256,16], index: 9, kind: output, shape index: {1}]
  %s10 = inlined_call_operand.vmem [shape: f32[256,1], index: 10, kind: output, shape index: {2}]
  %11 = xla_tuple %s8, %s9, %s10
  %s12 = sld [smem:[#allocation0]]
  $region81: #{tpu_custom_call.1} parent=0
    _
  %s14 = ssub.s32 1, %s12
  %s15 = scalar_select 0, %s14, %s12
  loop: start=0, step=1, limit=4
  $region2: #{tpu_custom_call.1} parent=0 // loop_pre_header
    _
  $region3: #{tpu_custom_call.1} parent=0 // loop_header
    %s17 = sphi 0, %s21
    %p18 = scmp.ge.s32.totalorder %s17, 4
    %s27 = sphi 0, %s29
    %s30 = sphi 0, %s27
    %s31 = sphi 0, %s30
    %s47 = sphi 0, %s31
    %s53 = sphi 0, %s55
    %s56 = sphi 0, %s53
    %s57 = sphi 0, %s56
    %s73 = sphi 0, %s57
    %s77 = sphi 0, %s77
    %s79 = sphi 0, %s77
    %s80 = sphi 0, %s79
    %s94 = sphi 0, %s80
    %s98 = sphi 0, %s98
    %s100 = sphi 0, %s98
    %s101 = sphi 0, %s100
    %s115 = sphi 0, %s101
    %s119 = sphi 0, %s119
    %s121 = sphi 0, %s119
    %s122 = sphi 0, %s121
    %s136 = sphi 0, %s122
    %s140 = sphi 0, %s140
    %s142 = sphi 0, %s140
    %s143 = sphi 0, %s142
    %s157 = sphi 0, %s143
    %s161 = sphi 0, %s161
    %s163 = sphi 0, %s161
    %s164 = sphi 0, %s163
    %s178 = sphi 0, %s164
    %s182 = sphi 0, %s182
    %s184 = sphi 0, %s182
    %s185 = sphi 0, %s184
    %s199 = sphi 0, %s185
    %s205 = sphi 0, %s207
    %s208 = sphi 0, %s205
    %s209 = sphi 0, %s208
    %s225 = sphi 0, %s209
    %s231 = sphi 0, %s233
    %s234 = sphi 0, %s231
    %s235 = sphi 0, %s234
    %s251 = sphi 0, %s235
    %s257 = sphi 0, %s259
    %s260 = sphi 0, %s257
    %s261 = sphi 0, %s260
    %s277 = sphi 0, %s261
  $region4: #{tpu_custom_call.1} parent=0 // loop_header_branch
    %20 = sbr.rel (%p18) target = $region8
  $region5: #{tpu_custom_call.1} parent=0 // loop_body
    %s22 = ssub.s32 %s17, 1
    %s23 = ssub.s32 %s17, 2
    %s24 = sadd.s32 %s17, 1
    %s25 = ssub.s32 %s17, %s24
    %p26 = scmp.eq.s32.totalorder %s25, 0
    %s28 = sadd.s32 %s27, 1
    %s29 = scalar_select %p26, %s27, %s28
    %p32 = pneg %p26
    %p33 = scmp.eq.s32.totalorder %s17, 1
    %p34 = por %p32, %p33
    %p35 = scmp.ne.s32.totalorder %s27, %s30
    %p36 = scmp.eq.s32.totalorder %s17, 0
    %p37 = por %p35, %p36
    %p38 = scmp.ne.s32.totalorder %s27, %s30
    %p39 = scmp.eq.s32.totalorder %s22, 1
    %p40 = por %p38, %p39
    %p41 = scmp.ne.s32.totalorder %s30, %s31
    %p42 = scmp.eq.s32.totalorder %s22, 0
    %p43 = por %p41, %p42
    %p44 = scmp.ne.s32.totalorder %s30, %s31
    %p45 = scmp.eq.s32.totalorder %s23, 1
    %p46 = por %p44, %p45
    %p48 = scmp.ne.s32.totalorder %s31, %s47
    %p49 = scmp.eq.s32.totalorder %s23, 0
    %p50 = por %p48, %p49
    %s51 = ssub.s32 %s17, %s24
    %p52 = scmp.eq.s32.totalorder %s51, 0
    %s54 = sadd.s32 %s53, 1
    %s55 = scalar_select %p52, %s53, %s54
    %p58 = pneg %p52
    %p59 = scmp.eq.s32.totalorder %s17, 1
    %p60 = por %p58, %p59
    %p61 = scmp.ne.s32.totalorder %s53, %s56
    %p62 = scmp.eq.s32.totalorder %s17, 0
    %p63 = por %p61, %p62
    %p64 = scmp.ne.s32.totalorder %s53, %s56
    %p65 = scmp.eq.s32.totalorder %s22, 1
    %p66 = por %p64, %p65
    %p67 = scmp.ne.s32.totalorder %s56, %s57
    %p68 = scmp.eq.s32.totalorder %s22, 0
    %p69 = por %p67, %p68
    %p70 = scmp.ne.s32.totalorder %s56, %s57
    %p71 = scmp.eq.s32.totalorder %s23, 1
    %p72 = por %p70, %p71
    %p74 = scmp.ne.s32.totalorder %s57, %s73
    %p75 = scmp.eq.s32.totalorder %s23, 0
    %p76 = por %p74, %p75
    %s78 = sadd.s32 %s77, 1
    %p81 = scmp.eq.s32.totalorder %s17, 1
    %p82 = scmp.ne.s32.totalorder %s77, %s79
    %p83 = scmp.eq.s32.totalorder %s17, 0
    %p84 = por %p82, %p83
    %p85 = scmp.ne.s32.totalorder %s77, %s79
    %p86 = scmp.eq.s32.totalorder %s22, 1
    %p87 = por %p85, %p86
    %p88 = scmp.ne.s32.totalorder %s79, %s80
    %p89 = scmp.eq.s32.totalorder %s22, 0
    %p90 = por %p88, %p89
    %p91 = scmp.ne.s32.totalorder %s79, %s80
    %p92 = scmp.eq.s32.totalorder %s23, 1
    %p93 = por %p91, %p92
    %p95 = scmp.ne.s32.totalorder %s80, %s94
    %p96 = scmp.eq.s32.totalorder %s23, 0
    %p97 = por %p95, %p96
    %s99 = sadd.s32 %s98, 1
    %p102 = scmp.eq.s32.totalorder %s17, 1
    %p103 = scmp.ne.s32.totalorder %s98, %s100
    %p104 = scmp.eq.s32.totalorder %s17, 0
    %p105 = por %p103, %p104
    %p106 = scmp.ne.s32.totalorder %s98, %s100
    %p107 = scmp.eq.s32.totalorder %s22, 1
    %p108 = por %p106, %p107
    %p109 = scmp.ne.s32.totalorder %s100, %s101
    %p110 = scmp.eq.s32.totalorder %s22, 0
    %p111 = por %p109, %p110
    %p112 = scmp.ne.s32.totalorder %s100, %s101
    %p113 = scmp.eq.s32.totalorder %s23, 1
    %p114 = por %p112, %p113
    %p116 = scmp.ne.s32.totalorder %s101, %s115
    %p117 = scmp.eq.s32.totalorder %s23, 0
    %p118 = por %p116, %p117
    %s120 = sadd.s32 %s119, 1
    %p123 = scmp.eq.s32.totalorder %s17, 1
    %p124 = scmp.ne.s32.totalorder %s119, %s121
    %p125 = scmp.eq.s32.totalorder %s17, 0
    %p126 = por %p124, %p125
    %p127 = scmp.ne.s32.totalorder %s119, %s121
    %p128 = scmp.eq.s32.totalorder %s22, 1
    %p129 = por %p127, %p128
    %p130 = scmp.ne.s32.totalorder %s121, %s122
    %p131 = scmp.eq.s32.totalorder %s22, 0
    %p132 = por %p130, %p131
    %p133 = scmp.ne.s32.totalorder %s121, %s122
    %p134 = scmp.eq.s32.totalorder %s23, 1
    %p135 = por %p133, %p134
    %p137 = scmp.ne.s32.totalorder %s122, %s136
    %p138 = scmp.eq.s32.totalorder %s23, 0
    %p139 = por %p137, %p138
    %s141 = sadd.s32 %s140, 1
    %p144 = scmp.eq.s32.totalorder %s17, 1
    %p145 = scmp.ne.s32.totalorder %s140, %s142
    %p146 = scmp.eq.s32.totalorder %s17, 0
    %p147 = por %p145, %p146
    %p148 = scmp.ne.s32.totalorder %s140, %s142
    %p149 = scmp.eq.s32.totalorder %s22, 1
    %p150 = por %p148, %p149
    %p151 = scmp.ne.s32.totalorder %s142, %s143
    %p152 = scmp.eq.s32.totalorder %s22, 0
    %p153 = por %p151, %p152
    %p154 = scmp.ne.s32.totalorder %s142, %s143
    %p155 = scmp.eq.s32.totalorder %s23, 1
    %p156 = por %p154, %p155
    %p158 = scmp.ne.s32.totalorder %s143, %s157
    %p159 = scmp.eq.s32.totalorder %s23, 0
    %p160 = por %p158, %p159
    %s162 = sadd.s32 %s161, 1
    %p165 = scmp.eq.s32.totalorder %s17, 1
    %p166 = scmp.ne.s32.totalorder %s161, %s163
    %p167 = scmp.eq.s32.totalorder %s17, 0
    %p168 = por %p166, %p167
    %p169 = scmp.ne.s32.totalorder %s161, %s163
    %p170 = scmp.eq.s32.totalorder %s22, 1
    %p171 = por %p169, %p170
    %p172 = scmp.ne.s32.totalorder %s163, %s164
    %p173 = scmp.eq.s32.totalorder %s22, 0
    %p174 = por %p172, %p173
    %p175 = scmp.ne.s32.totalorder %s163, %s164
    %p176 = scmp.eq.s32.totalorder %s23, 1
    %p177 = por %p175, %p176
    %p179 = scmp.ne.s32.totalorder %s164, %s178
    %p180 = scmp.eq.s32.totalorder %s23, 0
    %p181 = por %p179, %p180
    %s183 = sadd.s32 %s182, 1
    %p186 = scmp.eq.s32.totalorder %s17, 1
    %p187 = scmp.ne.s32.totalorder %s182, %s184
    %p188 = scmp.eq.s32.totalorder %s17, 0
    %p189 = por %p187, %p188
    %p190 = scmp.ne.s32.totalorder %s182, %s184
    %p191 = scmp.eq.s32.totalorder %s22, 1
    %p192 = por %p190, %p191
    %p193 = scmp.ne.s32.totalorder %s184, %s185
    %p194 = scmp.eq.s32.totalorder %s22, 0
    %p195 = por %p193, %p194
    %p196 = scmp.ne.s32.totalorder %s184, %s185
    %p197 = scmp.eq.s32.totalorder %s23, 1
    %p198 = por %p196, %p197
    %p200 = scmp.ne.s32.totalorder %s185, %s199
    %p201 = scmp.eq.s32.totalorder %s23, 0
    %p202 = por %p200, %p201
    %s203 = ssub.s32 %s17, %s24
    %p204 = scmp.eq.s32.totalorder %s203, 0
    %s206 = sadd.s32 %s205, 1
    %s207 = scalar_select %p204, %s205, %s206
    %p210 = pneg %p204
    %p211 = scmp.eq.s32.totalorder %s17, 1
    %p212 = por %p210, %p211
    %p213 = scmp.ne.s32.totalorder %s205, %s208
    %p214 = scmp.eq.s32.totalorder %s17, 0
    %p215 = por %p213, %p214
    %p216 = scmp.ne.s32.totalorder %s205, %s208
    %p217 = scmp.eq.s32.totalorder %s22, 1
    %p218 = por %p216, %p217
    %p219 = scmp.ne.s32.totalorder %s208, %s209
    %p220 = scmp.eq.s32.totalorder %s22, 0
    %p221 = por %p219, %p220
    %p222 = scmp.ne.s32.totalorder %s208, %s209
    %p223 = scmp.eq.s32.totalorder %s23, 1
    %p224 = por %p222, %p223
    %p226 = scmp.ne.s32.totalorder %s209, %s225
    %p227 = scmp.eq.s32.totalorder %s23, 0
    %p228 = por %p226, %p227
    %s229 = ssub.s32 %s17, %s24
    %p230 = scmp.eq.s32.totalorder %s229, 0
    %s232 = sadd.s32 %s231, 1
    %s233 = scalar_select %p230, %s231, %s232
    %p236 = pneg %p230
    %p237 = scmp.eq.s32.totalorder %s17, 1
    %p238 = por %p236, %p237
    %p239 = scmp.ne.s32.totalorder %s231, %s234
    %p240 = scmp.eq.s32.totalorder %s17, 0
    %p241 = por %p239, %p240
    %p242 = scmp.ne.s32.totalorder %s231, %s234
    %p243 = scmp.eq.s32.totalorder %s22, 1
    %p244 = por %p242, %p243
    %p245 = scmp.ne.s32.totalorder %s234, %s235
    %p246 = scmp.eq.s32.totalorder %s22, 0
    %p247 = por %p245, %p246
    %p248 = scmp.ne.s32.totalorder %s234, %s235
    %p249 = scmp.eq.s32.totalorder %s23, 1
    %p250 = por %p248, %p249
    %p252 = scmp.ne.s32.totalorder %s235, %s251
    %p253 = scmp.eq.s32.totalorder %s23, 0
    %p254 = por %p252, %p253
    %s255 = ssub.s32 %s17, %s24
    %p256 = scmp.eq.s32.totalorder %s255, 0
    %s258 = sadd.s32 %s257, 1
    %s259 = scalar_select %p256, %s257, %s258
    %p262 = pneg %p256
    %p263 = scmp.eq.s32.totalorder %s17, 1
    %p264 = por %p262, %p263
    %p265 = scmp.ne.s32.totalorder %s257, %s260
    %p266 = scmp.eq.s32.totalorder %s17, 0
    %p267 = por %p265, %p266
    %p268 = scmp.ne.s32.totalorder %s257, %s260
    %p269 = scmp.eq.s32.totalorder %s22, 1
    %p270 = por %p268, %p269
    %p271 = scmp.ne.s32.totalorder %s260, %s261
    %p272 = scmp.eq.s32.totalorder %s22, 0
    %p273 = por %p271, %p272
    %p274 = scmp.ne.s32.totalorder %s260, %s261
    %p275 = scmp.eq.s32.totalorder %s23, 1
    %p276 = por %p274, %p275
    %p278 = scmp.ne.s32.totalorder %s261, %s277
    %p279 = scmp.eq.s32.totalorder %s23, 0
    %p280 = por %p278, %p279
    %p281 = scmp.le.s32.totalorder 1, %s17
    %p282 = scmp.lt.s32.totalorder %s17, 3
    %p283 = pnand %p281, %p282
    %p284 = pneg %p283
    // Predicated region
    $region9: #{tpu_custom_call.1} parent=5 // pred_check
      _
    $region10: #{tpu_custom_call.1} parent=5 // pred_check_branch
      %286 = sbr.rel (%p283) target = $region12
    $region11: #{tpu_custom_call.1} parent=5 // pred_region
      %s287 = ssub.s32 %s17, 1
      // Predicated region
      $region13: #{tpu_custom_call.1} parent=11 // pred_check
        %p288 = pneg %p90
      $region14: #{tpu_custom_call.1} parent=11 // pred_check_branch
        %290 = sbr.rel (%p288) target = $region16
      $region15: #{tpu_custom_call.1} parent=11 // pred_region
        _
      $region16: #{tpu_custom_call.1} parent=11 // pred_fallthru
        _
      // Predicated region
      $region17: #{tpu_custom_call.1} parent=11 // pred_check
        %p291 = pneg %p111
      $region18: #{tpu_custom_call.1} parent=11 // pred_check_branch
        %293 = sbr.rel (%p291) target = $region20
      $region19: #{tpu_custom_call.1} parent=11 // pred_region
        _
      $region20: #{tpu_custom_call.1} parent=11 // pred_fallthru
        _
      // Predicated region
      $region21: #{tpu_custom_call.1} parent=11 // pred_check
        %p294 = pneg %p132
      $region22: #{tpu_custom_call.1} parent=11 // pred_check_branch
        %296 = sbr.rel (%p294) target = $region24
      $region23: #{tpu_custom_call.1} parent=11 // pred_region
        _
      $region24: #{tpu_custom_call.1} parent=11 // pred_fallthru
        _
      // Predicated region
      $region25: #{tpu_custom_call.1} parent=11 // pred_check
        %p297 = pneg %p153
      $region26: #{tpu_custom_call.1} parent=11 // pred_check_branch
        %299 = sbr.rel (%p297) target = $region28
      $region27: #{tpu_custom_call.1} parent=11 // pred_region
        _
      $region28: #{tpu_custom_call.1} parent=11 // pred_fallthru
        _
      // Predicated region
      $region29: #{tpu_custom_call.1} parent=11 // pred_check
        %p300 = pneg %p174
      $region30: #{tpu_custom_call.1} parent=11 // pred_check_branch
        %302 = sbr.rel (%p300) target = $region32
      $region31: #{tpu_custom_call.1} parent=11 // pred_region
        _
      $region32: #{tpu_custom_call.1} parent=11 // pred_fallthru
        _
      // Predicated region
      $region33: #{tpu_custom_call.1} parent=11 // pred_check
        %p303 = pneg %p195
      $region34: #{tpu_custom_call.1} parent=11 // pred_check_branch
        %305 = sbr.rel (%p303) target = $region36
      $region35: #{tpu_custom_call.1} parent=11 // pred_region
        _
      $region36: #{tpu_custom_call.1} parent=11 // pred_fallthru
        _
    $region12: #{tpu_custom_call.1} parent=5 // pred_fallthru
      _
    %p306 = scmp.lt.s32.totalorder %s17, 2
    // Predicated region
    $region37: #{tpu_custom_call.1} parent=5 // pred_check
      %p307 = pneg %p306
    $region38: #{tpu_custom_call.1} parent=5 // pred_check_branch
      %309 = sbr.rel (%p307) target = $region40
    $region39: #{tpu_custom_call.1} parent=5 // pred_region
      // Predicated region
      $region41: #{tpu_custom_call.1} parent=39 // pred_check
        %p310 = pneg %p37
      $region42: #{tpu_custom_call.1} parent=39 // pred_check_branch
        %312 = sbr.rel (%p310) target = $region44
      $region43: #{tpu_custom_call.1} parent=39 // pred_region
        %s313 = smul.u32 16, %s17
        %p314 = scmp.lt.s32.totalorder %s313, 31
        %s315 = scalar_select %p314, %s313, 31
        %s316 = smul.addr %s315, 8
        %s317 = scalar_lea.vmem %s0, %s316
        %s318 = smul.u32 16, %s17
      $region44: #{tpu_custom_call.1} parent=39 // pred_fallthru
        _
      // Predicated region
      $region45: #{tpu_custom_call.1} parent=39 // pred_check
        %p319 = pneg %p63
      $region46: #{tpu_custom_call.1} parent=39 // pred_check_branch
        %321 = sbr.rel (%p319) target = $region48
      $region47: #{tpu_custom_call.1} parent=39 // pred_region
        %s322 = smul.u32 16, %s17
        %p323 = scmp.lt.s32.totalorder %s322, 31
        %s324 = scalar_select %p323, %s322, 31
        %s325 = smul.addr %s324, 8
        %s326 = scalar_lea.vmem %s1, %s325
        %s327 = smul.u32 16, %s17
      $region48: #{tpu_custom_call.1} parent=39 // pred_fallthru
        _
    $region40: #{tpu_custom_call.1} parent=5 // pred_fallthru
      _
    %p328 = scmp.le.s32.totalorder 1, %s17
    %p329 = scmp.lt.s32.totalorder %s17, 3
    %p330 = pnand %p328, %p329
    %p331 = pneg %p330
    // Predicated region
    $region49: #{tpu_custom_call.1} parent=5 // pred_check
      _
    $region50: #{tpu_custom_call.1} parent=5 // pred_check_branch
      %333 = sbr.rel (%p330) target = $region52
    $region51: #{tpu_custom_call.1} parent=5 // pred_region
      %s334 = ssub.s32 %s17, 1
      %s335 = smul.u32 16, %s22
      %p336 = scmp.lt.s32.totalorder %s335, 31
      %s337 = scalar_select %p336, %s335, 31
      %s338 = smul.addr %s337, 8
      %s339 = scalar_lea.vmem %s0, %s338
      %p340 = pneg %p43
      %p341 = pneg %p40
      %s342 = smul.u32 16, %s22
      %p343 = scmp.lt.s32.totalorder %s342, 31
      %s344 = scalar_select %p343, %s342, 31
      %s345 = smul.addr %s344, 8
      %s346 = scalar_lea.vmem %s1, %s345
      %p347 = pneg %p69
      %p348 = pneg %p66
      %p349 = pneg %p90
      %p350 = pneg %p87
      %p351 = pneg %p111
      %p352 = pneg %p108
      %p353 = pneg %p132
      %p354 = pneg %p129
      %p355 = pneg %p153
      %p356 = pneg %p150
      %p357 = pneg %p174
      %p358 = pneg %p171
      %p359 = pneg %p195
      %p360 = pneg %p192
      %p361 = pneg %p221
      %p362 = pneg %p218
      %s363 = smul.u32 16, %s22
      %p364 = scmp.lt.s32.totalorder %s363, 31
      %s365 = scalar_select %p364, %s363, 31
      %s366 = smul.addr %s365, 8
      %s367 = scalar_lea.vmem %s8, %s366
      %p368 = pneg %p247
      %p369 = pneg %p244
      %s370 = smul.u32 16, %s22
      %p371 = scmp.lt.s32.totalorder %s370, 31
      %s372 = scalar_select %p371, %s370, 31
      %s373 = smul.addr %s372, 8
      %s374 = scalar_lea.vmem %s9, %s373
      %p375 = pneg %p273
      %p376 = pneg %p270
      %s377 = smul.u32 16, %s22
      %p378 = scmp.lt.s32.totalorder %s377, 31
      %s379 = scalar_select %p378, %s377, 31
      %s380 = smul.addr %s379, 8
      %s381 = scalar_lea.vmem %s10, %s380
      %s382 = smul.u32 16, %s22
      %p383 = scmp.lt.s32.totalorder %s382, 31
      %s384 = scalar_select %p383, %s382, 31
      %s385 = smul.addr %s384, 8
      %s386 = scalar_lea.vmem %s0, %s385
      %s387 = smul.u32 16, %s22
      %s388 = smul.u32 16, %s22
      %p389 = scmp.lt.s32.totalorder %s388, 31
      %s390 = scalar_select %p389, %s388, 31
      %s391 = smul.addr %s390, 8
      %s392 = scalar_lea.vmem %s1, %s391
      %s393 = smul.u32 16, %s22
      %s394 = smul.u32 16, %s22
      %p395 = scmp.lt.s32.totalorder %s394, 31
      %s396 = scalar_select %p395, %s394, 31
      %s397 = smul.addr %s396, 8
      %s398 = scalar_lea.vmem %s8, %s397
      %s399 = smul.u32 16, %s22
      %s400 = smul.u32 16, %s22
      %p401 = scmp.lt.s32.totalorder %s400, 31
      %s402 = scalar_select %p401, %s400, 31
      %s403 = smul.addr %s402, 8
      %s404 = scalar_lea.vmem %s9, %s403
      %s405 = smul.u32 16, %s22
      %s406 = smul.u32 16, %s22
      %p407 = scmp.lt.s32.totalorder %s406, 31
      %s408 = scalar_select %p407, %s406, 31
      %s409 = smul.addr %s408, 8
      %s410 = scalar_lea.vmem %s10, %s409
      %s411 = smul.u32 16, %s22
      %v412 = vld [vmem:[%s386] sm:$0xff]
      %v413 = vld [vmem:[%s386 + $0x8] sm:$0xff]
      %v414 = vld [vmem:[%s386 + $0x10] sm:$0xff]
      %v415 = vld [vmem:[%s386 + $0x18] sm:$0xff]
      %v416 = vld [vmem:[%s386 + $0x20] sm:$0xff]
      %v417 = vld [vmem:[%s386 + $0x28] sm:$0xff]
      %v418 = vld [vmem:[%s386 + $0x30] sm:$0xff]
      %v419 = vld [vmem:[%s386 + $0x38] sm:$0xff]
      %v420 = vld [vmem:[%s386 + $0x40] sm:$0xff]
      %v421 = vld [vmem:[%s386 + $0x48] sm:$0xff]
      %v422 = vld [vmem:[%s386 + $0x50] sm:$0xff]
      %v423 = vld [vmem:[%s386 + $0x58] sm:$0xff]
      %v424 = vld [vmem:[%s386 + $0x60] sm:$0xff]
      %v425 = vld [vmem:[%s386 + $0x68] sm:$0xff]
      %v426 = vld [vmem:[%s386 + $0x70] sm:$0xff]
      %v427 = vld [vmem:[%s386 + $0x78] sm:$0xff]
      %v428 = vld [vmem:[%s392] sm:$0xff]
      %v429 = vld [vmem:[%s392 + $0x8] sm:$0xff]
      %v430 = vld [vmem:[%s392 + $0x10] sm:$0xff]
      %v431 = vld [vmem:[%s392 + $0x18] sm:$0xff]
      %v432 = vld [vmem:[%s392 + $0x20] sm:$0xff]
      %v433 = vld [vmem:[%s392 + $0x28] sm:$0xff]
      %v434 = vld [vmem:[%s392 + $0x30] sm:$0xff]
      %v435 = vld [vmem:[%s392 + $0x38] sm:$0xff]
      %v436 = vld [vmem:[%s392 + $0x40] sm:$0xff]
      %v437 = vld [vmem:[%s392 + $0x48] sm:$0xff]
      %v438 = vld [vmem:[%s392 + $0x50] sm:$0xff]
      %v439 = vld [vmem:[%s392 + $0x58] sm:$0xff]
      %v440 = vld [vmem:[%s392 + $0x60] sm:$0xff]
      %v441 = vld [vmem:[%s392 + $0x68] sm:$0xff]
      %v442 = vld [vmem:[%s392 + $0x70] sm:$0xff]
      %v443 = vld [vmem:[%s392 + $0x78] sm:$0xff]
      %v444 = vld [vmem:[%s2] sm:$0xff]
      %v445 = vld [vmem:[%s2 + $0x8] sm:$0xff]
      %v446 = vld [vmem:[%s3] sm:$0x1]
      %v447 = vlaneseq
      %v448 = vshrl.u32 %v447, 7
      %v449 = vsub.s32 0, %v448
      %v450 = vrot.slane %v446, %v449
      %vm451 = vcmask 130048
      %v453 = vsel %vm451, %v412, 0
      %v456 = vsel %vm451, %v413, 0
      %v459 = vsel %vm451, %v414, 0
      %v462 = vsel %vm451, %v415, 0
      %v465 = vsel %vm451, %v416, 0
      %v468 = vsel %vm451, %v417, 0
      %v471 = vsel %vm451, %v418, 0
      %v474 = vsel %vm451, %v419, 0
      %v477 = vsel %vm451, %v420, 0
      %v480 = vsel %vm451, %v421, 0
      %v483 = vsel %vm451, %v422, 0
      %v486 = vsel %vm451, %v423, 0
      %v489 = vsel %vm451, %v424, 0
      %v492 = vsel %vm451, %v425, 0
      %v495 = vsel %vm451, %v426, 0
      %v498 = vsel %vm451, %v427, 0
      %500 = vmatprep.subr.mxu0 0.0
      %501 = vmatpush1.msra.mxu0 %v444
      %502 = vmatprep.subr.mxu0 0.0
      %503 = vmatpush1.msra.mxu0 %v445
      %504 = vmatprep.subr.mxu0 0.0
      %505 = vmatpush1.msra.mxu0 0.0
      %506 = vmatprep.subr.mxu0 0.0
      %507 = vmatpush1.msra.mxu0 0.0
      %508 = vmatprep.subr.mxu0 0.0
      %509 = vmatpush1.msra.mxu0 0.0
      %510 = vmatprep.subr.mxu0 0.0
      %511 = vmatpush1.msra.mxu0 0.0
      %512 = vmatprep.subr.mxu0 0.0
      %513 = vmatpush1.msra.mxu0 0.0
      %514 = vmatprep.subr.mxu0 0.0
      %515 = vmatpush1.msra.mxu0 0.0
      %516 = vmatprep.subr.mxu0 0.0
      %517 = vmatpush1.msra.mxu0 0.0
      %518 = vmatprep.subr.mxu0 0.0
      %519 = vmatpush1.msra.mxu0 0.0
      %520 = vmatprep.subr.mxu0 0.0
      %521 = vmatpush1.msra.mxu0 0.0
      %522 = vmatprep.subr.mxu0 0.0
      %523 = vmatpush1.msra.mxu0 0.0
      %524 = vmatprep.subr.mxu0 0.0
      %525 = vmatpush1.msra.mxu0 0.0
      %526 = vmatprep.subr.mxu0 0.0
      %527 = vmatpush1.msra.mxu0 0.0
      %528 = vmatprep.subr.mxu0 0.0
      %529 = vmatpush1.msra.mxu0 0.0
      %530 = vmatprep.subr.mxu0 0.0
      %531 = vmatpush1.msra.mxu0 0.0
      %532 = vmatprep.subr.mxu0 0.0
      %533 = vmatpush1.msra.mxu0 0.0
      %534 = vmatprep.subr.mxu0 0.0
      %535 = vmatpush1.msra.mxu0 0.0
      %536 = vmatprep.subr.mxu0 0.0
      %537 = vmatpush1.msra.mxu0 0.0
      %538 = vmatprep.subr.mxu0 0.0
      %539 = vmatpush1.msra.mxu0 0.0
      %540 = vmatprep.subr.mxu0 0.0
      %541 = vmatpush1.msra.mxu0 0.0
      %542 = vmatprep.subr.mxu0 0.0
      %543 = vmatpush1.msra.mxu0 0.0
      %544 = vmatprep.subr.mxu0 0.0
      %545 = vmatpush1.msra.mxu0 0.0
      %546 = vmatprep.subr.mxu0 0.0
      %547 = vmatpush1.msra.mxu0 0.0
      %548 = vmatprep.subr.mxu0 0.0
      %549 = vmatpush1.msra.mxu0 0.0
      %550 = vmatprep.subr.mxu0 0.0
      %551 = vmatpush1.msra.mxu0 0.0
      %552 = vmatprep.subr.mxu0 0.0
      %553 = vmatpush1.msra.mxu0 0.0
      %554 = vmatprep.subr.mxu0 0.0
      %555 = vmatpush1.msra.mxu0 0.0
      %556 = vmatprep.subr.mxu0 0.0
      %557 = vmatpush1.msra.mxu0 0.0
      %558 = vmatprep.subr.mxu0 0.0
      %559 = vmatpush1.msra.mxu0 0.0
      %560 = vmatprep.subr.mxu0 0.0
      %561 = vmatpush1.msra.mxu0 0.0
      %562 = vmatprep.subr.mxu0 0.0
      %563 = vmatpush1.msra.mxu0 0.0
      %564 = vmatprep.mubr.f32.mxu0 0.0
      %565 = vmatmul.mubr.f32.gmra.mrb[0].mxu0 %v453
      %v566 = vpop.f32.mrb[0].mxu0
      %v567 = vadd.f32 %v450, %v566
      %v568 = vpop.f32.mrb[0].mxu0
      %569 = vmatprep.mubr.f32.mxu0 0.0
      %570 = vmatmul.mubr.f32.gmra.mrb[0].mxu0 %v456
      %v571 = vpop.f32.mrb[0].mxu0
      %v572 = vadd.f32 %v450, %v571
      %v573 = vpop.f32.mrb[0].mxu0
      %574 = vmatprep.mubr.f32.mxu0 0.0
      %575 = vmatmul.mubr.f32.gmra.mrb[0].mxu0 %v459
      %v576 = vpop.f32.mrb[0].mxu0
      %v577 = vadd.f32 %v450, %v576
      %v578 = vpop.f32.mrb[0].mxu0
      %579 = vmatprep.mubr.f32.mxu0 0.0
      %580 = vmatmul.mubr.f32.gmra.mrb[0].mxu0 %v462
      %v581 = vpop.f32.mrb[0].mxu0
      %v582 = vadd.f32 %v450, %v581
      %v583 = vpop.f32.mrb[0].mxu0
      %584 = vmatprep.mubr.f32.mxu0 0.0
      %585 = vmatmul.mubr.f32.gmra.mrb[0].mxu0 %v465
      %v586 = vpop.f32.mrb[0].mxu0
      %v587 = vadd.f32 %v450, %v586
      %v588 = vpop.f32.mrb[0].mxu0
      %589 = vmatprep.mubr.f32.mxu0 0.0
      %590 = vmatmul.mubr.f32.gmra.mrb[0].mxu0 %v468
      %v591 = vpop.f32.mrb[0].mxu0
      %v592 = vadd.f32 %v450, %v591
      %v593 = vpop.f32.mrb[0].mxu0
      %594 = vmatprep.mubr.f32.mxu0 0.0
      %595 = vmatmul.mubr.f32.gmra.mrb[0].mxu0 %v471
      %v596 = vpop.f32.mrb[0].mxu0
      %v597 = vadd.f32 %v450, %v596
      %v598 = vpop.f32.mrb[0].mxu0
      %599 = vmatprep.mubr.f32.mxu0 0.0
      %600 = vmatmul.mubr.f32.gmra.mrb[0].mxu0 %v474
      %v601 = vpop.f32.mrb[0].mxu0
      %v602 = vadd.f32 %v450, %v601
      %v603 = vpop.f32.mrb[0].mxu0
      %604 = vmatprep.mubr.f32.mxu0 0.0
      %605 = vmatmul.mubr.f32.gmra.mrb[0].mxu0 %v477
      %v606 = vpop.f32.mrb[0].mxu0
      %v607 = vadd.f32 %v450, %v606
      %v608 = vpop.f32.mrb[0].mxu0
      %609 = vmatprep.mubr.f32.mxu0 0.0
      %610 = vmatmul.mubr.f32.gmra.mrb[0].mxu0 %v480
      %v611 = vpop.f32.mrb[0].mxu0
      %v612 = vadd.f32 %v450, %v611
      %v613 = vpop.f32.mrb[0].mxu0
      %614 = vmatprep.mubr.f32.mxu0 0.0
      %615 = vmatmul.mubr.f32.gmra.mrb[0].mxu0 %v483
      %v616 = vpop.f32.mrb[0].mxu0
      %v617 = vadd.f32 %v450, %v616
      %v618 = vpop.f32.mrb[0].mxu0
      %619 = vmatprep.mubr.f32.mxu0 0.0
      %620 = vmatmul.mubr.f32.gmra.mrb[0].mxu0 %v486
      %v621 = vpop.f32.mrb[0].mxu0
      %v622 = vadd.f32 %v450, %v621
      %v623 = vpop.f32.mrb[0].mxu0
      %624 = vmatprep.mubr.f32.mxu0 0.0
      %625 = vmatmul.mubr.f32.gmra.mrb[0].mxu0 %v489
      %v626 = vpop.f32.mrb[0].mxu0
      %v627 = vadd.f32 %v450, %v626
      %v628 = vpop.f32.mrb[0].mxu0
      %629 = vmatprep.mubr.f32.mxu0 0.0
      %630 = vmatmul.mubr.f32.gmra.mrb[0].mxu0 %v492
      %v631 = vpop.f32.mrb[0].mxu0
      %v632 = vadd.f32 %v450, %v631
      %v633 = vpop.f32.mrb[0].mxu0
      %634 = vmatprep.mubr.f32.mxu0 0.0
      %635 = vmatmul.mubr.f32.gmra.mrb[0].mxu0 %v495
      %v636 = vpop.f32.mrb[0].mxu0
      %v637 = vadd.f32 %v450, %v636
      %v638 = vpop.f32.mrb[0].mxu0
      %639 = vmatprep.mubr.f32.mxu0 0.0
      %640 = vmatmul.mubr.f32.gmra.mrb[0].mxu0 %v498
      %v641 = vpop.f32.mrb[0].mxu0
      %v642 = vadd.f32 %v450, %v641
      %v643 = vpop.f32.mrb[0].mxu0
      %644 = vdwg.mxu0
      %v645 = vmax.f32 %v567, 0.0
      %v646 = vmax.f32 %v572, 0.0
      %v647 = vmax.f32 %v577, 0.0
      %v648 = vmax.f32 %v582, 0.0
      %v649 = vmax.f32 %v587, 0.0
      %v650 = vmax.f32 %v592, 0.0
      %v651 = vmax.f32 %v597, 0.0
      %v652 = vmax.f32 %v602, 0.0
      %v653 = vmax.f32 %v607, 0.0
      %v654 = vmax.f32 %v612, 0.0
      %v655 = vmax.f32 %v617, 0.0
      %v656 = vmax.f32 %v622, 0.0
      %v657 = vmax.f32 %v627, 0.0
      %v658 = vmax.f32 %v632, 0.0
      %v659 = vmax.f32 %v637, 0.0
      %v660 = vmax.f32 %v642, 0.0
      %v661 = vld [vmem:[%s4] sm:$0xff]
      %v662 = vld [vmem:[%s4 + $0x8] sm:$0xff]
      %v663 = vld [vmem:[%s4 + $0x10] sm:$0xff]
      %v664 = vld [vmem:[%s4 + $0x18] sm:$0xff]
      %v665 = vld [vmem:[%s5] sm:$0x1]
      %v666 = vlaneseq
      %v667 = vshrl.u32 %v666, 7
      %v668 = vsub.s32 0, %v667
      %v669 = vrot.slane %v665, %v668
      %vm670 = vcmask 261120
      %v672 = vsel %vm670, %v645, 0
      %v675 = vsel %vm670, %v646, 0
      %v678 = vsel %vm670, %v647, 0
      %v681 = vsel %vm670, %v648, 0
      %v684 = vsel %vm670, %v649, 0
      %v687 = vsel %vm670, %v650, 0
      %v690 = vsel %vm670, %v651, 0
      %v693 = vsel %vm670, %v652, 0
      %v696 = vsel %vm670, %v653, 0
      %v699 = vsel %vm670, %v654, 0
      %v702 = vsel %vm670, %v655, 0
      %v705 = vsel %vm670, %v656, 0
      %v708 = vsel %vm670, %v657, 0
      %v711 = vsel %vm670, %v658, 0
      %v714 = vsel %vm670, %v659, 0
      %v717 = vsel %vm670, %v660, 0
      %719 = vmatprep.subr.mxu0 0.0
      %720 = vmatpush1.msra.mxu0 %v661
      %721 = vmatprep.subr.mxu0 0.0
      %722 = vmatpush1.msra.mxu0 %v662
      %723 = vmatprep.subr.mxu0 0.0
      %724 = vmatpush1.msra.mxu0 %v663
      %725 = vmatprep.subr.mxu0 0.0
      %726 = vmatpush1.msra.mxu0 %v664
      %727 = vmatprep.subr.mxu0 0.0
      %728 = vmatpush1.msra.mxu0 0.0
      %729 = vmatprep.subr.mxu0 0.0
      %730 = vmatpush1.msra.mxu0 0.0
      %731 = vmatprep.subr.mxu0 0.0
      %732 = vmatpush1.msra.mxu0 0.0
      %733 = vmatprep.subr.mxu0 0.0
      %734 = vmatpush1.msra.mxu0 0.0
      %735 = vmatprep.subr.mxu0 0.0
      %736 = vmatpush1.msra.mxu0 0.0
      %737 = vmatprep.subr.mxu0 0.0
      %738 = vmatpush1.msra.mxu0 0.0
      %739 = vmatprep.subr.mxu0 0.0
      %740 = vmatpush1.msra.mxu0 0.0
      %741 = vmatprep.subr.mxu0 0.0
      %742 = vmatpush1.msra.mxu0 0.0
      %743 = vmatprep.subr.mxu0 0.0
      %744 = vmatpush1.msra.mxu0 0.0
      %745 = vmatprep.subr.mxu0 0.0
      %746 = vmatpush1.msra.mxu0 0.0
      %747 = vmatprep.subr.mxu0 0.0
      %748 = vmatpush1.msra.mxu0 0.0
      %749 = vmatprep.subr.mxu0 0.0
      %750 = vmatpush1.msra.mxu0 0.0
      %751 = vmatprep.subr.mxu0 0.0
      %752 = vmatpush1.msra.mxu0 0.0
      %753 = vmatprep.subr.mxu0 0.0
      %754 = vmatpush1.msra.mxu0 0.0
      %755 = vmatprep.subr.mxu0 0.0
      %756 = vmatpush1.msra.mxu0 0.0
      %757 = vmatprep.subr.mxu0 0.0
      %758 = vmatpush1.msra.mxu0 0.0
      %759 = vmatprep.subr.mxu0 0.0
      %760 = vmatpush1.msra.mxu0 0.0
      %761 = vmatprep.subr.mxu0 0.0
      %762 = vmatpush1.msra.mxu0 0.0
      %763 = vmatprep.subr.mxu0 0.0
      %764 = vmatpush1.msra.mxu0 0.0
      %765 = vmatprep.subr.mxu0 0.0
      %766 = vmatpush1.msra.mxu0 0.0
      %767 = vmatprep.subr.mxu0 0.0
      %768 = vmatpush1.msra.mxu0 0.0
      %769 = vmatprep.subr.mxu0 0.0
      %770 = vmatpush1.msra.mxu0 0.0
      %771 = vmatprep.subr.mxu0 0.0
      %772 = vmatpush1.msra.mxu0 0.0
      %773 = vmatprep.subr.mxu0 0.0
      %774 = vmatpush1.msra.mxu0 0.0
      %775 = vmatprep.subr.mxu0 0.0
      %776 = vmatpush1.msra.mxu0 0.0
      %777 = vmatprep.subr.mxu0 0.0
      %778 = vmatpush1.msra.mxu0 0.0
      %779 = vmatprep.subr.mxu0 0.0
      %780 = vmatpush1.msra.mxu0 0.0
      %781 = vmatprep.subr.mxu0 0.0
      %782 = vmatpush1.msra.mxu0 0.0
      %783 = vmatprep.mubr.f32.mxu0 0.0
      %784 = vmatmul.mubr.f32.gmra.mrb[0].mxu0 %v672
      %v785 = vpop.f32.mrb[0].mxu0
      %v786 = vadd.f32 %v669, %v785
      %v787 = vpop.f32.mrb[0].mxu0
      %788 = vmatprep.mubr.f32.mxu0 0.0
      %789 = vmatmul.mubr.f32.gmra.mrb[0].mxu0 %v675
      %v790 = vpop.f32.mrb[0].mxu0
      %v791 = vadd.f32 %v669, %v790
      %v792 = vpop.f32.mrb[0].mxu0
      %793 = vmatprep.mubr.f32.mxu0 0.0
      %794 = vmatmul.mubr.f32.gmra.mrb[0].mxu0 %v678
      %v795 = vpop.f32.mrb[0].mxu0
      %v796 = vadd.f32 %v669, %v795
      %v797 = vpop.f32.mrb[0].mxu0
      %798 = vmatprep.mubr.f32.mxu0 0.0
      %799 = vmatmul.mubr.f32.gmra.mrb[0].mxu0 %v681
      %v800 = vpop.f32.mrb[0].mxu0
      %v801 = vadd.f32 %v669, %v800
      %v802 = vpop.f32.mrb[0].mxu0
      %803 = vmatprep.mubr.f32.mxu0 0.0
      %804 = vmatmul.mubr.f32.gmra.mrb[0].mxu0 %v684
      %v805 = vpop.f32.mrb[0].mxu0
      %v806 = vadd.f32 %v669, %v805
      %v807 = vpop.f32.mrb[0].mxu0
      %808 = vmatprep.mubr.f32.mxu0 0.0
      %809 = vmatmul.mubr.f32.gmra.mrb[0].mxu0 %v687
      %v810 = vpop.f32.mrb[0].mxu0
      %v811 = vadd.f32 %v669, %v810
      %v812 = vpop.f32.mrb[0].mxu0
      %813 = vmatprep.mubr.f32.mxu0 0.0
      %814 = vmatmul.mubr.f32.gmra.mrb[0].mxu0 %v690
      %v815 = vpop.f32.mrb[0].mxu0
      %v816 = vadd.f32 %v669, %v815
      %v817 = vpop.f32.mrb[0].mxu0
      %818 = vmatprep.mubr.f32.mxu0 0.0
      %819 = vmatmul.mubr.f32.gmra.mrb[0].mxu0 %v693
      %v820 = vpop.f32.mrb[0].mxu0
      %v821 = vadd.f32 %v669, %v820
      %v822 = vpop.f32.mrb[0].mxu0
      %823 = vmatprep.mubr.f32.mxu0 0.0
      %824 = vmatmul.mubr.f32.gmra.mrb[0].mxu0 %v696
      %v825 = vpop.f32.mrb[0].mxu0
      %v826 = vadd.f32 %v669, %v825
      %v827 = vpop.f32.mrb[0].mxu0
      %828 = vmatprep.mubr.f32.mxu0 0.0
      %829 = vmatmul.mubr.f32.gmra.mrb[0].mxu0 %v699
      %v830 = vpop.f32.mrb[0].mxu0
      %v831 = vadd.f32 %v669, %v830
      %v832 = vpop.f32.mrb[0].mxu0
      %833 = vmatprep.mubr.f32.mxu0 0.0
      %834 = vmatmul.mubr.f32.gmra.mrb[0].mxu0 %v702
      %v835 = vpop.f32.mrb[0].mxu0
      %v836 = vadd.f32 %v669, %v835
      %v837 = vpop.f32.mrb[0].mxu0
      %838 = vmatprep.mubr.f32.mxu0 0.0
      %839 = vmatmul.mubr.f32.gmra.mrb[0].mxu0 %v705
      %v840 = vpop.f32.mrb[0].mxu0
      %v841 = vadd.f32 %v669, %v840
      %v842 = vpop.f32.mrb[0].mxu0
      %843 = vmatprep.mubr.f32.mxu0 0.0
      %844 = vmatmul.mubr.f32.gmra.mrb[0].mxu0 %v708
      %v845 = vpop.f32.mrb[0].mxu0
      %v846 = vadd.f32 %v669, %v845
      %v847 = vpop.f32.mrb[0].mxu0
      %848 = vmatprep.mubr.f32.mxu0 0.0
      %849 = vmatmul.mubr.f32.gmra.mrb[0].mxu0 %v711
      %v850 = vpop.f32.mrb[0].mxu0
      %v851 = vadd.f32 %v669, %v850
      %v852 = vpop.f32.mrb[0].mxu0
      %853 = vmatprep.mubr.f32.mxu0 0.0
      %854 = vmatmul.mubr.f32.gmra.mrb[0].mxu0 %v714
      %v855 = vpop.f32.mrb[0].mxu0
      %v856 = vadd.f32 %v669, %v855
      %v857 = vpop.f32.mrb[0].mxu0
      %858 = vmatprep.mubr.f32.mxu0 0.0
      %859 = vmatmul.mubr.f32.gmra.mrb[0].mxu0 %v717
      %v860 = vpop.f32.mrb[0].mxu0
      %v861 = vadd.f32 %v669, %v860
      %v862 = vpop.f32.mrb[0].mxu0
      %863 = vdwg.mxu0
      %v864 = vld [vmem:[%s6] sm:$0xff]
      %v865 = vld [vmem:[%s6 + $0x8] sm:$0xff]
      %v866 = vld [vmem:[%s6 + $0x10] sm:$0xff]
      %v867 = vld [vmem:[%s6 + $0x18] sm:$0xff]
      %v868 = vld [vmem:[%s7] sm:$0x1]
      %v869 = vlaneseq
      %v870 = vshrl.u32 %v869, 7
      %v871 = vsub.s32 0, %v870
      %v872 = vrot.slane %v868, %v871
      %873 = vmatprep.subr.mxu0 0.0
      %874 = vmatpush1.msra.mxu0 %v864
      %875 = vmatprep.subr.mxu0 0.0
      %876 = vmatpush1.msra.mxu0 %v865
      %877 = vmatprep.subr.mxu0 0.0
      %878 = vmatpush1.msra.mxu0 %v866
      %879 = vmatprep.subr.mxu0 0.0
      %880 = vmatpush1.msra.mxu0 %v867
      %881 = vmatprep.subr.mxu0 0.0
      %882 = vmatpush1.msra.mxu0 0.0
      %883 = vmatprep.subr.mxu0 0.0
      %884 = vmatpush1.msra.mxu0 0.0
      %885 = vmatprep.subr.mxu0 0.0
      %886 = vmatpush1.msra.mxu0 0.0
      %887 = vmatprep.subr.mxu0 0.0
      %888 = vmatpush1.msra.mxu0 0.0
      %889 = vmatprep.subr.mxu0 0.0
      %890 = vmatpush1.msra.mxu0 0.0
      %891 = vmatprep.subr.mxu0 0.0
      %892 = vmatpush1.msra.mxu0 0.0
      %893 = vmatprep.subr.mxu0 0.0
      %894 = vmatpush1.msra.mxu0 0.0
      %895 = vmatprep.subr.mxu0 0.0
      %896 = vmatpush1.msra.mxu0 0.0
      %897 = vmatprep.subr.mxu0 0.0
      %898 = vmatpush1.msra.mxu0 0.0
      %899 = vmatprep.subr.mxu0 0.0
      %900 = vmatpush1.msra.mxu0 0.0
      %901 = vmatprep.subr.mxu0 0.0
      %902 = vmatpush1.msra.mxu0 0.0
      %903 = vmatprep.subr.mxu0 0.0
      %904 = vmatpush1.msra.mxu0 0.0
      %905 = vmatprep.subr.mxu0 0.0
      %906 = vmatpush1.msra.mxu0 0.0
      %907 = vmatprep.subr.mxu0 0.0
      %908 = vmatpush1.msra.mxu0 0.0
      %909 = vmatprep.subr.mxu0 0.0
      %910 = vmatpush1.msra.mxu0 0.0
      %911 = vmatprep.subr.mxu0 0.0
      %912 = vmatpush1.msra.mxu0 0.0
      %913 = vmatprep.subr.mxu0 0.0
      %914 = vmatpush1.msra.mxu0 0.0
      %915 = vmatprep.subr.mxu0 0.0
      %916 = vmatpush1.msra.mxu0 0.0
      %917 = vmatprep.subr.mxu0 0.0
      %918 = vmatpush1.msra.mxu0 0.0
      %919 = vmatprep.subr.mxu0 0.0
      %920 = vmatpush1.msra.mxu0 0.0
      %921 = vmatprep.subr.mxu0 0.0
      %922 = vmatpush1.msra.mxu0 0.0
      %923 = vmatprep.subr.mxu0 0.0
      %924 = vmatpush1.msra.mxu0 0.0
      %925 = vmatprep.subr.mxu0 0.0
      %926 = vmatpush1.msra.mxu0 0.0
      %927 = vmatprep.subr.mxu0 0.0
      %928 = vmatpush1.msra.mxu0 0.0
      %929 = vmatprep.subr.mxu0 0.0
      %930 = vmatpush1.msra.mxu0 0.0
      %931 = vmatprep.subr.mxu0 0.0
      %932 = vmatpush1.msra.mxu0 0.0
      %933 = vmatprep.subr.mxu0 0.0
      %934 = vmatpush1.msra.mxu0 0.0
      %935 = vmatprep.subr.mxu0 0.0
      %936 = vmatpush1.msra.mxu0 0.0
      %937 = vmatprep.mubr.f32.mxu0 0.0
      %938 = vmatmul.mubr.f32.gmra.mrb[0].mxu0 %v672
      %v939 = vpop.f32.mrb[0].mxu0
      %v940 = vadd.f32 %v872, %v939
      %v941 = vpop.f32.mrb[0].mxu0
      %942 = vmatprep.mubr.f32.mxu0 0.0
      %943 = vmatmul.mubr.f32.gmra.mrb[0].mxu0 %v675
      %v944 = vpop.f32.mrb[0].mxu0
      %v945 = vadd.f32 %v872, %v944
      %v946 = vpop.f32.mrb[0].mxu0
      %947 = vmatprep.mubr.f32.mxu0 0.0
      %948 = vmatmul.mubr.f32.gmra.mrb[0].mxu0 %v678
      %v949 = vpop.f32.mrb[0].mxu0
      %v950 = vadd.f32 %v872, %v949
      %v951 = vpop.f32.mrb[0].mxu0
      %952 = vmatprep.mubr.f32.mxu0 0.0
      %953 = vmatmul.mubr.f32.gmra.mrb[0].mxu0 %v681
      %v954 = vpop.f32.mrb[0].mxu0
      %v955 = vadd.f32 %v872, %v954
      %v956 = vpop.f32.mrb[0].mxu0
      %957 = vmatprep.mubr.f32.mxu0 0.0
      %958 = vmatmul.mubr.f32.gmra.mrb[0].mxu0 %v684
      %v959 = vpop.f32.mrb[0].mxu0
      %v960 = vadd.f32 %v872, %v959
      %v961 = vpop.f32.mrb[0].mxu0
      %962 = vmatprep.mubr.f32.mxu0 0.0
      %963 = vmatmul.mubr.f32.gmra.mrb[0].mxu0 %v687
      %v964 = vpop.f32.mrb[0].mxu0
      %v965 = vadd.f32 %v872, %v964
      %v966 = vpop.f32.mrb[0].mxu0
      %967 = vmatprep.mubr.f32.mxu0 0.0
      %968 = vmatmul.mubr.f32.gmra.mrb[0].mxu0 %v690
      %v969 = vpop.f32.mrb[0].mxu0
      %v970 = vadd.f32 %v872, %v969
      %v971 = vpop.f32.mrb[0].mxu0
      %972 = vmatprep.mubr.f32.mxu0 0.0
      %973 = vmatmul.mubr.f32.gmra.mrb[0].mxu0 %v693
      %v974 = vpop.f32.mrb[0].mxu0
      %v975 = vadd.f32 %v872, %v974
      %v976 = vpop.f32.mrb[0].mxu0
      %977 = vmatprep.mubr.f32.mxu0 0.0
      %978 = vmatmul.mubr.f32.gmra.mrb[0].mxu0 %v696
      %v979 = vpop.f32.mrb[0].mxu0
      %v980 = vadd.f32 %v872, %v979
      %v981 = vpop.f32.mrb[0].mxu0
      %982 = vmatprep.mubr.f32.mxu0 0.0
      %983 = vmatmul.mubr.f32.gmra.mrb[0].mxu0 %v699
      %v984 = vpop.f32.mrb[0].mxu0
      %v985 = vadd.f32 %v872, %v984
      %v986 = vpop.f32.mrb[0].mxu0
      %987 = vmatprep.mubr.f32.mxu0 0.0
      %988 = vmatmul.mubr.f32.gmra.mrb[0].mxu0 %v702
      %v989 = vpop.f32.mrb[0].mxu0
      %v990 = vadd.f32 %v872, %v989
      %v991 = vpop.f32.mrb[0].mxu0
      %992 = vmatprep.mubr.f32.mxu0 0.0
      %993 = vmatmul.mubr.f32.gmra.mrb[0].mxu0 %v705
      %v994 = vpop.f32.mrb[0].mxu0
      %v995 = vadd.f32 %v872, %v994
      %v996 = vpop.f32.mrb[0].mxu0
      %997 = vmatprep.mubr.f32.mxu0 0.0
      %998 = vmatmul.mubr.f32.gmra.mrb[0].mxu0 %v708
      %v999 = vpop.f32.mrb[0].mxu0
      %v1000 = vadd.f32 %v872, %v999
      %v1001 = vpop.f32.mrb[0].mxu0
      %1002 = vmatprep.mubr.f32.mxu0 0.0
      %1003 = vmatmul.mubr.f32.gmra.mrb[0].mxu0 %v711
      %v1004 = vpop.f32.mrb[0].mxu0
      %v1005 = vadd.f32 %v872, %v1004
      %v1006 = vpop.f32.mrb[0].mxu0
      %1007 = vmatprep.mubr.f32.mxu0 0.0
      %1008 = vmatmul.mubr.f32.gmra.mrb[0].mxu0 %v714
      %v1009 = vpop.f32.mrb[0].mxu0
      %v1010 = vadd.f32 %v872, %v1009
      %v1011 = vpop.f32.mrb[0].mxu0
      %1012 = vmatprep.mubr.f32.mxu0 0.0
      %1013 = vmatmul.mubr.f32.gmra.mrb[0].mxu0 %v717
      %v1014 = vpop.f32.mrb[0].mxu0
      %v1015 = vadd.f32 %v872, %v1014
      %v1016 = vpop.f32.mrb[0].mxu0
      %1017 = vdwg.mxu0
      %v1018 = vtanh.pop %v786
      %v1019 = vtanh.pop %v791
      %v1020 = vtanh.pop %v796
      %v1021 = vtanh.pop %v801
      %v1022 = vtanh.pop %v806
      %v1023 = vtanh.pop %v811
      %v1024 = vtanh.pop %v816
      %v1025 = vtanh.pop %v821
      %v1026 = vtanh.pop %v826
      %v1027 = vtanh.pop %v831
      %v1028 = vtanh.pop %v836
      %v1029 = vtanh.pop %v841
      %v1030 = vtanh.pop %v846
      %v1031 = vtanh.pop %v851
      %v1032 = vtanh.pop %v856
      %v1033 = vtanh.pop %v861
      %v1034 = vmul.f32 %v1018, 1.442695
      %v1035 = vpow.pop %v1034
      %v1036 = vmul.f32 %v1019, 1.442695
      %v1037 = vpow.pop %v1036
      %v1038 = vmul.f32 %v1020, 1.442695
      %v1039 = vpow.pop %v1038
      %v1040 = vmul.f32 %v1021, 1.442695
      %v1041 = vpow.pop %v1040
      %v1042 = vmul.f32 %v1022, 1.442695
      %v1043 = vpow.pop %v1042
      %v1044 = vmul.f32 %v1023, 1.442695
      %v1045 = vpow.pop %v1044
      %v1046 = vmul.f32 %v1024, 1.442695
      %v1047 = vpow.pop %v1046
      %v1048 = vmul.f32 %v1025, 1.442695
      %v1049 = vpow.pop %v1048
      %v1050 = vmul.f32 %v1026, 1.442695
      %v1051 = vpow.pop %v1050
      %v1052 = vmul.f32 %v1027, 1.442695
      %v1053 = vpow.pop %v1052
      %v1054 = vmul.f32 %v1028, 1.442695
      %v1055 = vpow.pop %v1054
      %v1056 = vmul.f32 %v1029, 1.442695
      %v1057 = vpow.pop %v1056
      %v1058 = vmul.f32 %v1030, 1.442695
      %v1059 = vpow.pop %v1058
      %v1060 = vmul.f32 %v1031, 1.442695
      %v1061 = vpow.pop %v1060
      %v1062 = vmul.f32 %v1032, 1.442695
      %v1063 = vpow.pop %v1062
      %v1064 = vmul.f32 %v1033, 1.442695
      %v1065 = vpow.pop %v1064
      %v1066 = vmul.f32 %v428, %v1035
      %v1067 = vmul.f32 %v429, %v1037
      %v1068 = vmul.f32 %v430, %v1039
      %v1069 = vmul.f32 %v431, %v1041
      %v1070 = vmul.f32 %v432, %v1043
      %v1071 = vmul.f32 %v433, %v1045
      %v1072 = vmul.f32 %v434, %v1047
      %v1073 = vmul.f32 %v435, %v1049
      %v1074 = vmul.f32 %v436, %v1051
      %v1075 = vmul.f32 %v437, %v1053
      %v1076 = vmul.f32 %v438, %v1055
      %v1077 = vmul.f32 %v439, %v1057
      %v1078 = vmul.f32 %v440, %v1059
      %v1079 = vmul.f32 %v441, %v1061
      %v1080 = vmul.f32 %v442, %v1063
      %v1081 = vmul.f32 %v443, %v1065
      %v1082 = vadd.f32 %v1066, %v940
      %v1083 = vadd.f32 %v1067, %v945
      %v1084 = vadd.f32 %v1068, %v950
      %v1085 = vadd.f32 %v1069, %v955
      %v1086 = vadd.f32 %v1070, %v960
      %v1087 = vadd.f32 %v1071, %v965
      %v1088 = vadd.f32 %v1072, %v970
      %v1089 = vadd.f32 %v1073, %v975
      %v1090 = vadd.f32 %v1074, %v980
      %v1091 = vadd.f32 %v1075, %v985
      %v1092 = vadd.f32 %v1076, %v990
      %v1093 = vadd.f32 %v1077, %v995
      %v1094 = vadd.f32 %v1078, %v1000
      %v1095 = vadd.f32 %v1079, %v1005
      %v1096 = vadd.f32 %v1080, %v1010
      %v1097 = vadd.f32 %v1081, %v1015
      %v1098 = vsel %vm451, %v1018, 0.0
      %1099 = vadd.xlane.f32.xlu0 %v1098
      %v1100 = vpop.xlane.xlu0 %1099
      %v1101 = vsel %vm451, %v1019, 0.0
      %1102 = vadd.xlane.f32.xlu0 %v1101
      %v1103 = vpop.xlane.xlu0 %1102
      %v1104 = vsel %vm451, %v1020, 0.0
      %1105 = vadd.xlane.f32.xlu0 %v1104
      %v1106 = vpop.xlane.xlu0 %1105
      %v1107 = vsel %vm451, %v1021, 0.0
      %1108 = vadd.xlane.f32.xlu0 %v1107
      %v1109 = vpop.xlane.xlu0 %1108
      %v1110 = vsel %vm451, %v1022, 0.0
      %1111 = vadd.xlane.f32.xlu0 %v1110
      %v1112 = vpop.xlane.xlu0 %1111
      %v1113 = vsel %vm451, %v1023, 0.0
      %1114 = vadd.xlane.f32.xlu0 %v1113
      %v1115 = vpop.xlane.xlu0 %1114
      %v1116 = vsel %vm451, %v1024, 0.0
      %1117 = vadd.xlane.f32.xlu0 %v1116
      %v1118 = vpop.xlane.xlu0 %1117
      %v1119 = vsel %vm451, %v1025, 0.0
      %1120 = vadd.xlane.f32.xlu0 %v1119
      %v1121 = vpop.xlane.xlu0 %1120
      %v1122 = vsel %vm451, %v1026, 0.0
      %1123 = vadd.xlane.f32.xlu0 %v1122
      %v1124 = vpop.xlane.xlu0 %1123
      %v1125 = vsel %vm451, %v1027, 0.0
      %1126 = vadd.xlane.f32.xlu0 %v1125
      %v1127 = vpop.xlane.xlu0 %1126
      %v1128 = vsel %vm451, %v1028, 0.0
      %1129 = vadd.xlane.f32.xlu0 %v1128
      %v1130 = vpop.xlane.xlu0 %1129
      %v1131 = vsel %vm451, %v1029, 0.0
      %1132 = vadd.xlane.f32.xlu0 %v1131
      %v1133 = vpop.xlane.xlu0 %1132
      %v1134 = vsel %vm451, %v1030, 0.0
      %1135 = vadd.xlane.f32.xlu0 %v1134
      %v1136 = vpop.xlane.xlu0 %1135
      %v1137 = vsel %vm451, %v1031, 0.0
      %1138 = vadd.xlane.f32.xlu0 %v1137
      %v1139 = vpop.xlane.xlu0 %1138
      %v1140 = vsel %vm451, %v1032, 0.0
      %1141 = vadd.xlane.f32.xlu0 %v1140
      %v1142 = vpop.xlane.xlu0 %1141
      %v1143 = vsel %vm451, %v1033, 0.0
      %1144 = vadd.xlane.f32.xlu0 %v1143
      %v1145 = vpop.xlane.xlu0 %1144
      %v1146 = vadd.f32 %v1100, 0.0
      %v1147 = vadd.f32 %v1103, 0.0
      %v1148 = vadd.f32 %v1106, 0.0
      %v1149 = vadd.f32 %v1109, 0.0
      %v1150 = vadd.f32 %v1112, 0.0
      %v1151 = vadd.f32 %v1115, 0.0
      %v1152 = vadd.f32 %v1118, 0.0
      %v1153 = vadd.f32 %v1121, 0.0
      %v1154 = vadd.f32 %v1124, 0.0
      %v1155 = vadd.f32 %v1127, 0.0
      %v1156 = vadd.f32 %v1130, 0.0
      %v1157 = vadd.f32 %v1133, 0.0
      %v1158 = vadd.f32 %v1136, 0.0
      %v1159 = vadd.f32 %v1139, 0.0
      %v1160 = vadd.f32 %v1142, 0.0
      %v1161 = vadd.f32 %v1145, 0.0
      %s1162 = scalar_lea.vmem %s2, 16
      %v1163 = vld [vmem:[%s1162] sm:$0xff]
      %v1164 = vld [vmem:[%s1162 + $0x8] sm:$0xff]
      %v1165 = vld [vmem:[%s3 + $0x1] sm:$0x1]
      %v1166 = vlaneseq
      %v1167 = vshrl.u32 %v1166, 7
      %v1168 = vsub.s32 0, %v1167
      %v1169 = vrot.slane %v1165, %v1168
      %v1171 = vsel %vm451, %v1082, 0
      %v1174 = vsel %vm451, %v1083, 0
      %v1177 = vsel %vm451, %v1084, 0
      %v1180 = vsel %vm451, %v1085, 0
      %v1183 = vsel %vm451, %v1086, 0
      %v1186 = vsel %vm451, %v1087, 0
      %v1189 = vsel %vm451, %v1088, 0
      %v1192 = vsel %vm451, %v1089, 0
      %v1195 = vsel %vm451, %v1090, 0
      %v1198 = vsel %vm451, %v1091, 0
      %v1201 = vsel %vm451, %v1092, 0
      %v1204 = vsel %vm451, %v1093, 0
      %v1207 = vsel %vm451, %v1094, 0
      %v1210 = vsel %vm451, %v1095, 0
      %v1213 = vsel %vm451, %v1096, 0
      %v1216 = vsel %vm451, %v1097, 0
      %1218 = vmatprep.subr.mxu0 0.0
      %1219 = vmatpush1.msra.mxu0 %v1163
      %1220 = vmatprep.subr.mxu0 0.0
      %1221 = vmatpush1.msra.mxu0 %v1164
      %1222 = vmatprep.subr.mxu0 0.0
      %1223 = vmatpush1.msra.mxu0 0.0
      %1224 = vmatprep.subr.mxu0 0.0
      %1225 = vmatpush1.msra.mxu0 0.0
      %1226 = vmatprep.subr.mxu0 0.0
      %1227 = vmatpush1.msra.mxu0 0.0
      %1228 = vmatprep.subr.mxu0 0.0
      %1229 = vmatpush1.msra.mxu0 0.0
      %1230 = vmatprep.subr.mxu0 0.0
      %1231 = vmatpush1.msra.mxu0 0.0
      %1232 = vmatprep.subr.mxu0 0.0
      %1233 = vmatpush1.msra.mxu0 0.0
      %1234 = vmatprep.subr.mxu0 0.0
      %1235 = vmatpush1.msra.mxu0 0.0
      %1236 = vmatprep.subr.mxu0 0.0
      %1237 = vmatpush1.msra.mxu0 0.0
      %1238 = vmatprep.subr.mxu0 0.0
      %1239 = vmatpush1.msra.mxu0 0.0
      %1240 = vmatprep.subr.mxu0 0.0
      %1241 = vmatpush1.msra.mxu0 0.0
      %1242 = vmatprep.subr.mxu0 0.0
      %1243 = vmatpush1.msra.mxu0 0.0
      %1244 = vmatprep.subr.mxu0 0.0
      %1245 = vmatpush1.msra.mxu0 0.0
      %1246 = vmatprep.subr.mxu0 0.0
      %1247 = vmatpush1.msra.mxu0 0.0
      %1248 = vmatprep.subr.mxu0 0.0
      %1249 = vmatpush1.msra.mxu0 0.0
      %1250 = vmatprep.subr.mxu0 0.0
      %1251 = vmatpush1.msra.mxu0 0.0
      %1252 = vmatprep.subr.mxu0 0.0
      %1253 = vmatpush1.msra.mxu0 0.0
      %1254 = vmatprep.subr.mxu0 0.0
      %1255 = vmatpush1.msra.mxu0 0.0
      %1256 = vmatprep.subr.mxu0 0.0
      %1257 = vmatpush1.msra.mxu0 0.0
      %1258 = vmatprep.subr.mxu0 0.0
      %1259 = vmatpush1.msra.mxu0 0.0
      %1260 = vmatprep.subr.mxu0 0.0
      %1261 = vmatpush1.msra.mxu0 0.0
      %1262 = vmatprep.subr.mxu0 0.0
      %1263 = vmatpush1.msra.mxu0 0.0
      %1264 = vmatprep.subr.mxu0 0.0
      %1265 = vmatpush1.msra.mxu0 0.0
      %1266 = vmatprep.subr.mxu0 0.0
      %1267 = vmatpush1.msra.mxu0 0.0
      %1268 = vmatprep.subr.mxu0 0.0
      %1269 = vmatpush1.msra.mxu0 0.0
      %1270 = vmatprep.subr.mxu0 0.0
      %1271 = vmatpush1.msra.mxu0 0.0
      %1272 = vmatprep.subr.mxu0 0.0
      %1273 = vmatpush1.msra.mxu0 0.0
      %1274 = vmatprep.subr.mxu0 0.0
      %1275 = vmatpush1.msra.mxu0 0.0
      %1276 = vmatprep.subr.mxu0 0.0
      %1277 = vmatpush1.msra.mxu0 0.0
      %1278 = vmatprep.subr.mxu0 0.0
      %1279 = vmatpush1.msra.mxu0 0.0
      %1280 = vmatprep.subr.mxu0 0.0
      %1281 = vmatpush1.msra.mxu0 0.0
      %1282 = vmatprep.mubr.f32.mxu0 0.0
      %1283 = vmatmul.mubr.f32.gmra.mrb[0].mxu0 %v1171
      %v1284 = vpop.f32.mrb[0].mxu0
      %v1285 = vadd.f32 %v1169, %v1284
      %v1286 = vpop.f32.mrb[0].mxu0
      %1287 = vmatprep.mubr.f32.mxu0 0.0
      %1288 = vmatmul.mubr.f32.gmra.mrb[0].mxu0 %v1174
      %v1289 = vpop.f32.mrb[0].mxu0
      %v1290 = vadd.f32 %v1169, %v1289
      %v1291 = vpop.f32.mrb[0].mxu0
      %1292 = vmatprep.mubr.f32.mxu0 0.0
      %1293 = vmatmul.mubr.f32.gmra.mrb[0].mxu0 %v1177
      %v1294 = vpop.f32.mrb[0].mxu0
      %v1295 = vadd.f32 %v1169, %v1294
      %v1296 = vpop.f32.mrb[0].mxu0
      %1297 = vmatprep.mubr.f32.mxu0 0.0
      %1298 = vmatmul.mubr.f32.gmra.mrb[0].mxu0 %v1180
      %v1299 = vpop.f32.mrb[0].mxu0
      %v1300 = vadd.f32 %v1169, %v1299
      %v1301 = vpop.f32.mrb[0].mxu0
      %1302 = vmatprep.mubr.f32.mxu0 0.0
      %1303 = vmatmul.mubr.f32.gmra.mrb[0].mxu0 %v1183
      %v1304 = vpop.f32.mrb[0].mxu0
      %v1305 = vadd.f32 %v1169, %v1304
      %v1306 = vpop.f32.mrb[0].mxu0
      %1307 = vmatprep.mubr.f32.mxu0 0.0
      %1308 = vmatmul.mubr.f32.gmra.mrb[0].mxu0 %v1186
      %v1309 = vpop.f32.mrb[0].mxu0
      %v1310 = vadd.f32 %v1169, %v1309
      %v1311 = vpop.f32.mrb[0].mxu0
      %1312 = vmatprep.mubr.f32.mxu0 0.0
      %1313 = vmatmul.mubr.f32.gmra.mrb[0].mxu0 %v1189
      %v1314 = vpop.f32.mrb[0].mxu0
      %v1315 = vadd.f32 %v1169, %v1314
      %v1316 = vpop.f32.mrb[0].mxu0
      %1317 = vmatprep.mubr.f32.mxu0 0.0
      %1318 = vmatmul.mubr.f32.gmra.mrb[0].mxu0 %v1192
      %v1319 = vpop.f32.mrb[0].mxu0
      %v1320 = vadd.f32 %v1169, %v1319
      %v1321 = vpop.f32.mrb[0].mxu0
      %1322 = vmatprep.mubr.f32.mxu0 0.0
      %1323 = vmatmul.mubr.f32.gmra.mrb[0].mxu0 %v1195
      %v1324 = vpop.f32.mrb[0].mxu0
      %v1325 = vadd.f32 %v1169, %v1324
      %v1326 = vpop.f32.mrb[0].mxu0
      %1327 = vmatprep.mubr.f32.mxu0 0.0
      %1328 = vmatmul.mubr.f32.gmra.mrb[0].mxu0 %v1198
      %v1329 = vpop.f32.mrb[0].mxu0
      %v1330 = vadd.f32 %v1169, %v1329
      %v1331 = vpop.f32.mrb[0].mxu0
      %1332 = vmatprep.mubr.f32.mxu0 0.0
      %1333 = vmatmul.mubr.f32.gmra.mrb[0].mxu0 %v1201
      %v1334 = vpop.f32.mrb[0].mxu0
      %v1335 = vadd.f32 %v1169, %v1334
      %v1336 = vpop.f32.mrb[0].mxu0
      %1337 = vmatprep.mubr.f32.mxu0 0.0
      %1338 = vmatmul.mubr.f32.gmra.mrb[0].mxu0 %v1204
      %v1339 = vpop.f32.mrb[0].mxu0
      %v1340 = vadd.f32 %v1169, %v1339
      %v1341 = vpop.f32.mrb[0].mxu0
      %1342 = vmatprep.mubr.f32.mxu0 0.0
      %1343 = vmatmul.mubr.f32.gmra.mrb[0].mxu0 %v1207
      %v1344 = vpop.f32.mrb[0].mxu0
      %v1345 = vadd.f32 %v1169, %v1344
      %v1346 = vpop.f32.mrb[0].mxu0
      %1347 = vmatprep.mubr.f32.mxu0 0.0
      %1348 = vmatmul.mubr.f32.gmra.mrb[0].mxu0 %v1210
      %v1349 = vpop.f32.mrb[0].mxu0
      %v1350 = vadd.f32 %v1169, %v1349
      %v1351 = vpop.f32.mrb[0].mxu0
      %1352 = vmatprep.mubr.f32.mxu0 0.0
      %1353 = vmatmul.mubr.f32.gmra.mrb[0].mxu0 %v1213
      %v1354 = vpop.f32.mrb[0].mxu0
      %v1355 = vadd.f32 %v1169, %v1354
      %v1356 = vpop.f32.mrb[0].mxu0
      %1357 = vmatprep.mubr.f32.mxu0 0.0
      %1358 = vmatmul.mubr.f32.gmra.mrb[0].mxu0 %v1216
      %v1359 = vpop.f32.mrb[0].mxu0
      %v1360 = vadd.f32 %v1169, %v1359
      %v1361 = vpop.f32.mrb[0].mxu0
      %1362 = vdwg.mxu0
      %v1363 = vmax.f32 %v1285, 0.0
      %v1364 = vmax.f32 %v1290, 0.0
      %v1365 = vmax.f32 %v1295, 0.0
      %v1366 = vmax.f32 %v1300, 0.0
      %v1367 = vmax.f32 %v1305, 0.0
      %v1368 = vmax.f32 %v1310, 0.0
      %v1369 = vmax.f32 %v1315, 0.0
      %v1370 = vmax.f32 %v1320, 0.0
      %v1371 = vmax.f32 %v1325, 0.0
      %v1372 = vmax.f32 %v1330, 0.0
      %v1373 = vmax.f32 %v1335, 0.0
      %v1374 = vmax.f32 %v1340, 0.0
      %v1375 = vmax.f32 %v1345, 0.0
      %v1376 = vmax.f32 %v1350, 0.0
      %v1377 = vmax.f32 %v1355, 0.0
      %v1378 = vmax.f32 %v1360, 0.0
      %s1379 = scalar_lea.vmem %s4, 32
      %v1380 = vld [vmem:[%s1379] sm:$0xff]
      %v1381 = vld [vmem:[%s1379 + $0x8] sm:$0xff]
      %v1382 = vld [vmem:[%s1379 + $0x10] sm:$0xff]
      %v1383 = vld [vmem:[%s1379 + $0x18] sm:$0xff]
      %v1384 = vld [vmem:[%s5 + $0x1] sm:$0x1]
      %v1385 = vlaneseq
      %v1386 = vshrl.u32 %v1385, 7
      %v1387 = vsub.s32 0, %v1386
      %v1388 = vrot.slane %v1384, %v1387
      %v1390 = vsel %vm670, %v1363, 0
      %v1393 = vsel %vm670, %v1364, 0
      %v1396 = vsel %vm670, %v1365, 0
      %v1399 = vsel %vm670, %v1366, 0
      %v1402 = vsel %vm670, %v1367, 0
      %v1405 = vsel %vm670, %v1368, 0
      %v1408 = vsel %vm670, %v1369, 0
      %v1411 = vsel %vm670, %v1370, 0
      %v1414 = vsel %vm670, %v1371, 0
      %v1417 = vsel %vm670, %v1372, 0
      %v1420 = vsel %vm670, %v1373, 0
      %v1423 = vsel %vm670, %v1374, 0
      %v1426 = vsel %vm670, %v1375, 0
      %v1429 = vsel %vm670, %v1376, 0
      %v1432 = vsel %vm670, %v1377, 0
      %v1435 = vsel %vm670, %v1378, 0
      %1437 = vmatprep.subr.mxu0 0.0
      %1438 = vmatpush1.msra.mxu0 %v1380
      %1439 = vmatprep.subr.mxu0 0.0
      %1440 = vmatpush1.msra.mxu0 %v1381
      %1441 = vmatprep.subr.mxu0 0.0
      %1442 = vmatpush1.msra.mxu0 %v1382
      %1443 = vmatprep.subr.mxu0 0.0
      %1444 = vmatpush1.msra.mxu0 %v1383
      %1445 = vmatprep.subr.mxu0 0.0
      %1446 = vmatpush1.msra.mxu0 0.0
      %1447 = vmatprep.subr.mxu0 0.0
      %1448 = vmatpush1.msra.mxu0 0.0
      %1449 = vmatprep.subr.mxu0 0.0
      %1450 = vmatpush1.msra.mxu0 0.0
      %1451 = vmatprep.subr.mxu0 0.0
      %1452 = vmatpush1.msra.mxu0 0.0
      %1453 = vmatprep.subr.mxu0 0.0
      %1454 = vmatpush1.msra.mxu0 0.0
      %1455 = vmatprep.subr.mxu0 0.0
      %1456 = vmatpush1.msra.mxu0 0.0
      %1457 = vmatprep.subr.mxu0 0.0
      %1458 = vmatpush1.msra.mxu0 0.0
      %1459 = vmatprep.subr.mxu0 0.0
      %1460 = vmatpush1.msra.mxu0 0.0
      %1461 = vmatprep.subr.mxu0 0.0
      %1462 = vmatpush1.msra.mxu0 0.0
      %1463 = vmatprep.subr.mxu0 0.0
      %1464 = vmatpush1.msra.mxu0 0.0
      %1465 = vmatprep.subr.mxu0 0.0
      %1466 = vmatpush1.msra.mxu0 0.0
      %1467 = vmatprep.subr.mxu0 0.0
      %1468 = vmatpush1.msra.mxu0 0.0
      %1469 = vmatprep.subr.mxu0 0.0
      %1470 = vmatpush1.msra.mxu0 0.0
      %1471 = vmatprep.subr.mxu0 0.0
      %1472 = vmatpush1.msra.mxu0 0.0
      %1473 = vmatprep.subr.mxu0 0.0
      %1474 = vmatpush1.msra.mxu0 0.0
      %1475 = vmatprep.subr.mxu0 0.0
      %1476 = vmatpush1.msra.mxu0 0.0
      %1477 = vmatprep.subr.mxu0 0.0
      %1478 = vmatpush1.msra.mxu0 0.0
      %1479 = vmatprep.subr.mxu0 0.0
      %1480 = vmatpush1.msra.mxu0 0.0
      %1481 = vmatprep.subr.mxu0 0.0
      %1482 = vmatpush1.msra.mxu0 0.0
      %1483 = vmatprep.subr.mxu0 0.0
      %1484 = vmatpush1.msra.mxu0 0.0
      %1485 = vmatprep.subr.mxu0 0.0
      %1486 = vmatpush1.msra.mxu0 0.0
      %1487 = vmatprep.subr.mxu0 0.0
      %1488 = vmatpush1.msra.mxu0 0.0
      %1489 = vmatprep.subr.mxu0 0.0
      %1490 = vmatpush1.msra.mxu0 0.0
      %1491 = vmatprep.subr.mxu0 0.0
      %1492 = vmatpush1.msra.mxu0 0.0
      %1493 = vmatprep.subr.mxu0 0.0
      %1494 = vmatpush1.msra.mxu0 0.0
      %1495 = vmatprep.subr.mxu0 0.0
      %1496 = vmatpush1.msra.mxu0 0.0
      %1497 = vmatprep.subr.mxu0 0.0
      %1498 = vmatpush1.msra.mxu0 0.0
      %1499 = vmatprep.subr.mxu0 0.0
      %1500 = vmatpush1.msra.mxu0 0.0
      %1501 = vmatprep.mubr.f32.mxu0 0.0
      %1502 = vmatmul.mubr.f32.gmra.mrb[0].mxu0 %v1390
      %v1503 = vpop.f32.mrb[0].mxu0
      %v1504 = vadd.f32 %v1388, %v1503
      %v1505 = vpop.f32.mrb[0].mxu0
      %1506 = vmatprep.mubr.f32.mxu0 0.0
      %1507 = vmatmul.mubr.f32.gmra.mrb[0].mxu0 %v1393
      %v1508 = vpop.f32.mrb[0].mxu0
      %v1509 = vadd.f32 %v1388, %v1508
      %v1510 = vpop.f32.mrb[0].mxu0
      %1511 = vmatprep.mubr.f32.mxu0 0.0
      %1512 = vmatmul.mubr.f32.gmra.mrb[0].mxu0 %v1396
      %v1513 = vpop.f32.mrb[0].mxu0
      %v1514 = vadd.f32 %v1388, %v1513
      %v1515 = vpop.f32.mrb[0].mxu0
      %1516 = vmatprep.mubr.f32.mxu0 0.0
      %1517 = vmatmul.mubr.f32.gmra.mrb[0].mxu0 %v1399
      %v1518 = vpop.f32.mrb[0].mxu0
      %v1519 = vadd.f32 %v1388, %v1518
      %v1520 = vpop.f32.mrb[0].mxu0
      %1521 = vmatprep.mubr.f32.mxu0 0.0
      %1522 = vmatmul.mubr.f32.gmra.mrb[0].mxu0 %v1402
      %v1523 = vpop.f32.mrb[0].mxu0
      %v1524 = vadd.f32 %v1388, %v1523
      %v1525 = vpop.f32.mrb[0].mxu0
      %1526 = vmatprep.mubr.f32.mxu0 0.0
      %1527 = vmatmul.mubr.f32.gmra.mrb[0].mxu0 %v1405
      %v1528 = vpop.f32.mrb[0].mxu0
      %v1529 = vadd.f32 %v1388, %v1528
      %v1530 = vpop.f32.mrb[0].mxu0
      %1531 = vmatprep.mubr.f32.mxu0 0.0
      %1532 = vmatmul.mubr.f32.gmra.mrb[0].mxu0 %v1408
      %v1533 = vpop.f32.mrb[0].mxu0
      %v1534 = vadd.f32 %v1388, %v1533
      %v1535 = vpop.f32.mrb[0].mxu0
      %1536 = vmatprep.mubr.f32.mxu0 0.0
      %1537 = vmatmul.mubr.f32.gmra.mrb[0].mxu0 %v1411
      %v1538 = vpop.f32.mrb[0].mxu0
      %v1539 = vadd.f32 %v1388, %v1538
      %v1540 = vpop.f32.mrb[0].mxu0
      %1541 = vmatprep.mubr.f32.mxu0 0.0
      %1542 = vmatmul.mubr.f32.gmra.mrb[0].mxu0 %v1414
      %v1543 = vpop.f32.mrb[0].mxu0
      %v1544 = vadd.f32 %v1388, %v1543
      %v1545 = vpop.f32.mrb[0].mxu0
      %1546 = vmatprep.mubr.f32.mxu0 0.0
      %1547 = vmatmul.mubr.f32.gmra.mrb[0].mxu0 %v1417
      %v1548 = vpop.f32.mrb[0].mxu0
      %v1549 = vadd.f32 %v1388, %v1548
      %v1550 = vpop.f32.mrb[0].mxu0
      %1551 = vmatprep.mubr.f32.mxu0 0.0
      %1552 = vmatmul.mubr.f32.gmra.mrb[0].mxu0 %v1420
      %v1553 = vpop.f32.mrb[0].mxu0
      %v1554 = vadd.f32 %v1388, %v1553
      %v1555 = vpop.f32.mrb[0].mxu0
      %1556 = vmatprep.mubr.f32.mxu0 0.0
      %1557 = vmatmul.mubr.f32.gmra.mrb[0].mxu0 %v1423
      %v1558 = vpop.f32.mrb[0].mxu0
      %v1559 = vadd.f32 %v1388, %v1558
      %v1560 = vpop.f32.mrb[0].mxu0
      %1561 = vmatprep.mubr.f32.mxu0 0.0
      %1562 = vmatmul.mubr.f32.gmra.mrb[0].mxu0 %v1426
      %v1563 = vpop.f32.mrb[0].mxu0
      %v1564 = vadd.f32 %v1388, %v1563
      %v1565 = vpop.f32.mrb[0].mxu0
      %1566 = vmatprep.mubr.f32.mxu0 0.0
      %1567 = vmatmul.mubr.f32.gmra.mrb[0].mxu0 %v1429
      %v1568 = vpop.f32.mrb[0].mxu0
      %v1569 = vadd.f32 %v1388, %v1568
      %v1570 = vpop.f32.mrb[0].mxu0
      %1571 = vmatprep.mubr.f32.mxu0 0.0
      %1572 = vmatmul.mubr.f32.gmra.mrb[0].mxu0 %v1432
      %v1573 = vpop.f32.mrb[0].mxu0
      %v1574 = vadd.f32 %v1388, %v1573
      %v1575 = vpop.f32.mrb[0].mxu0
      %1576 = vmatprep.mubr.f32.mxu0 0.0
      %1577 = vmatmul.mubr.f32.gmra.mrb[0].mxu0 %v1435
      %v1578 = vpop.f32.mrb[0].mxu0
      %v1579 = vadd.f32 %v1388, %v1578
      %v1580 = vpop.f32.mrb[0].mxu0
      %1581 = vdwg.mxu0
      %s1582 = scalar_lea.vmem %s6, 32
      %v1583 = vld [vmem:[%s1582] sm:$0xff]
      %v1584 = vld [vmem:[%s1582 + $0x8] sm:$0xff]
      %v1585 = vld [vmem:[%s1582 + $0x10] sm:$0xff]
      %v1586 = vld [vmem:[%s1582 + $0x18] sm:$0xff]
      %v1587 = vld [vmem:[%s7 + $0x1] sm:$0x1]
      %v1588 = vlaneseq
      %v1589 = vshrl.u32 %v1588, 7
      %v1590 = vsub.s32 0, %v1589
      %v1591 = vrot.slane %v1587, %v1590
      %1592 = vmatprep.subr.mxu0 0.0
      %1593 = vmatpush1.msra.mxu0 %v1583
      %1594 = vmatprep.subr.mxu0 0.0
      %1595 = vmatpush1.msra.mxu0 %v1584
      %1596 = vmatprep.subr.mxu0 0.0
      %1597 = vmatpush1.msra.mxu0 %v1585
      %1598 = vmatprep.subr.mxu0 0.0
      %1599 = vmatpush1.msra.mxu0 %v1586
      %1600 = vmatprep.subr.mxu0 0.0
      %1601 = vmatpush1.msra.mxu0 0.0
      %1602 = vmatprep.subr.mxu0 0.0
      %1603 = vmatpush1.msra.mxu0 0.0
      %1604 = vmatprep.subr.mxu0 0.0
      %1605 = vmatpush1.msra.mxu0 0.0
      %1606 = vmatprep.subr.mxu0 0.0
      %1607 = vmatpush1.msra.mxu0 0.0
      %1608 = vmatprep.subr.mxu0 0.0
      %1609 = vmatpush1.msra.mxu0 0.0
      %1610 = vmatprep.subr.mxu0 0.0
      %1611 = vmatpush1.msra.mxu0 0.0
      %1612 = vmatprep.subr.mxu0 0.0
      %1613 = vmatpush1.msra.mxu0 0.0
      %1614 = vmatprep.subr.mxu0 0.0
      %1615 = vmatpush1.msra.mxu0 0.0
      %1616 = vmatprep.subr.mxu0 0.0
      %1617 = vmatpush1.msra.mxu0 0.0
      %1618 = vmatprep.subr.mxu0 0.0
      %1619 = vmatpush1.msra.mxu0 0.0
      %1620 = vmatprep.subr.mxu0 0.0
      %1621 = vmatpush1.msra.mxu0 0.0
      %1622 = vmatprep.subr.mxu0 0.0
      %1623 = vmatpush1.msra.mxu0 0.0
      %1624 = vmatprep.subr.mxu0 0.0
      %1625 = vmatpush1.msra.mxu0 0.0
      %1626 = vmatprep.subr.mxu0 0.0
      %1627 = vmatpush1.msra.mxu0 0.0
      %1628 = vmatprep.subr.mxu0 0.0
      %1629 = vmatpush1.msra.mxu0 0.0
      %1630 = vmatprep.subr.mxu0 0.0
      %1631 = vmatpush1.msra.mxu0 0.0
      %1632 = vmatprep.subr.mxu0 0.0
      %1633 = vmatpush1.msra.mxu0 0.0
      %1634 = vmatprep.subr.mxu0 0.0
      %1635 = vmatpush1.msra.mxu0 0.0
      %1636 = vmatprep.subr.mxu0 0.0
      %1637 = vmatpush1.msra.mxu0 0.0
      %1638 = vmatprep.subr.mxu0 0.0
      %1639 = vmatpush1.msra.mxu0 0.0
      %1640 = vmatprep.subr.mxu0 0.0
      %1641 = vmatpush1.msra.mxu0 0.0
      %1642 = vmatprep.subr.mxu0 0.0
      %1643 = vmatpush1.msra.mxu0 0.0
      %1644 = vmatprep.subr.mxu0 0.0
      %1645 = vmatpush1.msra.mxu0 0.0
      %1646 = vmatprep.subr.mxu0 0.0
      %1647 = vmatpush1.msra.mxu0 0.0
      %1648 = vmatprep.subr.mxu0 0.0
      %1649 = vmatpush1.msra.mxu0 0.0
      %1650 = vmatprep.subr.mxu0 0.0
      %1651 = vmatpush1.msra.mxu0 0.0
      %1652 = vmatprep.subr.mxu0 0.0
      %1653 = vmatpush1.msra.mxu0 0.0
      %1654 = vmatprep.subr.mxu0 0.0
      %1655 = vmatpush1.msra.mxu0 0.0
      %1656 = vmatprep.mubr.f32.mxu0 0.0
      %1657 = vmatmul.mubr.f32.gmra.mrb[0].mxu0 %v1390
      %v1658 = vpop.f32.mrb[0].mxu0
      %v1659 = vadd.f32 %v1591, %v1658
      %v1660 = vpop.f32.mrb[0].mxu0
      %1661 = vmatprep.mubr.f32.mxu0 0.0
      %1662 = vmatmul.mubr.f32.gmra.mrb[0].mxu0 %v1393
      %v1663 = vpop.f32.mrb[0].mxu0
      %v1664 = vadd.f32 %v1591, %v1663
      %v1665 = vpop.f32.mrb[0].mxu0
      %1666 = vmatprep.mubr.f32.mxu0 0.0
      %1667 = vmatmul.mubr.f32.gmra.mrb[0].mxu0 %v1396
      %v1668 = vpop.f32.mrb[0].mxu0
      %v1669 = vadd.f32 %v1591, %v1668
      %v1670 = vpop.f32.mrb[0].mxu0
      %1671 = vmatprep.mubr.f32.mxu0 0.0
      %1672 = vmatmul.mubr.f32.gmra.mrb[0].mxu0 %v1399
      %v1673 = vpop.f32.mrb[0].mxu0
      %v1674 = vadd.f32 %v1591, %v1673
      %v1675 = vpop.f32.mrb[0].mxu0
      %1676 = vmatprep.mubr.f32.mxu0 0.0
      %1677 = vmatmul.mubr.f32.gmra.mrb[0].mxu0 %v1402
      %v1678 = vpop.f32.mrb[0].mxu0
      %v1679 = vadd.f32 %v1591, %v1678
      %v1680 = vpop.f32.mrb[0].mxu0
      %1681 = vmatprep.mubr.f32.mxu0 0.0
      %1682 = vmatmul.mubr.f32.gmra.mrb[0].mxu0 %v1405
      %v1683 = vpop.f32.mrb[0].mxu0
      %v1684 = vadd.f32 %v1591, %v1683
      %v1685 = vpop.f32.mrb[0].mxu0
      %1686 = vmatprep.mubr.f32.mxu0 0.0
      %1687 = vmatmul.mubr.f32.gmra.mrb[0].mxu0 %v1408
      %v1688 = vpop.f32.mrb[0].mxu0
      %v1689 = vadd.f32 %v1591, %v1688
      %v1690 = vpop.f32.mrb[0].mxu0
      %1691 = vmatprep.mubr.f32.mxu0 0.0
      %1692 = vmatmul.mubr.f32.gmra.mrb[0].mxu0 %v1411
      %v1693 = vpop.f32.mrb[0].mxu0
      %v1694 = vadd.f32 %v1591, %v1693
      %v1695 = vpop.f32.mrb[0].mxu0
      %1696 = vmatprep.mubr.f32.mxu0 0.0
      %1697 = vmatmul.mubr.f32.gmra.mrb[0].mxu0 %v1414
      %v1698 = vpop.f32.mrb[0].mxu0
      %v1699 = vadd.f32 %v1591, %v1698
      %v1700 = vpop.f32.mrb[0].mxu0
      %1701 = vmatprep.mubr.f32.mxu0 0.0
      %1702 = vmatmul.mubr.f32.gmra.mrb[0].mxu0 %v1417
      %v1703 = vpop.f32.mrb[0].mxu0
      %v1704 = vadd.f32 %v1591, %v1703
      %v1705 = vpop.f32.mrb[0].mxu0
      %1706 = vmatprep.mubr.f32.mxu0 0.0
      %1707 = vmatmul.mubr.f32.gmra.mrb[0].mxu0 %v1420
      %v1708 = vpop.f32.mrb[0].mxu0
      %v1709 = vadd.f32 %v1591, %v1708
      %v1710 = vpop.f32.mrb[0].mxu0
      %1711 = vmatprep.mubr.f32.mxu0 0.0
      %1712 = vmatmul.mubr.f32.gmra.mrb[0].mxu0 %v1423
      %v1713 = vpop.f32.mrb[0].mxu0
      %v1714 = vadd.f32 %v1591, %v1713
      %v1715 = vpop.f32.mrb[0].mxu0
      %1716 = vmatprep.mubr.f32.mxu0 0.0
      %1717 = vmatmul.mubr.f32.gmra.mrb[0].mxu0 %v1426
      %v1718 = vpop.f32.mrb[0].mxu0
      %v1719 = vadd.f32 %v1591, %v1718
      %v1720 = vpop.f32.mrb[0].mxu0
      %1721 = vmatprep.mubr.f32.mxu0 0.0
      %1722 = vmatmul.mubr.f32.gmra.mrb[0].mxu0 %v1429
      %v1723 = vpop.f32.mrb[0].mxu0
      %v1724 = vadd.f32 %v1591, %v1723
      %v1725 = vpop.f32.mrb[0].mxu0
      %1726 = vmatprep.mubr.f32.mxu0 0.0
      %1727 = vmatmul.mubr.f32.gmra.mrb[0].mxu0 %v1432
      %v1728 = vpop.f32.mrb[0].mxu0
      %v1729 = vadd.f32 %v1591, %v1728
      %v1730 = vpop.f32.mrb[0].mxu0
      %1731 = vmatprep.mubr.f32.mxu0 0.0
      %1732 = vmatmul.mubr.f32.gmra.mrb[0].mxu0 %v1435
      %v1733 = vpop.f32.mrb[0].mxu0
      %v1734 = vadd.f32 %v1591, %v1733
      %v1735 = vpop.f32.mrb[0].mxu0
      %1736 = vdwg.mxu0
      %v1737 = vtanh.pop %v1504
      %v1738 = vtanh.pop %v1509
      %v1739 = vtanh.pop %v1514
      %v1740 = vtanh.pop %v1519
      %v1741 = vtanh.pop %v1524
      %v1742 = vtanh.pop %v1529
      %v1743 = vtanh.pop %v1534
      %v1744 = vtanh.pop %v1539
      %v1745 = vtanh.pop %v1544
      %v1746 = vtanh.pop %v1549
      %v1747 = vtanh.pop %v1554
      %v1748 = vtanh.pop %v1559
      %v1749 = vtanh.pop %v1564
      %v1750 = vtanh.pop %v1569
      %v1751 = vtanh.pop %v1574
      %v1752 = vtanh.pop %v1579
      %v1753 = vmul.f32 %v1737, 1.442695
      %v1754 = vpow.pop %v1753
      %v1755 = vmul.f32 %v1738, 1.442695
      %v1756 = vpow.pop %v1755
      %v1757 = vmul.f32 %v1739, 1.442695
      %v1758 = vpow.pop %v1757
      %v1759 = vmul.f32 %v1740, 1.442695
      %v1760 = vpow.pop %v1759
      %v1761 = vmul.f32 %v1741, 1.442695
      %v1762 = vpow.pop %v1761
      %v1763 = vmul.f32 %v1742, 1.442695
      %v1764 = vpow.pop %v1763
      %v1765 = vmul.f32 %v1743, 1.442695
      %v1766 = vpow.pop %v1765
      %v1767 = vmul.f32 %v1744, 1.442695
      %v1768 = vpow.pop %v1767
      %v1769 = vmul.f32 %v1745, 1.442695
      %v1770 = vpow.pop %v1769
      %v1771 = vmul.f32 %v1746, 1.442695
      %v1772 = vpow.pop %v1771
      %v1773 = vmul.f32 %v1747, 1.442695
      %v1774 = vpow.pop %v1773
      %v1775 = vmul.f32 %v1748, 1.442695
      %v1776 = vpow.pop %v1775
      %v1777 = vmul.f32 %v1749, 1.442695
      %v1778 = vpow.pop %v1777
      %v1779 = vmul.f32 %v1750, 1.442695
      %v1780 = vpow.pop %v1779
      %v1781 = vmul.f32 %v1751, 1.442695
      %v1782 = vpow.pop %v1781
      %v1783 = vmul.f32 %v1752, 1.442695
      %v1784 = vpow.pop %v1783
      %v1785 = vmul.f32 %v412, %v1754
      %v1786 = vmul.f32 %v413, %v1756
      %v1787 = vmul.f32 %v414, %v1758
      %v1788 = vmul.f32 %v415, %v1760
      %v1789 = vmul.f32 %v416, %v1762
      %v1790 = vmul.f32 %v417, %v1764
      %v1791 = vmul.f32 %v418, %v1766
      %v1792 = vmul.f32 %v419, %v1768
      %v1793 = vmul.f32 %v420, %v1770
      %v1794 = vmul.f32 %v421, %v1772
      %v1795 = vmul.f32 %v422, %v1774
      %v1796 = vmul.f32 %v423, %v1776
      %v1797 = vmul.f32 %v424, %v1778
      %v1798 = vmul.f32 %v425, %v1780
      %v1799 = vmul.f32 %v426, %v1782
      %v1800 = vmul.f32 %v427, %v1784
      %v1801 = vadd.f32 %v1785, %v1659
      %v1802 = vadd.f32 %v1786, %v1664
      %v1803 = vadd.f32 %v1787, %v1669
      %v1804 = vadd.f32 %v1788, %v1674
      %v1805 = vadd.f32 %v1789, %v1679
      %v1806 = vadd.f32 %v1790, %v1684
      %v1807 = vadd.f32 %v1791, %v1689
      %v1808 = vadd.f32 %v1792, %v1694
      %v1809 = vadd.f32 %v1793, %v1699
      %v1810 = vadd.f32 %v1794, %v1704
      %v1811 = vadd.f32 %v1795, %v1709
      %v1812 = vadd.f32 %v1796, %v1714
      %v1813 = vadd.f32 %v1797, %v1719
      %v1814 = vadd.f32 %v1798, %v1724
      %v1815 = vadd.f32 %v1799, %v1729
      %v1816 = vadd.f32 %v1800, %v1734
      %v1817 = vsel %vm451, %v1737, 0.0
      %1818 = vadd.xlane.f32.xlu0 %v1817
      %v1819 = vpop.xlane.xlu0 %1818
      %v1820 = vsel %vm451, %v1738, 0.0
      %1821 = vadd.xlane.f32.xlu0 %v1820
      %v1822 = vpop.xlane.xlu0 %1821
      %v1823 = vsel %vm451, %v1739, 0.0
      %1824 = vadd.xlane.f32.xlu0 %v1823
      %v1825 = vpop.xlane.xlu0 %1824
      %v1826 = vsel %vm451, %v1740, 0.0
      %1827 = vadd.xlane.f32.xlu0 %v1826
      %v1828 = vpop.xlane.xlu0 %1827
      %v1829 = vsel %vm451, %v1741, 0.0
      %1830 = vadd.xlane.f32.xlu0 %v1829
      %v1831 = vpop.xlane.xlu0 %1830
      %v1832 = vsel %vm451, %v1742, 0.0
      %1833 = vadd.xlane.f32.xlu0 %v1832
      %v1834 = vpop.xlane.xlu0 %1833
      %v1835 = vsel %vm451, %v1743, 0.0
      %1836 = vadd.xlane.f32.xlu0 %v1835
      %v1837 = vpop.xlane.xlu0 %1836
      %v1838 = vsel %vm451, %v1744, 0.0
      %1839 = vadd.xlane.f32.xlu0 %v1838
      %v1840 = vpop.xlane.xlu0 %1839
      %v1841 = vsel %vm451, %v1745, 0.0
      %1842 = vadd.xlane.f32.xlu0 %v1841
      %v1843 = vpop.xlane.xlu0 %1842
      %v1844 = vsel %vm451, %v1746, 0.0
      %1845 = vadd.xlane.f32.xlu0 %v1844
      %v1846 = vpop.xlane.xlu0 %1845
      %v1847 = vsel %vm451, %v1747, 0.0
      %1848 = vadd.xlane.f32.xlu0 %v1847
      %v1849 = vpop.xlane.xlu0 %1848
      %v1850 = vsel %vm451, %v1748, 0.0
      %1851 = vadd.xlane.f32.xlu0 %v1850
      %v1852 = vpop.xlane.xlu0 %1851
      %v1853 = vsel %vm451, %v1749, 0.0
      %1854 = vadd.xlane.f32.xlu0 %v1853
      %v1855 = vpop.xlane.xlu0 %1854
      %v1856 = vsel %vm451, %v1750, 0.0
      %1857 = vadd.xlane.f32.xlu0 %v1856
      %v1858 = vpop.xlane.xlu0 %1857
      %v1859 = vsel %vm451, %v1751, 0.0
      %1860 = vadd.xlane.f32.xlu0 %v1859
      %v1861 = vpop.xlane.xlu0 %1860
      %v1862 = vsel %vm451, %v1752, 0.0
      %1863 = vadd.xlane.f32.xlu0 %v1862
      %v1864 = vpop.xlane.xlu0 %1863
      %v1865 = vadd.f32 %v1146, %v1819
      %v1866 = vadd.f32 %v1147, %v1822
      %v1867 = vadd.f32 %v1148, %v1825
      %v1868 = vadd.f32 %v1149, %v1828
      %v1869 = vadd.f32 %v1150, %v1831
      %v1870 = vadd.f32 %v1151, %v1834
      %v1871 = vadd.f32 %v1152, %v1837
      %v1872 = vadd.f32 %v1153, %v1840
      %v1873 = vadd.f32 %v1154, %v1843
      %v1874 = vadd.f32 %v1155, %v1846
      %v1875 = vadd.f32 %v1156, %v1849
      %v1876 = vadd.f32 %v1157, %v1852
      %v1877 = vadd.f32 %v1158, %v1855
      %v1878 = vadd.f32 %v1159, %v1858
      %v1879 = vadd.f32 %v1160, %v1861
      %v1880 = vadd.f32 %v1161, %v1864
      %s1881 = scalar_lea.vmem %s2, 32
      %v1882 = vld [vmem:[%s1881] sm:$0xff]
      %v1883 = vld [vmem:[%s1881 + $0x8] sm:$0xff]
      %v1884 = vld [vmem:[%s3 + $0x2] sm:$0x1]
      %v1885 = vlaneseq
      %v1886 = vshrl.u32 %v1885, 7
      %v1887 = vsub.s32 0, %v1886
      %v1888 = vrot.slane %v1884, %v1887
      %v1890 = vsel %vm451, %v1801, 0
      %v1893 = vsel %vm451, %v1802, 0
      %v1896 = vsel %vm451, %v1803, 0
      %v1899 = vsel %vm451, %v1804, 0
      %v1902 = vsel %vm451, %v1805, 0
      %v1905 = vsel %vm451, %v1806, 0
      %v1908 = vsel %vm451, %v1807, 0
      %v1911 = vsel %vm451, %v1808, 0
      %v1914 = vsel %vm451, %v1809, 0
      %v1917 = vsel %vm451, %v1810, 0
      %v1920 = vsel %vm451, %v1811, 0
      %v1923 = vsel %vm451, %v1812, 0
      %v1926 = vsel %vm451, %v1813, 0
      %v1929 = vsel %vm451, %v1814, 0
      %v1932 = vsel %vm451, %v1815, 0
      %v1935 = vsel %vm451, %v1816, 0
      %1937 = vmatprep.subr.mxu0 0.0
      %1938 = vmatpush1.msra.mxu0 %v1882
      %1939 = vmatprep.subr.mxu0 0.0
      %1940 = vmatpush1.msra.mxu0 %v1883
      %1941 = vmatprep.subr.mxu0 0.0
      %1942 = vmatpush1.msra.mxu0 0.0
      %1943 = vmatprep.subr.mxu0 0.0
      %1944 = vmatpush1.msra.mxu0 0.0
      %1945 = vmatprep.subr.mxu0 0.0
      %1946 = vmatpush1.msra.mxu0 0.0
      %1947 = vmatprep.subr.mxu0 0.0
      %1948 = vmatpush1.msra.mxu0 0.0
      %1949 = vmatprep.subr.mxu0 0.0
      %1950 = vmatpush1.msra.mxu0 0.0
      %1951 = vmatprep.subr.mxu0 0.0
      %1952 = vmatpush1.msra.mxu0 0.0
      %1953 = vmatprep.subr.mxu0 0.0
      %1954 = vmatpush1.msra.mxu0 0.0
      %1955 = vmatprep.subr.mxu0 0.0
      %1956 = vmatpush1.msra.mxu0 0.0
      %1957 = vmatprep.subr.mxu0 0.0
      %1958 = vmatpush1.msra.mxu0 0.0
      %1959 = vmatprep.subr.mxu0 0.0
      %1960 = vmatpush1.msra.mxu0 0.0
      %1961 = vmatprep.subr.mxu0 0.0
      %1962 = vmatpush1.msra.mxu0 0.0
      %1963 = vmatprep.subr.mxu0 0.0
      %1964 = vmatpush1.msra.mxu0 0.0
      %1965 = vmatprep.subr.mxu0 0.0
      %1966 = vmatpush1.msra.mxu0 0.0
      %1967 = vmatprep.subr.mxu0 0.0
      %1968 = vmatpush1.msra.mxu0 0.0
      %1969 = vmatprep.subr.mxu0 0.0
      %1970 = vmatpush1.msra.mxu0 0.0
      %1971 = vmatprep.subr.mxu0 0.0
      %1972 = vmatpush1.msra.mxu0 0.0
      %1973 = vmatprep.subr.mxu0 0.0
      %1974 = vmatpush1.msra.mxu0 0.0
      %1975 = vmatprep.subr.mxu0 0.0
      %1976 = vmatpush1.msra.mxu0 0.0
      %1977 = vmatprep.subr.mxu0 0.0
      %1978 = vmatpush1.msra.mxu0 0.0
      %1979 = vmatprep.subr.mxu0 0.0
      %1980 = vmatpush1.msra.mxu0 0.0
      %1981 = vmatprep.subr.mxu0 0.0
      %1982 = vmatpush1.msra.mxu0 0.0
      %1983 = vmatprep.subr.mxu0 0.0
      %1984 = vmatpush1.msra.mxu0 0.0
      %1985 = vmatprep.subr.mxu0 0.0
      %1986 = vmatpush1.msra.mxu0 0.0
      %1987 = vmatprep.subr.mxu0 0.0
      %1988 = vmatpush1.msra.mxu0 0.0
      %1989 = vmatprep.subr.mxu0 0.0
      %1990 = vmatpush1.msra.mxu0 0.0
      %1991 = vmatprep.subr.mxu0 0.0
      %1992 = vmatpush1.msra.mxu0 0.0
      %1993 = vmatprep.subr.mxu0 0.0
      %1994 = vmatpush1.msra.mxu0 0.0
      %1995 = vmatprep.subr.mxu0 0.0
      %1996 = vmatpush1.msra.mxu0 0.0
      %1997 = vmatprep.subr.mxu0 0.0
      %1998 = vmatpush1.msra.mxu0 0.0
      %1999 = vmatprep.subr.mxu0 0.0
      %2000 = vmatpush1.msra.mxu0 0.0
      %2001 = vmatprep.mubr.f32.mxu0 0.0
      %2002 = vmatmul.mubr.f32.gmra.mrb[0].mxu0 %v1890
      %v2003 = vpop.f32.mrb[0].mxu0
      %v2004 = vadd.f32 %v1888, %v2003
      %v2005 = vpop.f32.mrb[0].mxu0
      %2006 = vmatprep.mubr.f32.mxu0 0.0
      %2007 = vmatmul.mubr.f32.gmra.mrb[0].mxu0 %v1893
      %v2008 = vpop.f32.mrb[0].mxu0
      %v2009 = vadd.f32 %v1888, %v2008
      %v2010 = vpop.f32.mrb[0].mxu0
      %2011 = vmatprep.mubr.f32.mxu0 0.0
      %2012 = vmatmul.mubr.f32.gmra.mrb[0].mxu0 %v1896
      %v2013 = vpop.f32.mrb[0].mxu0
      %v2014 = vadd.f32 %v1888, %v2013
      %v2015 = vpop.f32.mrb[0].mxu0
      %2016 = vmatprep.mubr.f32.mxu0 0.0
      %2017 = vmatmul.mubr.f32.gmra.mrb[0].mxu0 %v1899
      %v2018 = vpop.f32.mrb[0].mxu0
      %v2019 = vadd.f32 %v1888, %v2018
      %v2020 = vpop.f32.mrb[0].mxu0
      %2021 = vmatprep.mubr.f32.mxu0 0.0
      %2022 = vmatmul.mubr.f32.gmra.mrb[0].mxu0 %v1902
      %v2023 = vpop.f32.mrb[0].mxu0
      %v2024 = vadd.f32 %v1888, %v2023
      %v2025 = vpop.f32.mrb[0].mxu0
      %2026 = vmatprep.mubr.f32.mxu0 0.0
      %2027 = vmatmul.mubr.f32.gmra.mrb[0].mxu0 %v1905
      %v2028 = vpop.f32.mrb[0].mxu0
      %v2029 = vadd.f32 %v1888, %v2028
      %v2030 = vpop.f32.mrb[0].mxu0
      %2031 = vmatprep.mubr.f32.mxu0 0.0
      %2032 = vmatmul.mubr.f32.gmra.mrb[0].mxu0 %v1908
      %v2033 = vpop.f32.mrb[0].mxu0
      %v2034 = vadd.f32 %v1888, %v2033
      %v2035 = vpop.f32.mrb[0].mxu0
      %2036 = vmatprep.mubr.f32.mxu0 0.0
      %2037 = vmatmul.mubr.f32.gmra.mrb[0].mxu0 %v1911
      %v2038 = vpop.f32.mrb[0].mxu0
      %v2039 = vadd.f32 %v1888, %v2038
      %v2040 = vpop.f32.mrb[0].mxu0
      %2041 = vmatprep.mubr.f32.mxu0 0.0
      %2042 = vmatmul.mubr.f32.gmra.mrb[0].mxu0 %v1914
      %v2043 = vpop.f32.mrb[0].mxu0
      %v2044 = vadd.f32 %v1888, %v2043
      %v2045 = vpop.f32.mrb[0].mxu0
      %2046 = vmatprep.mubr.f32.mxu0 0.0
      %2047 = vmatmul.mubr.f32.gmra.mrb[0].mxu0 %v1917
      %v2048 = vpop.f32.mrb[0].mxu0
      %v2049 = vadd.f32 %v1888, %v2048
      %v2050 = vpop.f32.mrb[0].mxu0
      %2051 = vmatprep.mubr.f32.mxu0 0.0
      %2052 = vmatmul.mubr.f32.gmra.mrb[0].mxu0 %v1920
      %v2053 = vpop.f32.mrb[0].mxu0
      %v2054 = vadd.f32 %v1888, %v2053
      %v2055 = vpop.f32.mrb[0].mxu0
      %2056 = vmatprep.mubr.f32.mxu0 0.0
      %2057 = vmatmul.mubr.f32.gmra.mrb[0].mxu0 %v1923
      %v2058 = vpop.f32.mrb[0].mxu0
      %v2059 = vadd.f32 %v1888, %v2058
      %v2060 = vpop.f32.mrb[0].mxu0
      %2061 = vmatprep.mubr.f32.mxu0 0.0
      %2062 = vmatmul.mubr.f32.gmra.mrb[0].mxu0 %v1926
      %v2063 = vpop.f32.mrb[0].mxu0
      %v2064 = vadd.f32 %v1888, %v2063
      %v2065 = vpop.f32.mrb[0].mxu0
      %2066 = vmatprep.mubr.f32.mxu0 0.0
      %2067 = vmatmul.mubr.f32.gmra.mrb[0].mxu0 %v1929
      %v2068 = vpop.f32.mrb[0].mxu0
      %v2069 = vadd.f32 %v1888, %v2068
      %v2070 = vpop.f32.mrb[0].mxu0
      %2071 = vmatprep.mubr.f32.mxu0 0.0
      %2072 = vmatmul.mubr.f32.gmra.mrb[0].mxu0 %v1932
      %v2073 = vpop.f32.mrb[0].mxu0
      %v2074 = vadd.f32 %v1888, %v2073
      %v2075 = vpop.f32.mrb[0].mxu0
      %2076 = vmatprep.mubr.f32.mxu0 0.0
      %2077 = vmatmul.mubr.f32.gmra.mrb[0].mxu0 %v1935
      %v2078 = vpop.f32.mrb[0].mxu0
      %v2079 = vadd.f32 %v1888, %v2078
      %v2080 = vpop.f32.mrb[0].mxu0
      %2081 = vdwg.mxu0
      %v2082 = vmax.f32 %v2004, 0.0
      %v2083 = vmax.f32 %v2009, 0.0
      %v2084 = vmax.f32 %v2014, 0.0
      %v2085 = vmax.f32 %v2019, 0.0
      %v2086 = vmax.f32 %v2024, 0.0
      %v2087 = vmax.f32 %v2029, 0.0
      %v2088 = vmax.f32 %v2034, 0.0
      %v2089 = vmax.f32 %v2039, 0.0
      %v2090 = vmax.f32 %v2044, 0.0
      %v2091 = vmax.f32 %v2049, 0.0
      %v2092 = vmax.f32 %v2054, 0.0
      %v2093 = vmax.f32 %v2059, 0.0
      %v2094 = vmax.f32 %v2064, 0.0
      %v2095 = vmax.f32 %v2069, 0.0
      %v2096 = vmax.f32 %v2074, 0.0
      %v2097 = vmax.f32 %v2079, 0.0
      %s2098 = scalar_lea.vmem %s4, 64
      %v2099 = vld [vmem:[%s2098] sm:$0xff]
      %v2100 = vld [vmem:[%s2098 + $0x8] sm:$0xff]
      %v2101 = vld [vmem:[%s2098 + $0x10] sm:$0xff]
      %v2102 = vld [vmem:[%s2098 + $0x18] sm:$0xff]
      %v2103 = vld [vmem:[%s5 + $0x2] sm:$0x1]
      %v2104 = vlaneseq
      %v2105 = vshrl.u32 %v2104, 7
      %v2106 = vsub.s32 0, %v2105
      %v2107 = vrot.slane %v2103, %v2106
      %v2109 = vsel %vm670, %v2082, 0
      %v2112 = vsel %vm670, %v2083, 0
      %v2115 = vsel %vm670, %v2084, 0
      %v2118 = vsel %vm670, %v2085, 0
      %v2121 = vsel %vm670, %v2086, 0
      %v2124 = vsel %vm670, %v2087, 0
      %v2127 = vsel %vm670, %v2088, 0
      %v2130 = vsel %vm670, %v2089, 0
      %v2133 = vsel %vm670, %v2090, 0
      %v2136 = vsel %vm670, %v2091, 0
      %v2139 = vsel %vm670, %v2092, 0
      %v2142 = vsel %vm670, %v2093, 0
      %v2145 = vsel %vm670, %v2094, 0
      %v2148 = vsel %vm670, %v2095, 0
      %v2151 = vsel %vm670, %v2096, 0
      %v2154 = vsel %vm670, %v2097, 0
      %2156 = vmatprep.subr.mxu0 0.0
      %2157 = vmatpush1.msra.mxu0 %v2099
      %2158 = vmatprep.subr.mxu0 0.0
      %2159 = vmatpush1.msra.mxu0 %v2100
      %2160 = vmatprep.subr.mxu0 0.0
      %2161 = vmatpush1.msra.mxu0 %v2101
      %2162 = vmatprep.subr.mxu0 0.0
      %2163 = vmatpush1.msra.mxu0 %v2102
      %2164 = vmatprep.subr.mxu0 0.0
      %2165 = vmatpush1.msra.mxu0 0.0
      %2166 = vmatprep.subr.mxu0 0.0
      %2167 = vmatpush1.msra.mxu0 0.0
      %2168 = vmatprep.subr.mxu0 0.0
      %2169 = vmatpush1.msra.mxu0 0.0
      %2170 = vmatprep.subr.mxu0 0.0
      %2171 = vmatpush1.msra.mxu0 0.0
      %2172 = vmatprep.subr.mxu0 0.0
      %2173 = vmatpush1.msra.mxu0 0.0
      %2174 = vmatprep.subr.mxu0 0.0
      %2175 = vmatpush1.msra.mxu0 0.0
      %2176 = vmatprep.subr.mxu0 0.0
      %2177 = vmatpush1.msra.mxu0 0.0
      %2178 = vmatprep.subr.mxu0 0.0
      %2179 = vmatpush1.msra.mxu0 0.0
      %2180 = vmatprep.subr.mxu0 0.0
      %2181 = vmatpush1.msra.mxu0 0.0
      %2182 = vmatprep.subr.mxu0 0.0
      %2183 = vmatpush1.msra.mxu0 0.0
      %2184 = vmatprep.subr.mxu0 0.0
      %2185 = vmatpush1.msra.mxu0 0.0
      %2186 = vmatprep.subr.mxu0 0.0
      %2187 = vmatpush1.msra.mxu0 0.0
      %2188 = vmatprep.subr.mxu0 0.0
      %2189 = vmatpush1.msra.mxu0 0.0
      %2190 = vmatprep.subr.mxu0 0.0
      %2191 = vmatpush1.msra.mxu0 0.0
      %2192 = vmatprep.subr.mxu0 0.0
      %2193 = vmatpush1.msra.mxu0 0.0
      %2194 = vmatprep.subr.mxu0 0.0
      %2195 = vmatpush1.msra.mxu0 0.0
      %2196 = vmatprep.subr.mxu0 0.0
      %2197 = vmatpush1.msra.mxu0 0.0
      %2198 = vmatprep.subr.mxu0 0.0
      %2199 = vmatpush1.msra.mxu0 0.0
      %2200 = vmatprep.subr.mxu0 0.0
      %2201 = vmatpush1.msra.mxu0 0.0
      %2202 = vmatprep.subr.mxu0 0.0
      %2203 = vmatpush1.msra.mxu0 0.0
      %2204 = vmatprep.subr.mxu0 0.0
      %2205 = vmatpush1.msra.mxu0 0.0
      %2206 = vmatprep.subr.mxu0 0.0
      %2207 = vmatpush1.msra.mxu0 0.0
      %2208 = vmatprep.subr.mxu0 0.0
      %2209 = vmatpush1.msra.mxu0 0.0
      %2210 = vmatprep.subr.mxu0 0.0
      %2211 = vmatpush1.msra.mxu0 0.0
      %2212 = vmatprep.subr.mxu0 0.0
      %2213 = vmatpush1.msra.mxu0 0.0
      %2214 = vmatprep.subr.mxu0 0.0
      %2215 = vmatpush1.msra.mxu0 0.0
      %2216 = vmatprep.subr.mxu0 0.0
      %2217 = vmatpush1.msra.mxu0 0.0
      %2218 = vmatprep.subr.mxu0 0.0
      %2219 = vmatpush1.msra.mxu0 0.0
      %2220 = vmatprep.mubr.f32.mxu0 0.0
      %2221 = vmatmul.mubr.f32.gmra.mrb[0].mxu0 %v2109
      %v2222 = vpop.f32.mrb[0].mxu0
      %v2223 = vadd.f32 %v2107, %v2222
      %v2224 = vpop.f32.mrb[0].mxu0
      %2225 = vmatprep.mubr.f32.mxu0 0.0
      %2226 = vmatmul.mubr.f32.gmra.mrb[0].mxu0 %v2112
      %v2227 = vpop.f32.mrb[0].mxu0
      %v2228 = vadd.f32 %v2107, %v2227
      %v2229 = vpop.f32.mrb[0].mxu0
      %2230 = vmatprep.mubr.f32.mxu0 0.0
      %2231 = vmatmul.mubr.f32.gmra.mrb[0].mxu0 %v2115
      %v2232 = vpop.f32.mrb[0].mxu0
      %v2233 = vadd.f32 %v2107, %v2232
      %v2234 = vpop.f32.mrb[0].mxu0
      %2235 = vmatprep.mubr.f32.mxu0 0.0
      %2236 = vmatmul.mubr.f32.gmra.mrb[0].mxu0 %v2118
      %v2237 = vpop.f32.mrb[0].mxu0
      %v2238 = vadd.f32 %v2107, %v2237
      %v2239 = vpop.f32.mrb[0].mxu0
      %2240 = vmatprep.mubr.f32.mxu0 0.0
      %2241 = vmatmul.mubr.f32.gmra.mrb[0].mxu0 %v2121
      %v2242 = vpop.f32.mrb[0].mxu0
      %v2243 = vadd.f32 %v2107, %v2242
      %v2244 = vpop.f32.mrb[0].mxu0
      %2245 = vmatprep.mubr.f32.mxu0 0.0
      %2246 = vmatmul.mubr.f32.gmra.mrb[0].mxu0 %v2124
      %v2247 = vpop.f32.mrb[0].mxu0
      %v2248 = vadd.f32 %v2107, %v2247
      %v2249 = vpop.f32.mrb[0].mxu0
      %2250 = vmatprep.mubr.f32.mxu0 0.0
      %2251 = vmatmul.mubr.f32.gmra.mrb[0].mxu0 %v2127
      %v2252 = vpop.f32.mrb[0].mxu0
      %v2253 = vadd.f32 %v2107, %v2252
      %v2254 = vpop.f32.mrb[0].mxu0
      %2255 = vmatprep.mubr.f32.mxu0 0.0
      %2256 = vmatmul.mubr.f32.gmra.mrb[0].mxu0 %v2130
      %v2257 = vpop.f32.mrb[0].mxu0
      %v2258 = vadd.f32 %v2107, %v2257
      %v2259 = vpop.f32.mrb[0].mxu0
      %2260 = vmatprep.mubr.f32.mxu0 0.0
      %2261 = vmatmul.mubr.f32.gmra.mrb[0].mxu0 %v2133
      %v2262 = vpop.f32.mrb[0].mxu0
      %v2263 = vadd.f32 %v2107, %v2262
      %v2264 = vpop.f32.mrb[0].mxu0
      %2265 = vmatprep.mubr.f32.mxu0 0.0
      %2266 = vmatmul.mubr.f32.gmra.mrb[0].mxu0 %v2136
      %v2267 = vpop.f32.mrb[0].mxu0
      %v2268 = vadd.f32 %v2107, %v2267
      %v2269 = vpop.f32.mrb[0].mxu0
      %2270 = vmatprep.mubr.f32.mxu0 0.0
      %2271 = vmatmul.mubr.f32.gmra.mrb[0].mxu0 %v2139
      %v2272 = vpop.f32.mrb[0].mxu0
      %v2273 = vadd.f32 %v2107, %v2272
      %v2274 = vpop.f32.mrb[0].mxu0
      %2275 = vmatprep.mubr.f32.mxu0 0.0
      %2276 = vmatmul.mubr.f32.gmra.mrb[0].mxu0 %v2142
      %v2277 = vpop.f32.mrb[0].mxu0
      %v2278 = vadd.f32 %v2107, %v2277
      %v2279 = vpop.f32.mrb[0].mxu0
      %2280 = vmatprep.mubr.f32.mxu0 0.0
      %2281 = vmatmul.mubr.f32.gmra.mrb[0].mxu0 %v2145
      %v2282 = vpop.f32.mrb[0].mxu0
      %v2283 = vadd.f32 %v2107, %v2282
      %v2284 = vpop.f32.mrb[0].mxu0
      %2285 = vmatprep.mubr.f32.mxu0 0.0
      %2286 = vmatmul.mubr.f32.gmra.mrb[0].mxu0 %v2148
      %v2287 = vpop.f32.mrb[0].mxu0
      %v2288 = vadd.f32 %v2107, %v2287
      %v2289 = vpop.f32.mrb[0].mxu0
      %2290 = vmatprep.mubr.f32.mxu0 0.0
      %2291 = vmatmul.mubr.f32.gmra.mrb[0].mxu0 %v2151
      %v2292 = vpop.f32.mrb[0].mxu0
      %v2293 = vadd.f32 %v2107, %v2292
      %v2294 = vpop.f32.mrb[0].mxu0
      %2295 = vmatprep.mubr.f32.mxu0 0.0
      %2296 = vmatmul.mubr.f32.gmra.mrb[0].mxu0 %v2154
      %v2297 = vpop.f32.mrb[0].mxu0
      %v2298 = vadd.f32 %v2107, %v2297
      %v2299 = vpop.f32.mrb[0].mxu0
      %2300 = vdwg.mxu0
      %s2301 = scalar_lea.vmem %s6, 64
      %v2302 = vld [vmem:[%s2301] sm:$0xff]
      %v2303 = vld [vmem:[%s2301 + $0x8] sm:$0xff]
      %v2304 = vld [vmem:[%s2301 + $0x10] sm:$0xff]
      %v2305 = vld [vmem:[%s2301 + $0x18] sm:$0xff]
      %v2306 = vld [vmem:[%s7 + $0x2] sm:$0x1]
      %v2307 = vlaneseq
      %v2308 = vshrl.u32 %v2307, 7
      %v2309 = vsub.s32 0, %v2308
      %v2310 = vrot.slane %v2306, %v2309
      %2311 = vmatprep.subr.mxu0 0.0
      %2312 = vmatpush1.msra.mxu0 %v2302
      %2313 = vmatprep.subr.mxu0 0.0
      %2314 = vmatpush1.msra.mxu0 %v2303
      %2315 = vmatprep.subr.mxu0 0.0
      %2316 = vmatpush1.msra.mxu0 %v2304
      %2317 = vmatprep.subr.mxu0 0.0
      %2318 = vmatpush1.msra.mxu0 %v2305
      %2319 = vmatprep.subr.mxu0 0.0
      %2320 = vmatpush1.msra.mxu0 0.0
      %2321 = vmatprep.subr.mxu0 0.0
      %2322 = vmatpush1.msra.mxu0 0.0
      %2323 = vmatprep.subr.mxu0 0.0
      %2324 = vmatpush1.msra.mxu0 0.0
      %2325 = vmatprep.subr.mxu0 0.0
      %2326 = vmatpush1.msra.mxu0 0.0
      %2327 = vmatprep.subr.mxu0 0.0
      %2328 = vmatpush1.msra.mxu0 0.0
      %2329 = vmatprep.subr.mxu0 0.0
      %2330 = vmatpush1.msra.mxu0 0.0
      %2331 = vmatprep.subr.mxu0 0.0
      %2332 = vmatpush1.msra.mxu0 0.0
      %2333 = vmatprep.subr.mxu0 0.0
      %2334 = vmatpush1.msra.mxu0 0.0
      %2335 = vmatprep.subr.mxu0 0.0
      %2336 = vmatpush1.msra.mxu0 0.0
      %2337 = vmatprep.subr.mxu0 0.0
      %2338 = vmatpush1.msra.mxu0 0.0
      %2339 = vmatprep.subr.mxu0 0.0
      %2340 = vmatpush1.msra.mxu0 0.0
      %2341 = vmatprep.subr.mxu0 0.0
      %2342 = vmatpush1.msra.mxu0 0.0
      %2343 = vmatprep.subr.mxu0 0.0
      %2344 = vmatpush1.msra.mxu0 0.0
      %2345 = vmatprep.subr.mxu0 0.0
      %2346 = vmatpush1.msra.mxu0 0.0
      %2347 = vmatprep.subr.mxu0 0.0
      %2348 = vmatpush1.msra.mxu0 0.0
      %2349 = vmatprep.subr.mxu0 0.0
      %2350 = vmatpush1.msra.mxu0 0.0
      %2351 = vmatprep.subr.mxu0 0.0
      %2352 = vmatpush1.msra.mxu0 0.0
      %2353 = vmatprep.subr.mxu0 0.0
      %2354 = vmatpush1.msra.mxu0 0.0
      %2355 = vmatprep.subr.mxu0 0.0
      %2356 = vmatpush1.msra.mxu0 0.0
      %2357 = vmatprep.subr.mxu0 0.0
      %2358 = vmatpush1.msra.mxu0 0.0
      %2359 = vmatprep.subr.mxu0 0.0
      %2360 = vmatpush1.msra.mxu0 0.0
      %2361 = vmatprep.subr.mxu0 0.0
      %2362 = vmatpush1.msra.mxu0 0.0
      %2363 = vmatprep.subr.mxu0 0.0
      %2364 = vmatpush1.msra.mxu0 0.0
      %2365 = vmatprep.subr.mxu0 0.0
      %2366 = vmatpush1.msra.mxu0 0.0
      %2367 = vmatprep.subr.mxu0 0.0
      %2368 = vmatpush1.msra.mxu0 0.0
      %2369 = vmatprep.subr.mxu0 0.0
      %2370 = vmatpush1.msra.mxu0 0.0
      %2371 = vmatprep.subr.mxu0 0.0
      %2372 = vmatpush1.msra.mxu0 0.0
      %2373 = vmatprep.subr.mxu0 0.0
      %2374 = vmatpush1.msra.mxu0 0.0
      %2375 = vmatprep.mubr.f32.mxu0 0.0
      %2376 = vmatmul.mubr.f32.gmra.mrb[0].mxu0 %v2109
      %v2377 = vpop.f32.mrb[0].mxu0
      %v2378 = vadd.f32 %v2310, %v2377
      %v2379 = vpop.f32.mrb[0].mxu0
      %2380 = vmatprep.mubr.f32.mxu0 0.0
      %2381 = vmatmul.mubr.f32.gmra.mrb[0].mxu0 %v2112
      %v2382 = vpop.f32.mrb[0].mxu0
      %v2383 = vadd.f32 %v2310, %v2382
      %v2384 = vpop.f32.mrb[0].mxu0
      %2385 = vmatprep.mubr.f32.mxu0 0.0
      %2386 = vmatmul.mubr.f32.gmra.mrb[0].mxu0 %v2115
      %v2387 = vpop.f32.mrb[0].mxu0
      %v2388 = vadd.f32 %v2310, %v2387
      %v2389 = vpop.f32.mrb[0].mxu0
      %2390 = vmatprep.mubr.f32.mxu0 0.0
      %2391 = vmatmul.mubr.f32.gmra.mrb[0].mxu0 %v2118
      %v2392 = vpop.f32.mrb[0].mxu0
      %v2393 = vadd.f32 %v2310, %v2392
      %v2394 = vpop.f32.mrb[0].mxu0
      %2395 = vmatprep.mubr.f32.mxu0 0.0
      %2396 = vmatmul.mubr.f32.gmra.mrb[0].mxu0 %v2121
      %v2397 = vpop.f32.mrb[0].mxu0
      %v2398 = vadd.f32 %v2310, %v2397
      %v2399 = vpop.f32.mrb[0].mxu0
      %2400 = vmatprep.mubr.f32.mxu0 0.0
      %2401 = vmatmul.mubr.f32.gmra.mrb[0].mxu0 %v2124
      %v2402 = vpop.f32.mrb[0].mxu0
      %v2403 = vadd.f32 %v2310, %v2402
      %v2404 = vpop.f32.mrb[0].mxu0
      %2405 = vmatprep.mubr.f32.mxu0 0.0
      %2406 = vmatmul.mubr.f32.gmra.mrb[0].mxu0 %v2127
      %v2407 = vpop.f32.mrb[0].mxu0
      %v2408 = vadd.f32 %v2310, %v2407
      %v2409 = vpop.f32.mrb[0].mxu0
      %2410 = vmatprep.mubr.f32.mxu0 0.0
      %2411 = vmatmul.mubr.f32.gmra.mrb[0].mxu0 %v2130
      %v2412 = vpop.f32.mrb[0].mxu0
      %v2413 = vadd.f32 %v2310, %v2412
      %v2414 = vpop.f32.mrb[0].mxu0
      %2415 = vmatprep.mubr.f32.mxu0 0.0
      %2416 = vmatmul.mubr.f32.gmra.mrb[0].mxu0 %v2133
      %v2417 = vpop.f32.mrb[0].mxu0
      %v2418 = vadd.f32 %v2310, %v2417
      %v2419 = vpop.f32.mrb[0].mxu0
      %2420 = vmatprep.mubr.f32.mxu0 0.0
      %2421 = vmatmul.mubr.f32.gmra.mrb[0].mxu0 %v2136
      %v2422 = vpop.f32.mrb[0].mxu0
      %v2423 = vadd.f32 %v2310, %v2422
      %v2424 = vpop.f32.mrb[0].mxu0
      %2425 = vmatprep.mubr.f32.mxu0 0.0
      %2426 = vmatmul.mubr.f32.gmra.mrb[0].mxu0 %v2139
      %v2427 = vpop.f32.mrb[0].mxu0
      %v2428 = vadd.f32 %v2310, %v2427
      %v2429 = vpop.f32.mrb[0].mxu0
      %2430 = vmatprep.mubr.f32.mxu0 0.0
      %2431 = vmatmul.mubr.f32.gmra.mrb[0].mxu0 %v2142
      %v2432 = vpop.f32.mrb[0].mxu0
      %v2433 = vadd.f32 %v2310, %v2432
      %v2434 = vpop.f32.mrb[0].mxu0
      %2435 = vmatprep.mubr.f32.mxu0 0.0
      %2436 = vmatmul.mubr.f32.gmra.mrb[0].mxu0 %v2145
      %v2437 = vpop.f32.mrb[0].mxu0
      %v2438 = vadd.f32 %v2310, %v2437
      %v2439 = vpop.f32.mrb[0].mxu0
      %2440 = vmatprep.mubr.f32.mxu0 0.0
      %2441 = vmatmul.mubr.f32.gmra.mrb[0].mxu0 %v2148
      %v2442 = vpop.f32.mrb[0].mxu0
      %v2443 = vadd.f32 %v2310, %v2442
      %v2444 = vpop.f32.mrb[0].mxu0
      %2445 = vmatprep.mubr.f32.mxu0 0.0
      %2446 = vmatmul.mubr.f32.gmra.mrb[0].mxu0 %v2151
      %v2447 = vpop.f32.mrb[0].mxu0
      %v2448 = vadd.f32 %v2310, %v2447
      %v2449 = vpop.f32.mrb[0].mxu0
      %2450 = vmatprep.mubr.f32.mxu0 0.0
      %2451 = vmatmul.mubr.f32.gmra.mrb[0].mxu0 %v2154
      %v2452 = vpop.f32.mrb[0].mxu0
      %v2453 = vadd.f32 %v2310, %v2452
      %v2454 = vpop.f32.mrb[0].mxu0
      %2455 = vdwg.mxu0
      %v2456 = vtanh.pop %v2223
      %v2457 = vtanh.pop %v2228
      %v2458 = vtanh.pop %v2233
      %v2459 = vtanh.pop %v2238
      %v2460 = vtanh.pop %v2243
      %v2461 = vtanh.pop %v2248
      %v2462 = vtanh.pop %v2253
      %v2463 = vtanh.pop %v2258
      %v2464 = vtanh.pop %v2263
      %v2465 = vtanh.pop %v2268
      %v2466 = vtanh.pop %v2273
      %v2467 = vtanh.pop %v2278
      %v2468 = vtanh.pop %v2283
      %v2469 = vtanh.pop %v2288
      %v2470 = vtanh.pop %v2293
      %v2471 = vtanh.pop %v2298
      %v2472 = vmul.f32 %v2456, 1.442695
      %v2473 = vpow.pop %v2472
      %v2474 = vmul.f32 %v2457, 1.442695
      %v2475 = vpow.pop %v2474
      %v2476 = vmul.f32 %v2458, 1.442695
      %v2477 = vpow.pop %v2476
      %v2478 = vmul.f32 %v2459, 1.442695
      %v2479 = vpow.pop %v2478
      %v2480 = vmul.f32 %v2460, 1.442695
      %v2481 = vpow.pop %v2480
      %v2482 = vmul.f32 %v2461, 1.442695
      %v2483 = vpow.pop %v2482
      %v2484 = vmul.f32 %v2462, 1.442695
      %v2485 = vpow.pop %v2484
      %v2486 = vmul.f32 %v2463, 1.442695
      %v2487 = vpow.pop %v2486
      %v2488 = vmul.f32 %v2464, 1.442695
      %v2489 = vpow.pop %v2488
      %v2490 = vmul.f32 %v2465, 1.442695
      %v2491 = vpow.pop %v2490
      %v2492 = vmul.f32 %v2466, 1.442695
      %v2493 = vpow.pop %v2492
      %v2494 = vmul.f32 %v2467, 1.442695
      %v2495 = vpow.pop %v2494
      %v2496 = vmul.f32 %v2468, 1.442695
      %v2497 = vpow.pop %v2496
      %v2498 = vmul.f32 %v2469, 1.442695
      %v2499 = vpow.pop %v2498
      %v2500 = vmul.f32 %v2470, 1.442695
      %v2501 = vpow.pop %v2500
      %v2502 = vmul.f32 %v2471, 1.442695
      %v2503 = vpow.pop %v2502
      %v2504 = vmul.f32 %v1082, %v2473
      %v2505 = vmul.f32 %v1083, %v2475
      %v2506 = vmul.f32 %v1084, %v2477
      %v2507 = vmul.f32 %v1085, %v2479
      %v2508 = vmul.f32 %v1086, %v2481
      %v2509 = vmul.f32 %v1087, %v2483
      %v2510 = vmul.f32 %v1088, %v2485
      %v2511 = vmul.f32 %v1089, %v2487
      %v2512 = vmul.f32 %v1090, %v2489
      %v2513 = vmul.f32 %v1091, %v2491
      %v2514 = vmul.f32 %v1092, %v2493
      %v2515 = vmul.f32 %v1093, %v2495
      %v2516 = vmul.f32 %v1094, %v2497
      %v2517 = vmul.f32 %v1095, %v2499
      %v2518 = vmul.f32 %v1096, %v2501
      %v2519 = vmul.f32 %v1097, %v2503
      %v2520 = vadd.f32 %v2504, %v2378
      %v2521 = vadd.f32 %v2505, %v2383
      %v2522 = vadd.f32 %v2506, %v2388
      %v2523 = vadd.f32 %v2507, %v2393
      %v2524 = vadd.f32 %v2508, %v2398
      %v2525 = vadd.f32 %v2509, %v2403
      %v2526 = vadd.f32 %v2510, %v2408
      %v2527 = vadd.f32 %v2511, %v2413
      %v2528 = vadd.f32 %v2512, %v2418
      %v2529 = vadd.f32 %v2513, %v2423
      %v2530 = vadd.f32 %v2514, %v2428
      %v2531 = vadd.f32 %v2515, %v2433
      %v2532 = vadd.f32 %v2516, %v2438
      %v2533 = vadd.f32 %v2517, %v2443
      %v2534 = vadd.f32 %v2518, %v2448
      %v2535 = vadd.f32 %v2519, %v2453
      %v2536 = vsel %vm451, %v2456, 0.0
      %2537 = vadd.xlane.f32.xlu0 %v2536
      %v2538 = vpop.xlane.xlu0 %2537
      %v2539 = vsel %vm451, %v2457, 0.0
      %2540 = vadd.xlane.f32.xlu0 %v2539
      %v2541 = vpop.xlane.xlu0 %2540
      %v2542 = vsel %vm451, %v2458, 0.0
      %2543 = vadd.xlane.f32.xlu0 %v2542
      %v2544 = vpop.xlane.xlu0 %2543
      %v2545 = vsel %vm451, %v2459, 0.0
      %2546 = vadd.xlane.f32.xlu0 %v2545
      %v2547 = vpop.xlane.xlu0 %2546
      %v2548 = vsel %vm451, %v2460, 0.0
      %2549 = vadd.xlane.f32.xlu0 %v2548
      %v2550 = vpop.xlane.xlu0 %2549
      %v2551 = vsel %vm451, %v2461, 0.0
      %2552 = vadd.xlane.f32.xlu0 %v2551
      %v2553 = vpop.xlane.xlu0 %2552
      %v2554 = vsel %vm451, %v2462, 0.0
      %2555 = vadd.xlane.f32.xlu0 %v2554
      %v2556 = vpop.xlane.xlu0 %2555
      %v2557 = vsel %vm451, %v2463, 0.0
      %2558 = vadd.xlane.f32.xlu0 %v2557
      %v2559 = vpop.xlane.xlu0 %2558
      %v2560 = vsel %vm451, %v2464, 0.0
      %2561 = vadd.xlane.f32.xlu0 %v2560
      %v2562 = vpop.xlane.xlu0 %2561
      %v2563 = vsel %vm451, %v2465, 0.0
      %2564 = vadd.xlane.f32.xlu0 %v2563
      %v2565 = vpop.xlane.xlu0 %2564
      %v2566 = vsel %vm451, %v2466, 0.0
      %2567 = vadd.xlane.f32.xlu0 %v2566
      %v2568 = vpop.xlane.xlu0 %2567
      %v2569 = vsel %vm451, %v2467, 0.0
      %2570 = vadd.xlane.f32.xlu0 %v2569
      %v2571 = vpop.xlane.xlu0 %2570
      %v2572 = vsel %vm451, %v2468, 0.0
      %2573 = vadd.xlane.f32.xlu0 %v2572
      %v2574 = vpop.xlane.xlu0 %2573
      %v2575 = vsel %vm451, %v2469, 0.0
      %2576 = vadd.xlane.f32.xlu0 %v2575
      %v2577 = vpop.xlane.xlu0 %2576
      %v2578 = vsel %vm451, %v2470, 0.0
      %2579 = vadd.xlane.f32.xlu0 %v2578
      %v2580 = vpop.xlane.xlu0 %2579
      %v2581 = vsel %vm451, %v2471, 0.0
      %2582 = vadd.xlane.f32.xlu0 %v2581
      %v2583 = vpop.xlane.xlu0 %2582
      %v2584 = vadd.f32 %v1865, %v2538
      %v2585 = vadd.f32 %v1866, %v2541
      %v2586 = vadd.f32 %v1867, %v2544
      %v2587 = vadd.f32 %v1868, %v2547
      %v2588 = vadd.f32 %v1869, %v2550
      %v2589 = vadd.f32 %v1870, %v2553
      %v2590 = vadd.f32 %v1871, %v2556
      %v2591 = vadd.f32 %v1872, %v2559
      %v2592 = vadd.f32 %v1873, %v2562
      %v2593 = vadd.f32 %v1874, %v2565
      %v2594 = vadd.f32 %v1875, %v2568
      %v2595 = vadd.f32 %v1876, %v2571
      %v2596 = vadd.f32 %v1877, %v2574
      %v2597 = vadd.f32 %v1878, %v2577
      %v2598 = vadd.f32 %v1879, %v2580
      %v2599 = vadd.f32 %v1880, %v2583
      %s2600 = scalar_lea.vmem %s2, 48
      %v2601 = vld [vmem:[%s2600] sm:$0xff]
      %v2602 = vld [vmem:[%s2600 + $0x8] sm:$0xff]
      %v2603 = vld [vmem:[%s3 + $0x3] sm:$0x1]
      %v2604 = vlaneseq
      %v2605 = vshrl.u32 %v2604, 7
      %v2606 = vsub.s32 0, %v2605
      %v2607 = vrot.slane %v2603, %v2606
      %v2609 = vsel %vm451, %v2520, 0
      %v2612 = vsel %vm451, %v2521, 0
      %v2615 = vsel %vm451, %v2522, 0
      %v2618 = vsel %vm451, %v2523, 0
      %v2621 = vsel %vm451, %v2524, 0
      %v2624 = vsel %vm451, %v2525, 0
      %v2627 = vsel %vm451, %v2526, 0
      %v2630 = vsel %vm451, %v2527, 0
      %v2633 = vsel %vm451, %v2528, 0
      %v2636 = vsel %vm451, %v2529, 0
      %v2639 = vsel %vm451, %v2530, 0
      %v2642 = vsel %vm451, %v2531, 0
      %v2645 = vsel %vm451, %v2532, 0
      %v2648 = vsel %vm451, %v2533, 0
      %v2651 = vsel %vm451, %v2534, 0
      %v2654 = vsel %vm451, %v2535, 0
      %2656 = vmatprep.subr.mxu0 0.0
      %2657 = vmatpush1.msra.mxu0 %v2601
      %2658 = vmatprep.subr.mxu0 0.0
      %2659 = vmatpush1.msra.mxu0 %v2602
      %2660 = vmatprep.subr.mxu0 0.0
      %2661 = vmatpush1.msra.mxu0 0.0
      %2662 = vmatprep.subr.mxu0 0.0
      %2663 = vmatpush1.msra.mxu0 0.0
      %2664 = vmatprep.subr.mxu0 0.0
      %2665 = vmatpush1.msra.mxu0 0.0
      %2666 = vmatprep.subr.mxu0 0.0
      %2667 = vmatpush1.msra.mxu0 0.0
      %2668 = vmatprep.subr.mxu0 0.0
      %2669 = vmatpush1.msra.mxu0 0.0
      %2670 = vmatprep.subr.mxu0 0.0
      %2671 = vmatpush1.msra.mxu0 0.0
      %2672 = vmatprep.subr.mxu0 0.0
      %2673 = vmatpush1.msra.mxu0 0.0
      %2674 = vmatprep.subr.mxu0 0.0
      %2675 = vmatpush1.msra.mxu0 0.0
      %2676 = vmatprep.subr.mxu0 0.0
      %2677 = vmatpush1.msra.mxu0 0.0
      %2678 = vmatprep.subr.mxu0 0.0
      %2679 = vmatpush1.msra.mxu0 0.0
      %2680 = vmatprep.subr.mxu0 0.0
      %2681 = vmatpush1.msra.mxu0 0.0
      %2682 = vmatprep.subr.mxu0 0.0
      %2683 = vmatpush1.msra.mxu0 0.0
      %2684 = vmatprep.subr.mxu0 0.0
      %2685 = vmatpush1.msra.mxu0 0.0
      %2686 = vmatprep.subr.mxu0 0.0
      %2687 = vmatpush1.msra.mxu0 0.0
      %2688 = vmatprep.subr.mxu0 0.0
      %2689 = vmatpush1.msra.mxu0 0.0
      %2690 = vmatprep.subr.mxu0 0.0
      %2691 = vmatpush1.msra.mxu0 0.0
      %2692 = vmatprep.subr.mxu0 0.0
      %2693 = vmatpush1.msra.mxu0 0.0
      %2694 = vmatprep.subr.mxu0 0.0
      %2695 = vmatpush1.msra.mxu0 0.0
      %2696 = vmatprep.subr.mxu0 0.0
      %2697 = vmatpush1.msra.mxu0 0.0
      %2698 = vmatprep.subr.mxu0 0.0
      %2699 = vmatpush1.msra.mxu0 0.0
      %2700 = vmatprep.subr.mxu0 0.0
      %2701 = vmatpush1.msra.mxu0 0.0
      %2702 = vmatprep.subr.mxu0 0.0
      %2703 = vmatpush1.msra.mxu0 0.0
      %2704 = vmatprep.subr.mxu0 0.0
      %2705 = vmatpush1.msra.mxu0 0.0
      %2706 = vmatprep.subr.mxu0 0.0
      %2707 = vmatpush1.msra.mxu0 0.0
      %2708 = vmatprep.subr.mxu0 0.0
      %2709 = vmatpush1.msra.mxu0 0.0
      %2710 = vmatprep.subr.mxu0 0.0
      %2711 = vmatpush1.msra.mxu0 0.0
      %2712 = vmatprep.subr.mxu0 0.0
      %2713 = vmatpush1.msra.mxu0 0.0
      %2714 = vmatprep.subr.mxu0 0.0
      %2715 = vmatpush1.msra.mxu0 0.0
      %2716 = vmatprep.subr.mxu0 0.0
      %2717 = vmatpush1.msra.mxu0 0.0
      %2718 = vmatprep.subr.mxu0 0.0
      %2719 = vmatpush1.msra.mxu0 0.0
      %2720 = vmatprep.mubr.f32.mxu0 0.0
      %2721 = vmatmul.mubr.f32.gmra.mrb[0].mxu0 %v2609
      %v2722 = vpop.f32.mrb[0].mxu0
      %v2723 = vadd.f32 %v2607, %v2722
      %v2724 = vpop.f32.mrb[0].mxu0
      %2725 = vmatprep.mubr.f32.mxu0 0.0
      %2726 = vmatmul.mubr.f32.gmra.mrb[0].mxu0 %v2612
      %v2727 = vpop.f32.mrb[0].mxu0
      %v2728 = vadd.f32 %v2607, %v2727
      %v2729 = vpop.f32.mrb[0].mxu0
      %2730 = vmatprep.mubr.f32.mxu0 0.0
      %2731 = vmatmul.mubr.f32.gmra.mrb[0].mxu0 %v2615
      %v2732 = vpop.f32.mrb[0].mxu0
      %v2733 = vadd.f32 %v2607, %v2732
      %v2734 = vpop.f32.mrb[0].mxu0
      %2735 = vmatprep.mubr.f32.mxu0 0.0
      %2736 = vmatmul.mubr.f32.gmra.mrb[0].mxu0 %v2618
      %v2737 = vpop.f32.mrb[0].mxu0
      %v2738 = vadd.f32 %v2607, %v2737
      %v2739 = vpop.f32.mrb[0].mxu0
      %2740 = vmatprep.mubr.f32.mxu0 0.0
      %2741 = vmatmul.mubr.f32.gmra.mrb[0].mxu0 %v2621
      %v2742 = vpop.f32.mrb[0].mxu0
      %v2743 = vadd.f32 %v2607, %v2742
      %v2744 = vpop.f32.mrb[0].mxu0
      %2745 = vmatprep.mubr.f32.mxu0 0.0
      %2746 = vmatmul.mubr.f32.gmra.mrb[0].mxu0 %v2624
      %v2747 = vpop.f32.mrb[0].mxu0
      %v2748 = vadd.f32 %v2607, %v2747
      %v2749 = vpop.f32.mrb[0].mxu0
      %2750 = vmatprep.mubr.f32.mxu0 0.0
      %2751 = vmatmul.mubr.f32.gmra.mrb[0].mxu0 %v2627
      %v2752 = vpop.f32.mrb[0].mxu0
      %v2753 = vadd.f32 %v2607, %v2752
      %v2754 = vpop.f32.mrb[0].mxu0
      %2755 = vmatprep.mubr.f32.mxu0 0.0
      %2756 = vmatmul.mubr.f32.gmra.mrb[0].mxu0 %v2630
      %v2757 = vpop.f32.mrb[0].mxu0
      %v2758 = vadd.f32 %v2607, %v2757
      %v2759 = vpop.f32.mrb[0].mxu0
      %2760 = vmatprep.mubr.f32.mxu0 0.0
      %2761 = vmatmul.mubr.f32.gmra.mrb[0].mxu0 %v2633
      %v2762 = vpop.f32.mrb[0].mxu0
      %v2763 = vadd.f32 %v2607, %v2762
      %v2764 = vpop.f32.mrb[0].mxu0
      %2765 = vmatprep.mubr.f32.mxu0 0.0
      %2766 = vmatmul.mubr.f32.gmra.mrb[0].mxu0 %v2636
      %v2767 = vpop.f32.mrb[0].mxu0
      %v2768 = vadd.f32 %v2607, %v2767
      %v2769 = vpop.f32.mrb[0].mxu0
      %2770 = vmatprep.mubr.f32.mxu0 0.0
      %2771 = vmatmul.mubr.f32.gmra.mrb[0].mxu0 %v2639
      %v2772 = vpop.f32.mrb[0].mxu0
      %v2773 = vadd.f32 %v2607, %v2772
      %v2774 = vpop.f32.mrb[0].mxu0
      %2775 = vmatprep.mubr.f32.mxu0 0.0
      %2776 = vmatmul.mubr.f32.gmra.mrb[0].mxu0 %v2642
      %v2777 = vpop.f32.mrb[0].mxu0
      %v2778 = vadd.f32 %v2607, %v2777
      %v2779 = vpop.f32.mrb[0].mxu0
      %2780 = vmatprep.mubr.f32.mxu0 0.0
      %2781 = vmatmul.mubr.f32.gmra.mrb[0].mxu0 %v2645
      %v2782 = vpop.f32.mrb[0].mxu0
      %v2783 = vadd.f32 %v2607, %v2782
      %v2784 = vpop.f32.mrb[0].mxu0
      %2785 = vmatprep.mubr.f32.mxu0 0.0
      %2786 = vmatmul.mubr.f32.gmra.mrb[0].mxu0 %v2648
      %v2787 = vpop.f32.mrb[0].mxu0
      %v2788 = vadd.f32 %v2607, %v2787
      %v2789 = vpop.f32.mrb[0].mxu0
      %2790 = vmatprep.mubr.f32.mxu0 0.0
      %2791 = vmatmul.mubr.f32.gmra.mrb[0].mxu0 %v2651
      %v2792 = vpop.f32.mrb[0].mxu0
      %v2793 = vadd.f32 %v2607, %v2792
      %v2794 = vpop.f32.mrb[0].mxu0
      %2795 = vmatprep.mubr.f32.mxu0 0.0
      %2796 = vmatmul.mubr.f32.gmra.mrb[0].mxu0 %v2654
      %v2797 = vpop.f32.mrb[0].mxu0
      %v2798 = vadd.f32 %v2607, %v2797
      %v2799 = vpop.f32.mrb[0].mxu0
      %2800 = vdwg.mxu0
      %v2801 = vmax.f32 %v2723, 0.0
      %v2802 = vmax.f32 %v2728, 0.0
      %v2803 = vmax.f32 %v2733, 0.0
      %v2804 = vmax.f32 %v2738, 0.0
      %v2805 = vmax.f32 %v2743, 0.0
      %v2806 = vmax.f32 %v2748, 0.0
      %v2807 = vmax.f32 %v2753, 0.0
      %v2808 = vmax.f32 %v2758, 0.0
      %v2809 = vmax.f32 %v2763, 0.0
      %v2810 = vmax.f32 %v2768, 0.0
      %v2811 = vmax.f32 %v2773, 0.0
      %v2812 = vmax.f32 %v2778, 0.0
      %v2813 = vmax.f32 %v2783, 0.0
      %v2814 = vmax.f32 %v2788, 0.0
      %v2815 = vmax.f32 %v2793, 0.0
      %v2816 = vmax.f32 %v2798, 0.0
      %s2817 = scalar_lea.vmem %s4, 96
      %v2818 = vld [vmem:[%s2817] sm:$0xff]
      %v2819 = vld [vmem:[%s2817 + $0x8] sm:$0xff]
      %v2820 = vld [vmem:[%s2817 + $0x10] sm:$0xff]
      %v2821 = vld [vmem:[%s2817 + $0x18] sm:$0xff]
      %v2822 = vld [vmem:[%s5 + $0x3] sm:$0x1]
      %v2823 = vlaneseq
      %v2824 = vshrl.u32 %v2823, 7
      %v2825 = vsub.s32 0, %v2824
      %v2826 = vrot.slane %v2822, %v2825
      %v2828 = vsel %vm670, %v2801, 0
      %v2831 = vsel %vm670, %v2802, 0
      %v2834 = vsel %vm670, %v2803, 0
      %v2837 = vsel %vm670, %v2804, 0
      %v2840 = vsel %vm670, %v2805, 0
      %v2843 = vsel %vm670, %v2806, 0
      %v2846 = vsel %vm670, %v2807, 0
      %v2849 = vsel %vm670, %v2808, 0
      %v2852 = vsel %vm670, %v2809, 0
      %v2855 = vsel %vm670, %v2810, 0
      %v2858 = vsel %vm670, %v2811, 0
      %v2861 = vsel %vm670, %v2812, 0
      %v2864 = vsel %vm670, %v2813, 0
      %v2867 = vsel %vm670, %v2814, 0
      %v2870 = vsel %vm670, %v2815, 0
      %v2873 = vsel %vm670, %v2816, 0
      %2875 = vmatprep.subr.mxu0 0.0
      %2876 = vmatpush1.msra.mxu0 %v2818
      %2877 = vmatprep.subr.mxu0 0.0
      %2878 = vmatpush1.msra.mxu0 %v2819
      %2879 = vmatprep.subr.mxu0 0.0
      %2880 = vmatpush1.msra.mxu0 %v2820
      %2881 = vmatprep.subr.mxu0 0.0
      %2882 = vmatpush1.msra.mxu0 %v2821
      %2883 = vmatprep.subr.mxu0 0.0
      %2884 = vmatpush1.msra.mxu0 0.0
      %2885 = vmatprep.subr.mxu0 0.0
      %2886 = vmatpush1.msra.mxu0 0.0
      %2887 = vmatprep.subr.mxu0 0.0
      %2888 = vmatpush1.msra.mxu0 0.0
      %2889 = vmatprep.subr.mxu0 0.0
      %2890 = vmatpush1.msra.mxu0 0.0
      %2891 = vmatprep.subr.mxu0 0.0
      %2892 = vmatpush1.msra.mxu0 0.0
      %2893 = vmatprep.subr.mxu0 0.0
      %2894 = vmatpush1.msra.mxu0 0.0
      %2895 = vmatprep.subr.mxu0 0.0
      %2896 = vmatpush1.msra.mxu0 0.0
      %2897 = vmatprep.subr.mxu0 0.0
      %2898 = vmatpush1.msra.mxu0 0.0
      %2899 = vmatprep.subr.mxu0 0.0
      %2900 = vmatpush1.msra.mxu0 0.0
      %2901 = vmatprep.subr.mxu0 0.0
      %2902 = vmatpush1.msra.mxu0 0.0
      %2903 = vmatprep.subr.mxu0 0.0
      %2904 = vmatpush1.msra.mxu0 0.0
      %2905 = vmatprep.subr.mxu0 0.0
      %2906 = vmatpush1.msra.mxu0 0.0
      %2907 = vmatprep.subr.mxu0 0.0
      %2908 = vmatpush1.msra.mxu0 0.0
      %2909 = vmatprep.subr.mxu0 0.0
      %2910 = vmatpush1.msra.mxu0 0.0
      %2911 = vmatprep.subr.mxu0 0.0
      %2912 = vmatpush1.msra.mxu0 0.0
      %2913 = vmatprep.subr.mxu0 0.0
      %2914 = vmatpush1.msra.mxu0 0.0
      %2915 = vmatprep.subr.mxu0 0.0
      %2916 = vmatpush1.msra.mxu0 0.0
      %2917 = vmatprep.subr.mxu0 0.0
      %2918 = vmatpush1.msra.mxu0 0.0
      %2919 = vmatprep.subr.mxu0 0.0
      %2920 = vmatpush1.msra.mxu0 0.0
      %2921 = vmatprep.subr.mxu0 0.0
      %2922 = vmatpush1.msra.mxu0 0.0
      %2923 = vmatprep.subr.mxu0 0.0
      %2924 = vmatpush1.msra.mxu0 0.0
      %2925 = vmatprep.subr.mxu0 0.0
      %2926 = vmatpush1.msra.mxu0 0.0
      %2927 = vmatprep.subr.mxu0 0.0
      %2928 = vmatpush1.msra.mxu0 0.0
      %2929 = vmatprep.subr.mxu0 0.0
      %2930 = vmatpush1.msra.mxu0 0.0
      %2931 = vmatprep.subr.mxu0 0.0
      %2932 = vmatpush1.msra.mxu0 0.0
      %2933 = vmatprep.subr.mxu0 0.0
      %2934 = vmatpush1.msra.mxu0 0.0
      %2935 = vmatprep.subr.mxu0 0.0
      %2936 = vmatpush1.msra.mxu0 0.0
      %2937 = vmatprep.subr.mxu0 0.0
      %2938 = vmatpush1.msra.mxu0 0.0
      %2939 = vmatprep.mubr.f32.mxu0 0.0
      %2940 = vmatmul.mubr.f32.gmra.mrb[0].mxu0 %v2828
      %v2941 = vpop.f32.mrb[0].mxu0
      %v2942 = vadd.f32 %v2826, %v2941
      %v2943 = vpop.f32.mrb[0].mxu0
      %2944 = vmatprep.mubr.f32.mxu0 0.0
      %2945 = vmatmul.mubr.f32.gmra.mrb[0].mxu0 %v2831
      %v2946 = vpop.f32.mrb[0].mxu0
      %v2947 = vadd.f32 %v2826, %v2946
      %v2948 = vpop.f32.mrb[0].mxu0
      %2949 = vmatprep.mubr.f32.mxu0 0.0
      %2950 = vmatmul.mubr.f32.gmra.mrb[0].mxu0 %v2834
      %v2951 = vpop.f32.mrb[0].mxu0
      %v2952 = vadd.f32 %v2826, %v2951
      %v2953 = vpop.f32.mrb[0].mxu0
      %2954 = vmatprep.mubr.f32.mxu0 0.0
      %2955 = vmatmul.mubr.f32.gmra.mrb[0].mxu0 %v2837
      %v2956 = vpop.f32.mrb[0].mxu0
      %v2957 = vadd.f32 %v2826, %v2956
      %v2958 = vpop.f32.mrb[0].mxu0
      %2959 = vmatprep.mubr.f32.mxu0 0.0
      %2960 = vmatmul.mubr.f32.gmra.mrb[0].mxu0 %v2840
      %v2961 = vpop.f32.mrb[0].mxu0
      %v2962 = vadd.f32 %v2826, %v2961
      %v2963 = vpop.f32.mrb[0].mxu0
      %2964 = vmatprep.mubr.f32.mxu0 0.0
      %2965 = vmatmul.mubr.f32.gmra.mrb[0].mxu0 %v2843
      %v2966 = vpop.f32.mrb[0].mxu0
      %v2967 = vadd.f32 %v2826, %v2966
      %v2968 = vpop.f32.mrb[0].mxu0
      %2969 = vmatprep.mubr.f32.mxu0 0.0
      %2970 = vmatmul.mubr.f32.gmra.mrb[0].mxu0 %v2846
      %v2971 = vpop.f32.mrb[0].mxu0
      %v2972 = vadd.f32 %v2826, %v2971
      %v2973 = vpop.f32.mrb[0].mxu0
      %2974 = vmatprep.mubr.f32.mxu0 0.0
      %2975 = vmatmul.mubr.f32.gmra.mrb[0].mxu0 %v2849
      %v2976 = vpop.f32.mrb[0].mxu0
      %v2977 = vadd.f32 %v2826, %v2976
      %v2978 = vpop.f32.mrb[0].mxu0
      %2979 = vmatprep.mubr.f32.mxu0 0.0
      %2980 = vmatmul.mubr.f32.gmra.mrb[0].mxu0 %v2852
      %v2981 = vpop.f32.mrb[0].mxu0
      %v2982 = vadd.f32 %v2826, %v2981
      %v2983 = vpop.f32.mrb[0].mxu0
      %2984 = vmatprep.mubr.f32.mxu0 0.0
      %2985 = vmatmul.mubr.f32.gmra.mrb[0].mxu0 %v2855
      %v2986 = vpop.f32.mrb[0].mxu0
      %v2987 = vadd.f32 %v2826, %v2986
      %v2988 = vpop.f32.mrb[0].mxu0
      %2989 = vmatprep.mubr.f32.mxu0 0.0
      %2990 = vmatmul.mubr.f32.gmra.mrb[0].mxu0 %v2858
      %v2991 = vpop.f32.mrb[0].mxu0
      %v2992 = vadd.f32 %v2826, %v2991
      %v2993 = vpop.f32.mrb[0].mxu0
      %2994 = vmatprep.mubr.f32.mxu0 0.0
      %2995 = vmatmul.mubr.f32.gmra.mrb[0].mxu0 %v2861
      %v2996 = vpop.f32.mrb[0].mxu0
      %v2997 = vadd.f32 %v2826, %v2996
      %v2998 = vpop.f32.mrb[0].mxu0
      %2999 = vmatprep.mubr.f32.mxu0 0.0
      %3000 = vmatmul.mubr.f32.gmra.mrb[0].mxu0 %v2864
      %v3001 = vpop.f32.mrb[0].mxu0
      %v3002 = vadd.f32 %v2826, %v3001
      %v3003 = vpop.f32.mrb[0].mxu0
      %3004 = vmatprep.mubr.f32.mxu0 0.0
      %3005 = vmatmul.mubr.f32.gmra.mrb[0].mxu0 %v2867
      %v3006 = vpop.f32.mrb[0].mxu0
      %v3007 = vadd.f32 %v2826, %v3006
      %v3008 = vpop.f32.mrb[0].mxu0
      %3009 = vmatprep.mubr.f32.mxu0 0.0
      %3010 = vmatmul.mubr.f32.gmra.mrb[0].mxu0 %v2870
      %v3011 = vpop.f32.mrb[0].mxu0
      %v3012 = vadd.f32 %v2826, %v3011
      %v3013 = vpop.f32.mrb[0].mxu0
      %3014 = vmatprep.mubr.f32.mxu0 0.0
      %3015 = vmatmul.mubr.f32.gmra.mrb[0].mxu0 %v2873
      %v3016 = vpop.f32.mrb[0].mxu0
      %v3017 = vadd.f32 %v2826, %v3016
      %v3018 = vpop.f32.mrb[0].mxu0
      %3019 = vdwg.mxu0
      %s3020 = scalar_lea.vmem %s6, 96
      %v3021 = vld [vmem:[%s3020] sm:$0xff]
      %v3022 = vld [vmem:[%s3020 + $0x8] sm:$0xff]
      %v3023 = vld [vmem:[%s3020 + $0x10] sm:$0xff]
      %v3024 = vld [vmem:[%s3020 + $0x18] sm:$0xff]
      %v3025 = vld [vmem:[%s7 + $0x3] sm:$0x1]
      %v3026 = vlaneseq
      %v3027 = vshrl.u32 %v3026, 7
      %v3028 = vsub.s32 0, %v3027
      %v3029 = vrot.slane %v3025, %v3028
      %3030 = vmatprep.subr.mxu0 0.0
      %3031 = vmatpush1.msra.mxu0 %v3021
      %3032 = vmatprep.subr.mxu0 0.0
      %3033 = vmatpush1.msra.mxu0 %v3022
      %3034 = vmatprep.subr.mxu0 0.0
      %3035 = vmatpush1.msra.mxu0 %v3023
      %3036 = vmatprep.subr.mxu0 0.0
      %3037 = vmatpush1.msra.mxu0 %v3024
      %3038 = vmatprep.subr.mxu0 0.0
      %3039 = vmatpush1.msra.mxu0 0.0
      %3040 = vmatprep.subr.mxu0 0.0
      %3041 = vmatpush1.msra.mxu0 0.0
      %3042 = vmatprep.subr.mxu0 0.0
      %3043 = vmatpush1.msra.mxu0 0.0
      %3044 = vmatprep.subr.mxu0 0.0
      %3045 = vmatpush1.msra.mxu0 0.0
      %3046 = vmatprep.subr.mxu0 0.0
      %3047 = vmatpush1.msra.mxu0 0.0
      %3048 = vmatprep.subr.mxu0 0.0
      %3049 = vmatpush1.msra.mxu0 0.0
      %3050 = vmatprep.subr.mxu0 0.0
      %3051 = vmatpush1.msra.mxu0 0.0
      %3052 = vmatprep.subr.mxu0 0.0
      %3053 = vmatpush1.msra.mxu0 0.0
      %3054 = vmatprep.subr.mxu0 0.0
      %3055 = vmatpush1.msra.mxu0 0.0
      %3056 = vmatprep.subr.mxu0 0.0
      %3057 = vmatpush1.msra.mxu0 0.0
      %3058 = vmatprep.subr.mxu0 0.0
      %3059 = vmatpush1.msra.mxu0 0.0
      %3060 = vmatprep.subr.mxu0 0.0
      %3061 = vmatpush1.msra.mxu0 0.0
      %3062 = vmatprep.subr.mxu0 0.0
      %3063 = vmatpush1.msra.mxu0 0.0
      %3064 = vmatprep.subr.mxu0 0.0
      %3065 = vmatpush1.msra.mxu0 0.0
      %3066 = vmatprep.subr.mxu0 0.0
      %3067 = vmatpush1.msra.mxu0 0.0
      %3068 = vmatprep.subr.mxu0 0.0
      %3069 = vmatpush1.msra.mxu0 0.0
      %3070 = vmatprep.subr.mxu0 0.0
      %3071 = vmatpush1.msra.mxu0 0.0
      %3072 = vmatprep.subr.mxu0 0.0
      %3073 = vmatpush1.msra.mxu0 0.0
      %3074 = vmatprep.subr.mxu0 0.0
      %3075 = vmatpush1.msra.mxu0 0.0
      %3076 = vmatprep.subr.mxu0 0.0
      %3077 = vmatpush1.msra.mxu0 0.0
      %3078 = vmatprep.subr.mxu0 0.0
      %3079 = vmatpush1.msra.mxu0 0.0
      %3080 = vmatprep.subr.mxu0 0.0
      %3081 = vmatpush1.msra.mxu0 0.0
      %3082 = vmatprep.subr.mxu0 0.0
      %3083 = vmatpush1.msra.mxu0 0.0
      %3084 = vmatprep.subr.mxu0 0.0
      %3085 = vmatpush1.msra.mxu0 0.0
      %3086 = vmatprep.subr.mxu0 0.0
      %3087 = vmatpush1.msra.mxu0 0.0
      %3088 = vmatprep.subr.mxu0 0.0
      %3089 = vmatpush1.msra.mxu0 0.0
      %3090 = vmatprep.subr.mxu0 0.0
      %3091 = vmatpush1.msra.mxu0 0.0
      %3092 = vmatprep.subr.mxu0 0.0
      %3093 = vmatpush1.msra.mxu0 0.0
      %3094 = vmatprep.mubr.f32.mxu0 0.0
      %3095 = vmatmul.mubr.f32.gmra.mrb[0].mxu0 %v2828
      %v3096 = vpop.f32.mrb[0].mxu0
      %v3097 = vadd.f32 %v3029, %v3096
      %v3098 = vpop.f32.mrb[0].mxu0
      %3099 = vmatprep.mubr.f32.mxu0 0.0
      %3100 = vmatmul.mubr.f32.gmra.mrb[0].mxu0 %v2831
      %v3101 = vpop.f32.mrb[0].mxu0
      %v3102 = vadd.f32 %v3029, %v3101
      %v3103 = vpop.f32.mrb[0].mxu0
      %3104 = vmatprep.mubr.f32.mxu0 0.0
      %3105 = vmatmul.mubr.f32.gmra.mrb[0].mxu0 %v2834
      %v3106 = vpop.f32.mrb[0].mxu0
      %v3107 = vadd.f32 %v3029, %v3106
      %v3108 = vpop.f32.mrb[0].mxu0
      %3109 = vmatprep.mubr.f32.mxu0 0.0
      %3110 = vmatmul.mubr.f32.gmra.mrb[0].mxu0 %v2837
      %v3111 = vpop.f32.mrb[0].mxu0
      %v3112 = vadd.f32 %v3029, %v3111
      %v3113 = vpop.f32.mrb[0].mxu0
      %3114 = vmatprep.mubr.f32.mxu0 0.0
      %3115 = vmatmul.mubr.f32.gmra.mrb[0].mxu0 %v2840
      %v3116 = vpop.f32.mrb[0].mxu0
      %v3117 = vadd.f32 %v3029, %v3116
      %v3118 = vpop.f32.mrb[0].mxu0
      %3119 = vmatprep.mubr.f32.mxu0 0.0
      %3120 = vmatmul.mubr.f32.gmra.mrb[0].mxu0 %v2843
      %v3121 = vpop.f32.mrb[0].mxu0
      %v3122 = vadd.f32 %v3029, %v3121
      %v3123 = vpop.f32.mrb[0].mxu0
      %3124 = vmatprep.mubr.f32.mxu0 0.0
      %3125 = vmatmul.mubr.f32.gmra.mrb[0].mxu0 %v2846
      %v3126 = vpop.f32.mrb[0].mxu0
      %v3127 = vadd.f32 %v3029, %v3126
      %v3128 = vpop.f32.mrb[0].mxu0
      %3129 = vmatprep.mubr.f32.mxu0 0.0
      %3130 = vmatmul.mubr.f32.gmra.mrb[0].mxu0 %v2849
      %v3131 = vpop.f32.mrb[0].mxu0
      %v3132 = vadd.f32 %v3029, %v3131
      %v3133 = vpop.f32.mrb[0].mxu0
      %3134 = vmatprep.mubr.f32.mxu0 0.0
      %3135 = vmatmul.mubr.f32.gmra.mrb[0].mxu0 %v2852
      %v3136 = vpop.f32.mrb[0].mxu0
      %v3137 = vadd.f32 %v3029, %v3136
      %v3138 = vpop.f32.mrb[0].mxu0
      %3139 = vmatprep.mubr.f32.mxu0 0.0
      %3140 = vmatmul.mubr.f32.gmra.mrb[0].mxu0 %v2855
      %v3141 = vpop.f32.mrb[0].mxu0
      %v3142 = vadd.f32 %v3029, %v3141
      %v3143 = vpop.f32.mrb[0].mxu0
      %3144 = vmatprep.mubr.f32.mxu0 0.0
      %3145 = vmatmul.mubr.f32.gmra.mrb[0].mxu0 %v2858
      %v3146 = vpop.f32.mrb[0].mxu0
      %v3147 = vadd.f32 %v3029, %v3146
      %v3148 = vpop.f32.mrb[0].mxu0
      %3149 = vmatprep.mubr.f32.mxu0 0.0
      %3150 = vmatmul.mubr.f32.gmra.mrb[0].mxu0 %v2861
      %v3151 = vpop.f32.mrb[0].mxu0
      %v3152 = vadd.f32 %v3029, %v3151
      %v3153 = vpop.f32.mrb[0].mxu0
      %3154 = vmatprep.mubr.f32.mxu0 0.0
      %3155 = vmatmul.mubr.f32.gmra.mrb[0].mxu0 %v2864
      %v3156 = vpop.f32.mrb[0].mxu0
      %v3157 = vadd.f32 %v3029, %v3156
      %v3158 = vpop.f32.mrb[0].mxu0
      %3159 = vmatprep.mubr.f32.mxu0 0.0
      %3160 = vmatmul.mubr.f32.gmra.mrb[0].mxu0 %v2867
      %v3161 = vpop.f32.mrb[0].mxu0
      %v3162 = vadd.f32 %v3029, %v3161
      %v3163 = vpop.f32.mrb[0].mxu0
      %3164 = vmatprep.mubr.f32.mxu0 0.0
      %3165 = vmatmul.mubr.f32.gmra.mrb[0].mxu0 %v2870
      %v3166 = vpop.f32.mrb[0].mxu0
      %v3167 = vadd.f32 %v3029, %v3166
      %v3168 = vpop.f32.mrb[0].mxu0
      %3169 = vmatprep.mubr.f32.mxu0 0.0
      %3170 = vmatmul.mubr.f32.gmra.mrb[0].mxu0 %v2873
      %v3171 = vpop.f32.mrb[0].mxu0
      %v3172 = vadd.f32 %v3029, %v3171
      %v3173 = vpop.f32.mrb[0].mxu0
      %3174 = vdwg.mxu0
      %v3175 = vtanh.pop %v2942
      %v3176 = vtanh.pop %v2947
      %v3177 = vtanh.pop %v2952
      %v3178 = vtanh.pop %v2957
      %v3179 = vtanh.pop %v2962
      %v3180 = vtanh.pop %v2967
      %v3181 = vtanh.pop %v2972
      %v3182 = vtanh.pop %v2977
      %v3183 = vtanh.pop %v2982
      %v3184 = vtanh.pop %v2987
      %v3185 = vtanh.pop %v2992
      %v3186 = vtanh.pop %v2997
      %v3187 = vtanh.pop %v3002
      %v3188 = vtanh.pop %v3007
      %v3189 = vtanh.pop %v3012
      %v3190 = vtanh.pop %v3017
      %v3191 = vmul.f32 %v3175, 1.442695
      %v3192 = vpow.pop %v3191
      %v3193 = vmul.f32 %v3176, 1.442695
      %v3194 = vpow.pop %v3193
      %v3195 = vmul.f32 %v3177, 1.442695
      %v3196 = vpow.pop %v3195
      %v3197 = vmul.f32 %v3178, 1.442695
      %v3198 = vpow.pop %v3197
      %v3199 = vmul.f32 %v3179, 1.442695
      %v3200 = vpow.pop %v3199
      %v3201 = vmul.f32 %v3180, 1.442695
      %v3202 = vpow.pop %v3201
      %v3203 = vmul.f32 %v3181, 1.442695
      %v3204 = vpow.pop %v3203
      %v3205 = vmul.f32 %v3182, 1.442695
      %v3206 = vpow.pop %v3205
      %v3207 = vmul.f32 %v3183, 1.442695
      %v3208 = vpow.pop %v3207
      %v3209 = vmul.f32 %v3184, 1.442695
      %v3210 = vpow.pop %v3209
      %v3211 = vmul.f32 %v3185, 1.442695
      %v3212 = vpow.pop %v3211
      %v3213 = vmul.f32 %v3186, 1.442695
      %v3214 = vpow.pop %v3213
      %v3215 = vmul.f32 %v3187, 1.442695
      %v3216 = vpow.pop %v3215
      %v3217 = vmul.f32 %v3188, 1.442695
      %v3218 = vpow.pop %v3217
      %v3219 = vmul.f32 %v3189, 1.442695
      %v3220 = vpow.pop %v3219
      %v3221 = vmul.f32 %v3190, 1.442695
      %v3222 = vpow.pop %v3221
      %v3223 = vmul.f32 %v1801, %v3192
      %v3224 = vmul.f32 %v1802, %v3194
      %v3225 = vmul.f32 %v1803, %v3196
      %v3226 = vmul.f32 %v1804, %v3198
      %v3227 = vmul.f32 %v1805, %v3200
      %v3228 = vmul.f32 %v1806, %v3202
      %v3229 = vmul.f32 %v1807, %v3204
      %v3230 = vmul.f32 %v1808, %v3206
      %v3231 = vmul.f32 %v1809, %v3208
      %v3232 = vmul.f32 %v1810, %v3210
      %v3233 = vmul.f32 %v1811, %v3212
      %v3234 = vmul.f32 %v1812, %v3214
      %v3235 = vmul.f32 %v1813, %v3216
      %v3236 = vmul.f32 %v1814, %v3218
      %v3237 = vmul.f32 %v1815, %v3220
      %v3238 = vmul.f32 %v1816, %v3222
      %v3239 = vadd.f32 %v3223, %v3097
      %v3240 = vadd.f32 %v3224, %v3102
      %v3241 = vadd.f32 %v3225, %v3107
      %v3242 = vadd.f32 %v3226, %v3112
      %v3243 = vadd.f32 %v3227, %v3117
      %v3244 = vadd.f32 %v3228, %v3122
      %v3245 = vadd.f32 %v3229, %v3127
      %v3246 = vadd.f32 %v3230, %v3132
      %v3247 = vadd.f32 %v3231, %v3137
      %v3248 = vadd.f32 %v3232, %v3142
      %v3249 = vadd.f32 %v3233, %v3147
      %v3250 = vadd.f32 %v3234, %v3152
      %v3251 = vadd.f32 %v3235, %v3157
      %v3252 = vadd.f32 %v3236, %v3162
      %v3253 = vadd.f32 %v3237, %v3167
      %v3254 = vadd.f32 %v3238, %v3172
      %v3255 = vsel %vm451, %v3175, 0.0
      %3256 = vadd.xlane.f32.xlu0 %v3255
      %v3257 = vpop.xlane.xlu0 %3256
      %v3258 = vsel %vm451, %v3176, 0.0
      %3259 = vadd.xlane.f32.xlu0 %v3258
      %v3260 = vpop.xlane.xlu0 %3259
      %v3261 = vsel %vm451, %v3177, 0.0
      %3262 = vadd.xlane.f32.xlu0 %v3261
      %v3263 = vpop.xlane.xlu0 %3262
      %v3264 = vsel %vm451, %v3178, 0.0
      %3265 = vadd.xlane.f32.xlu0 %v3264
      %v3266 = vpop.xlane.xlu0 %3265
      %v3267 = vsel %vm451, %v3179, 0.0
      %3268 = vadd.xlane.f32.xlu0 %v3267
      %v3269 = vpop.xlane.xlu0 %3268
      %v3270 = vsel %vm451, %v3180, 0.0
      %3271 = vadd.xlane.f32.xlu0 %v3270
      %v3272 = vpop.xlane.xlu0 %3271
      %v3273 = vsel %vm451, %v3181, 0.0
      %3274 = vadd.xlane.f32.xlu0 %v3273
      %v3275 = vpop.xlane.xlu0 %3274
      %v3276 = vsel %vm451, %v3182, 0.0
      %3277 = vadd.xlane.f32.xlu0 %v3276
      %v3278 = vpop.xlane.xlu0 %3277
      %v3279 = vsel %vm451, %v3183, 0.0
      %3280 = vadd.xlane.f32.xlu0 %v3279
      %v3281 = vpop.xlane.xlu0 %3280
      %v3282 = vsel %vm451, %v3184, 0.0
      %3283 = vadd.xlane.f32.xlu0 %v3282
      %v3284 = vpop.xlane.xlu0 %3283
      %v3285 = vsel %vm451, %v3185, 0.0
      %3286 = vadd.xlane.f32.xlu0 %v3285
      %v3287 = vpop.xlane.xlu0 %3286
      %v3288 = vsel %vm451, %v3186, 0.0
      %3289 = vadd.xlane.f32.xlu0 %v3288
      %v3290 = vpop.xlane.xlu0 %3289
      %v3291 = vsel %vm451, %v3187, 0.0
      %3292 = vadd.xlane.f32.xlu0 %v3291
      %v3293 = vpop.xlane.xlu0 %3292
      %v3294 = vsel %vm451, %v3188, 0.0
      %3295 = vadd.xlane.f32.xlu0 %v3294
      %v3296 = vpop.xlane.xlu0 %3295
      %v3297 = vsel %vm451, %v3189, 0.0
      %3298 = vadd.xlane.f32.xlu0 %v3297
      %v3299 = vpop.xlane.xlu0 %3298
      %v3300 = vsel %vm451, %v3190, 0.0
      %3301 = vadd.xlane.f32.xlu0 %v3300
      %v3302 = vpop.xlane.xlu0 %3301
      %v3303 = vadd.f32 %v2584, %v3257
      %v3304 = vadd.f32 %v2585, %v3260
      %v3305 = vadd.f32 %v2586, %v3263
      %v3306 = vadd.f32 %v2587, %v3266
      %v3307 = vadd.f32 %v2588, %v3269
      %v3308 = vadd.f32 %v2589, %v3272
      %v3309 = vadd.f32 %v2590, %v3275
      %v3310 = vadd.f32 %v2591, %v3278
      %v3311 = vadd.f32 %v2592, %v3281
      %v3312 = vadd.f32 %v2593, %v3284
      %v3313 = vadd.f32 %v2594, %v3287
      %v3314 = vadd.f32 %v2595, %v3290
      %v3315 = vadd.f32 %v2596, %v3293
      %v3316 = vadd.f32 %v2597, %v3296
      %v3317 = vadd.f32 %v2598, %v3299
      %v3318 = vadd.f32 %v2599, %v3302
      %3319 = vst.msk [vmem:[%s398] sm:$0xff] %vm451, %v3239
      %3320 = vst.msk [vmem:[%s398 + $0x8] sm:$0xff] %vm451, %v3240
      %3321 = vst.msk [vmem:[%s398 + $0x10] sm:$0xff] %vm451, %v3241
      %3322 = vst.msk [vmem:[%s398 + $0x18] sm:$0xff] %vm451, %v3242
      %3323 = vst.msk [vmem:[%s398 + $0x20] sm:$0xff] %vm451, %v3243
      %3324 = vst.msk [vmem:[%s398 + $0x28] sm:$0xff] %vm451, %v3244
      %3325 = vst.msk [vmem:[%s398 + $0x30] sm:$0xff] %vm451, %v3245
      %3326 = vst.msk [vmem:[%s398 + $0x38] sm:$0xff] %vm451, %v3246
      %3327 = vst.msk [vmem:[%s398 + $0x40] sm:$0xff] %vm451, %v3247
      %3328 = vst.msk [vmem:[%s398 + $0x48] sm:$0xff] %vm451, %v3248
      %3329 = vst.msk [vmem:[%s398 + $0x50] sm:$0xff] %vm451, %v3249
      %3330 = vst.msk [vmem:[%s398 + $0x58] sm:$0xff] %vm451, %v3250
      %3331 = vst.msk [vmem:[%s398 + $0x60] sm:$0xff] %vm451, %v3251
      %3332 = vst.msk [vmem:[%s398 + $0x68] sm:$0xff] %vm451, %v3252
      %3333 = vst.msk [vmem:[%s398 + $0x70] sm:$0xff] %vm451, %v3253
      %3334 = vst.msk [vmem:[%s398 + $0x78] sm:$0xff] %vm451, %v3254
      %3335 = vst.msk [vmem:[%s404] sm:$0xff] %vm451, %v2520
      %3336 = vst.msk [vmem:[%s404 + $0x8] sm:$0xff] %vm451, %v2521
      %3337 = vst.msk [vmem:[%s404 + $0x10] sm:$0xff] %vm451, %v2522
      %3338 = vst.msk [vmem:[%s404 + $0x18] sm:$0xff] %vm451, %v2523
      %3339 = vst.msk [vmem:[%s404 + $0x20] sm:$0xff] %vm451, %v2524
      %3340 = vst.msk [vmem:[%s404 + $0x28] sm:$0xff] %vm451, %v2525
      %3341 = vst.msk [vmem:[%s404 + $0x30] sm:$0xff] %vm451, %v2526
      %3342 = vst.msk [vmem:[%s404 + $0x38] sm:$0xff] %vm451, %v2527
      %3343 = vst.msk [vmem:[%s404 + $0x40] sm:$0xff] %vm451, %v2528
      %3344 = vst.msk [vmem:[%s404 + $0x48] sm:$0xff] %vm451, %v2529
      %3345 = vst.msk [vmem:[%s404 + $0x50] sm:$0xff] %vm451, %v2530
      %3346 = vst.msk [vmem:[%s404 + $0x58] sm:$0xff] %vm451, %v2531
      %3347 = vst.msk [vmem:[%s404 + $0x60] sm:$0xff] %vm451, %v2532
      %3348 = vst.msk [vmem:[%s404 + $0x68] sm:$0xff] %vm451, %v2533
      %3349 = vst.msk [vmem:[%s404 + $0x70] sm:$0xff] %vm451, %v2534
      %3350 = vst.msk [vmem:[%s404 + $0x78] sm:$0xff] %vm451, %v2535
      %vm3351 = vcmask 7168
      %3352 = vst.msk [vmem:[%s410] sm:$0xff] %vm3351, %v3303
      %3353 = vst.msk [vmem:[%s410 + $0x8] sm:$0xff] %vm3351, %v3304
      %3354 = vst.msk [vmem:[%s410 + $0x10] sm:$0xff] %vm3351, %v3305
      %3355 = vst.msk [vmem:[%s410 + $0x18] sm:$0xff] %vm3351, %v3306
      %3356 = vst.msk [vmem:[%s410 + $0x20] sm:$0xff] %vm3351, %v3307
      %3357 = vst.msk [vmem:[%s410 + $0x28] sm:$0xff] %vm3351, %v3308
      %3358 = vst.msk [vmem:[%s410 + $0x30] sm:$0xff] %vm3351, %v3309
      %3359 = vst.msk [vmem:[%s410 + $0x38] sm:$0xff] %vm3351, %v3310
      %3360 = vst.msk [vmem:[%s410 + $0x40] sm:$0xff] %vm3351, %v3311
      %3361 = vst.msk [vmem:[%s410 + $0x48] sm:$0xff] %vm3351, %v3312
      %3362 = vst.msk [vmem:[%s410 + $0x50] sm:$0xff] %vm3351, %v3313
      %3363 = vst.msk [vmem:[%s410 + $0x58] sm:$0xff] %vm3351, %v3314
      %3364 = vst.msk [vmem:[%s410 + $0x60] sm:$0xff] %vm3351, %v3315
      %3365 = vst.msk [vmem:[%s410 + $0x68] sm:$0xff] %vm3351, %v3316
      %3366 = vst.msk [vmem:[%s410 + $0x70] sm:$0xff] %vm3351, %v3317
      %3367 = vst.msk [vmem:[%s410 + $0x78] sm:$0xff] %vm3351, %v3318
      %s3368 = smul.u32 16, %s22
      %p3369 = scmp.lt.s32.totalorder %s3368, 31
      %s3370 = scalar_select %p3369, %s3368, 31
      %s3371 = smul.addr %s3370, 8
      %s3372 = scalar_lea.vmem %s8, %s3371
      %s3373 = smul.u32 16, %s22
      %p3374 = scmp.lt.s32.totalorder %s3373, 31
      %s3375 = scalar_select %p3374, %s3373, 31
      %s3376 = smul.addr %s3375, 8
      %s3377 = scalar_lea.vmem %s9, %s3376
      %s3378 = smul.u32 16, %s22
      %p3379 = scmp.lt.s32.totalorder %s3378, 31
      %s3380 = scalar_select %p3379, %s3378, 31
      %s3381 = smul.addr %s3380, 8
      %s3382 = scalar_lea.vmem %s10, %s3381
      // Predicated region
      $region53: #{tpu_custom_call.1} parent=51 // pred_check
        %p3383 = pneg %p218
      $region54: #{tpu_custom_call.1} parent=51 // pred_check_branch
        %3385 = sbr.rel (%p3383) target = $region56
      $region55: #{tpu_custom_call.1} parent=51 // pred_region
        %s3386 = smul.u32 16, %s22
      $region56: #{tpu_custom_call.1} parent=51 // pred_fallthru
        _
      // Predicated region
      $region57: #{tpu_custom_call.1} parent=51 // pred_check
        %p3387 = pneg %p244
      $region58: #{tpu_custom_call.1} parent=51 // pred_check_branch
        %3389 = sbr.rel (%p3387) target = $region60
      $region59: #{tpu_custom_call.1} parent=51 // pred_region
        %s3390 = smul.u32 16, %s22
      $region60: #{tpu_custom_call.1} parent=51 // pred_fallthru
        _
      // Predicated region
      $region61: #{tpu_custom_call.1} parent=51 // pred_check
        %p3391 = pneg %p270
      $region62: #{tpu_custom_call.1} parent=51 // pred_check_branch
        %3393 = sbr.rel (%p3391) target = $region64
      $region63: #{tpu_custom_call.1} parent=51 // pred_region
        %s3394 = smul.u32 16, %s22
      $region64: #{tpu_custom_call.1} parent=51 // pred_fallthru
        _
    $region52: #{tpu_custom_call.1} parent=5 // pred_fallthru
      _
    %p3395 = scmp.le.s32.totalorder 2, %s17
    // Predicated region
    $region65: #{tpu_custom_call.1} parent=5 // pred_check
      %p3396 = pneg %p3395
    $region66: #{tpu_custom_call.1} parent=5 // pred_check_branch
      %3398 = sbr.rel (%p3396) target = $region68
    $region67: #{tpu_custom_call.1} parent=5 // pred_region
      %s3399 = ssub.s32 %s17, 2
      // Predicated region
      $region69: #{tpu_custom_call.1} parent=67 // pred_check
        %p3400 = pneg %p224
      $region70: #{tpu_custom_call.1} parent=67 // pred_check_branch
        %3402 = sbr.rel (%p3400) target = $region72
      $region71: #{tpu_custom_call.1} parent=67 // pred_region
        %s3403 = smul.u32 16, %s23
        %p3404 = scmp.lt.s32.totalorder %s3403, 31
        %s3405 = scalar_select %p3404, %s3403, 31
        %s3406 = smul.addr %s3405, 8
        %s3407 = scalar_lea.vmem %s8, %s3406
      $region72: #{tpu_custom_call.1} parent=67 // pred_fallthru
        _
      // Predicated region
      $region73: #{tpu_custom_call.1} parent=67 // pred_check
        %p3408 = pneg %p250
      $region74: #{tpu_custom_call.1} parent=67 // pred_check_branch
        %3410 = sbr.rel (%p3408) target = $region76
      $region75: #{tpu_custom_call.1} parent=67 // pred_region
        %s3411 = smul.u32 16, %s23
        %p3412 = scmp.lt.s32.totalorder %s3411, 31
        %s3413 = scalar_select %p3412, %s3411, 31
        %s3414 = smul.addr %s3413, 8
        %s3415 = scalar_lea.vmem %s9, %s3414
      $region76: #{tpu_custom_call.1} parent=67 // pred_fallthru
        _
      // Predicated region
      $region77: #{tpu_custom_call.1} parent=67 // pred_check
        %p3416 = pneg %p276
      $region78: #{tpu_custom_call.1} parent=67 // pred_check_branch
        %3418 = sbr.rel (%p3416) target = $region80
      $region79: #{tpu_custom_call.1} parent=67 // pred_region
        %s3419 = smul.u32 16, %s23
        %p3420 = scmp.lt.s32.totalorder %s3419, 31
        %s3421 = scalar_select %p3420, %s3419, 31
        %s3422 = smul.addr %s3421, 8
        %s3423 = scalar_lea.vmem %s10, %s3422
      $region80: #{tpu_custom_call.1} parent=67 // pred_fallthru
        _
    $region68: #{tpu_custom_call.1} parent=5 // pred_fallthru
      _
  $region6: #{tpu_custom_call.1} parent=0 // loop_footer
    %s21 = sadd.s32 1, %s17
  $region7: #{tpu_custom_call.1} parent=0 // loop_footer_branch
    %16 = sbr.rel target = $region3
  $region8: #{tpu_custom_call.1} parent=0 // loop_exit
    _

</llo_original>
